<compile_context>
chip_gen: v6e
topology: v6e:2x2x1
jax: 0.10.0
libtpu: 0.0.40
codegen_flags: <defaults>
</compile_context>

<pallas_src>
import math
from functools import partial

import jax
import jax.numpy as jnp
from jax import lax
from jax.experimental import pallas as pl
from jax.experimental.pallas import tpu as pltpu


def _round_up(x, m):
    return (x + m - 1) // m * m


# ------------------------------ fused kernel -------------------------------

def _make_resblock_kernel(*, taps, sc_tap, K, Ho, Wo, Wop, Wap, pad, Cin,
                          coutp, downsample):
    """Build the fused conv1+pad+conv2+shortcut+relu kernel (static config)."""
    HoWop = Ho * Wop
    Hap = Ho + 2 * pad

    def kernel(x_ref, w1_ref, w2_ref, b1_ref, b2_ref, bsc_ref, o_ref,
               apad_ref, acc_ref, sc_ref):
        # ---- conv1 (+ folded 1x1 shortcut): ONE MXU contraction over K*K*Cin.
        # bf16 tap windows are sliced before the dot (no full-width slabs, no
        # f32 result slicing) and concatenated along the contraction axis.
        cols = []
        for (p, roff, coff) in taps:
            win = x_ref[p, roff:roff + Ho, coff:coff + Wop, :]   # (Ho,Wop,Cin) bf16
            cols.append(win.reshape(HoWop, Cin))
        lhs1 = jnp.concatenate(cols, axis=-1)                    # (HoWop, K*K*Cin)
        y1 = jnp.dot(lhs1, w1_ref[...],
                     preferred_element_type=jnp.float32)         # (HoWop, n1cols)

        a1 = jnp.maximum(y1[:, :coutp] + b1_ref[...], 0.0)       # relu(conv1 + b1)

        # ---- shortcut (f32) into a VMEM scratch ref (bounds its live range) --
        if downsample:
            # shortcut columns were appended to the conv1 RHS by the wrapper.
            sc_ref[...] = y1[:, coutp:] + bsc_ref[...]
        else:
            sp, sr, sc0 = sc_tap                                 # identity: x itself
            xw = x_ref[sp, sr:sr + Ho, sc0:sc0 + Wop, :].reshape(HoWop, Cin)
            xw = xw.astype(jnp.float32)
            if coutp > Cin:
                xw = jnp.concatenate(
                    [xw, jnp.zeros((HoWop, coutp - Cin), jnp.float32)], axis=-1)
            sc_ref[...] = xw + bsc_ref[...]

        # ---- reflect-pad conv1 activation in registers; one contiguous store -
        a1b = a1.astype(jnp.bfloat16).reshape(Ho, Wop, coutp)
        top = [a1b[d:d + 1] for d in range(pad, 0, -1)]
        bot = [a1b[Ho - 1 - d:Ho - d] for d in range(1, pad + 1)]
        rows = jnp.concatenate(top + [a1b] + bot, axis=0)        # (Hap, Wop, coutp)
        left = [rows[:, d:d + 1, :] for d in range(pad, 0, -1)]
        right = [rows[:, Wo - 1 - d:Wo - d, :] for d in range(1, pad + 1)]
        pieces = left + [rows[:, :Wo, :]] + right
        if Wap > Wo + 2 * pad:
            pieces.append(jnp.zeros((Hap, Wap - (Wo + 2 * pad), coutp),
                                    jnp.bfloat16))
        apad_ref[...] = jnp.concatenate(pieces, axis=1)          # (Hap, Wap, coutp)

        # ---- conv2: K*K taps, contraction = coutp per tap, accumulated into an
        # f32 VMEM scratch ref; reshapes are layout-preserving (Wop % 8 == 0).
        for kh in range(K):
            for kw in range(K):
                win2 = apad_ref[kh:kh + Ho, kw:kw + Wop, :].reshape(HoWop, coutp)
                contrib = jnp.dot(win2, w2_ref[kh * K + kw],
                                  preferred_element_type=jnp.float32)
                if kh == 0 and kw == 0:
                    acc_ref[...] = contrib
                else:
                    acc_ref[...] += contrib

        # ---- relu(conv2 + b2)  ->  + shortcut  ->  final relu  (bf16 store) ---
        a2 = jnp.maximum(acc_ref[...] + b2_ref[...], 0.0)
        out = jnp.maximum(a2 + sc_ref[...], 0.0)
        o_ref[...] = out.reshape(1, Ho, Wop, coutp).astype(o_ref.dtype)

    return kernel


# ------------------------------ param helpers ------------------------------

def init_conv_params(key, cout, cin, k):
    """Deterministic init mimicking PyTorch Conv2d defaults."""
    kw_key, kb_key = jax.random.split(key)
    fan_in = cin * k * k
    bound = 1.0 / math.sqrt(fan_in)
    w = jax.random.uniform(kw_key, (cout, cin, k, k), jnp.float32, -bound, bound)
    b = jax.random.uniform(kb_key, (cout,), jnp.float32, -bound, bound)
    return w, b


def _pad_bias(b, coutp):
    return jnp.pad(b, (0, coutp - b.shape[0])).reshape(1, coutp).astype(jnp.float32)


# --------------------------------- wrapper ---------------------------------

def resblock_forward(x_nchw, params, downsample: bool, kernel_size: int = 3):
    """ResBlock.forward: one fused Pallas call for the whole block."""
    w1, b1, w2, b2, ws, bs = params
    K = kernel_size
    pad = (K - 1) // 2
    N, Cin, H, W = x_nchw.shape
    Cout = w1.shape[0]
    coutp = _round_up(max(Cout, 128), 128)           # lane-dense channel pad

    x = jnp.transpose(x_nchw, (0, 2, 3, 1)).astype(jnp.bfloat16)      # NHWC bf16
    xp = jnp.pad(x, ((0, 0), (pad, pad), (pad, pad), (0, 0)), mode="reflect")
    _, Hp, Wp, _ = xp.shape

    if downsample:
        # Polyphase split: stride-2 taps become unit-stride slices of one of 4
        # phase slabs (1x the input bytes - no im2col expansion in HBM).
        Hs, Ws = -(-Hp // 2), -(-Wp // 2)
        xpe = jnp.pad(xp, ((0, 0), (0, 2 * Hs - Hp), (0, 2 * Ws - Wp), (0, 0)))
        ph = xpe.reshape(N, Hs, 2, Ws, 2, Cin).transpose(0, 2, 4, 1, 3, 5)
        src = ph.reshape(N * 4, Hs, Ws, Cin)
        P, Hsrc, Wsrc0 = 4, Hs, Ws
        Ho = (Hp - K) // 2 + 1
        Wo = (Wp - K) // 2 + 1
        taps = [((kh % 2) * 2 + (kw % 2), kh // 2, kw // 2)
                for kh in range(K) for kw in range(K)]
        sc_tap = None                                # shortcut folded into conv1
    else:
        assert Cin == Cout, "identity shortcut requires in_channels == out_channels"
        src = xp
        P, Hsrc, Wsrc0 = 1, Hp, Wp
        Ho, Wo = Hp - K + 1, Wp - K + 1              # == H, W
        taps = [(0, kh, kw) for kh in range(K) for kw in range(K)]
        sc_tap = (0, pad, pad)                       # identity: centre-tap window

    # Activation width padded to a sublane multiple so in-kernel reshapes are
    # layout-preserving; phase width padded so every tap window stays in bounds.
    Wop = _round_up(Wo, 8)
    Wap = _round_up(Wop + 2 * pad, 8)
    coff_max = max(c for (_, _, c) in taps)
    Wsrc = _round_up(max(Wsrc0, coff_max + Wop), 8)
    src = jnp.pad(src.reshape(N * P, Hsrc, Wsrc0, Cin),
                  ((0, 0), (0, 0), (0, Wsrc - Wsrc0), (0, 0)))

    # ---- weight packing: conv1 taps stacked along the contraction axis -------
    KKC = K * K * Cin
    w1m = jnp.transpose(w1, (2, 3, 1, 0)).reshape(KKC, Cout)
    w1m = jnp.pad(w1m, ((0, 0), (0, coutp - Cout)))
    if downsample:
        t_c = pad * K + pad                          # centre tap == x[2i, 2j]
        wsm = jnp.transpose(ws, (2, 3, 1, 0)).reshape(Cin, Cout)
        scm = jnp.zeros((KKC, Cout), jnp.float32)
        scm = scm.at[t_c * Cin:(t_c + 1) * Cin, :].set(wsm)
        scm = jnp.pad(scm, ((0, 0), (0, coutp - Cout)))
        w1ext = jnp.concatenate([w1m, scm], axis=1)  # shortcut as extra columns
        bscm = _pad_bias(bs, coutp)
    else:
        w1ext = w1m
        bscm = jnp.zeros((1, coutp), jnp.float32)
    w1ext = w1ext.astype(jnp.bfloat16)
    n1cols = w1ext.shape[1]

    w2m = jnp.transpose(w2, (2, 3, 1, 0)).reshape(K * K, Cout, Cout)
    w2m = jnp.pad(w2m, ((0, 0), (0, coutp - Cout),
                        (0, coutp - Cout))).astype(jnp.bfloat16)
    b1m = _pad_bias(b1, coutp)
    b2m = _pad_bias(b2, coutp)

    kernel = _make_resblock_kernel(taps=taps, sc_tap=sc_tap, K=K, Ho=Ho, Wo=Wo,
                                   Wop=Wop, Wap=Wap, pad=pad, Cin=Cin,
                                   coutp=coutp, downsample=downsample)

    HoWop = Ho * Wop
    flops = int(2 * N * HoWop * (KKC * n1cols + K * K * coutp * coutp))
    bytes_accessed = int(2 * (src.size + w1ext.size + w2m.size)
                         + 4 * (b1m.size + b2m.size + bscm.size)
                         + 2 * N * HoWop * coutp)

    out = pl.pallas_call(
        kernel,
        out_shape=jax.ShapeDtypeStruct((N, Ho, Wop, coutp), jnp.bfloat16),
        grid=(N,),
        in_specs=[
            pl.BlockSpec((P, Hsrc, Wsrc, Cin), lambda n: (n, 0, 0, 0)),
            # grid-invariant weights / biases: single-buffered
            pl.BlockSpec((KKC, n1cols), lambda n: (0, 0),
                         pipeline_mode=pl.Buffered(1)),
            pl.BlockSpec((K * K, coutp, coutp), lambda n: (0, 0, 0),
                         pipeline_mode=pl.Buffered(1)),
            pl.BlockSpec((1, coutp), lambda n: (0, 0),
                         pipeline_mode=pl.Buffered(1)),
            pl.BlockSpec((1, coutp), lambda n: (0, 0),
                         pipeline_mode=pl.Buffered(1)),
            pl.BlockSpec((1, coutp), lambda n: (0, 0),
                         pipeline_mode=pl.Buffered(1)),
        ],
        out_specs=pl.BlockSpec((1, Ho, Wop, coutp), lambda n: (n, 0, 0, 0)),
        scratch_shapes=[
            pltpu.VMEM((Ho + 2 * pad, Wap, coutp), jnp.bfloat16),  # padded act.
            pltpu.VMEM((HoWop, coutp), jnp.float32),               # conv2 acc
            pltpu.VMEM((HoWop, coutp), jnp.float32),               # shortcut
        ],
        compiler_params=pltpu.CompilerParams(
            dimension_semantics=("parallel",),
            vmem_limit_bytes=32 * 1024 * 1024),
        cost_estimate=pl.CostEstimate(flops=flops, transcendentals=0,
                                      bytes_accessed=bytes_accessed),
    )(src, w1ext, w2m, b1m, b2m, bscm)

    out = out[:, :, :Wo, :Cout].astype(jnp.float32)   # NHWC (valid cols/channels)
    return jnp.transpose(out, (0, 3, 1, 2))           # -> NCHW to match PyTorch


# ------------------------- pure-JAX reference check -------------------------

def _ref_conv(x_nchw, w, b, stride, pad):
    if pad > 0:
        x_nchw = jnp.pad(x_nchw, ((0, 0), (0, 0), (pad, pad), (pad, pad)),
                         mode="reflect")
    y = lax.conv_general_dilated(
        x_nchw, w, window_strides=(stride, stride), padding="VALID",
        dimension_numbers=("NCHW", "OIHW", "NCHW"),
        precision=lax.Precision.HIGHEST)
    return y + b[None, :, None, None]


def ref_forward(x, params, downsample):
    w1, b1, w2, b2, ws, bs = params
    stride1 = 2 if downsample else 1
    shortcut = _ref_conv(x, ws, bs, 2, 0) if downsample else x
    h = jax.nn.relu(_ref_conv(x, w1, b1, stride1, 1))
    h = jax.nn.relu(_ref_conv(h, w2, b2, 1, 1))
    return jax.nn.relu(h + shortcut)


# ---------------------------------- main ------------------------------------

if __name__ == "__main__":
    key = jax.random.PRNGKey(0)
    kx, k1, k2, ks, kx2, k3, k4 = jax.random.split(key, 7)

    # --- downsample ResBlock: Cin=4 -> Cout=8, 16x16 -> 8x8 ---
    N, Cin, H, W = 2, 4, 16, 16
    Cout, ksize = 8, 3
    x = jax.random.normal(kx, (N, Cin, H, W), jnp.float32)
    w1, b1 = init_conv_params(k1, Cout, Cin, ksize)      # conv1: 3x3 stride 2
    w2, b2 = init_conv_params(k2, Cout, Cout, ksize)     # conv2: 3x3 stride 1
    ws, bs = init_conv_params(ks, Cout, Cin, 1)          # shortcut: 1x1 stride 2
    params = (w1, b1, w2, b2, ws, bs)

    fwd = jax.jit(partial(resblock_forward, downsample=True, kernel_size=ksize))
    out = jax.block_until_ready(fwd(x, params))
    ref = jax.block_until_ready(ref_forward(x, params, True))
    assert out.shape == (N, Cout, H // 2, W // 2), out.shape
    err = float(jnp.max(jnp.abs(out - ref)))
    assert jnp.allclose(out, ref, atol=3e-2, rtol=3e-2), err   # bf16 compute

    # --- identity-shortcut ResBlock: C=8, 8x8 -> 8x8 (fused residual path) ---
    N2, C2, H2, W2 = 2, 8, 8, 8
    x2 = jax.random.normal(kx2, (N2, C2, H2, W2), jnp.float32)
    w1b, b1b = init_conv_params(k3, C2, C2, ksize)
    w2b, b2b = init_conv_params(k4, C2, C2, ksize)
    wsb = jnp.zeros((C2, C2, 1, 1), jnp.float32)         # unused (identity)
    bsb = jnp.zeros((C2,), jnp.float32)
    params2 = (w1b, b1b, w2b, b2b, wsb, bsb)

    fwd2 = jax.jit(partial(resblock_forward, downsample=False, kernel_size=ksize))
    out2 = jax.block_until_ready(fwd2(x2, params2))
    ref2 = jax.block_until_ready(ref_forward(x2, params2, False))
    assert out2.shape == (N2, C2, H2, W2), out2.shape
    err2 = float(jnp.max(jnp.abs(out2 - ref2)))
    assert jnp.allclose(out2, ref2, atol=3e-2, rtol=3e-2), err2

    print("KERNEL_OK")
</pallas_src>

<mosaic_0001>
module attributes {stable_mosaic.version = 11 : i64} {
  func.func @kernel(%arg0: i32, %arg1: memref<4x9x16x4xbf16, #tpu.memory_space<vmem>>, %arg2: memref<36x256xbf16, #tpu.memory_space<vmem>>, %arg3: memref<9x128x128xbf16, #tpu.memory_space<vmem>>, %arg4: memref<1x128xf32, #tpu.memory_space<vmem>>, %arg5: memref<1x128xf32, #tpu.memory_space<vmem>>, %arg6: memref<1x128xf32, #tpu.memory_space<vmem>>, %arg7: memref<1x8x8x128xbf16, #tpu.memory_space<vmem>>, %arg8: memref<10x16x128xbf16, #tpu.memory_space<vmem>>, %arg9: memref<64x128xf32, #tpu.memory_space<vmem>>, %arg10: memref<64x128xf32, #tpu.memory_space<vmem>>) attributes {dimension_semantics = [#tpu.dimension_semantics<parallel>], iteration_bounds = array<i64: 2>, scalar_prefetch = 0 : i64, scratch_operands = 3 : i64, tpu.core_type = #tpu.core_type<tc>, window_params = [{transform_indices = @transform_0, window_bounds = array<i64: 4, 9, 16, 4>}, {pipeline_mode = #tpu.pipeline_mode<synchronous>, transform_indices = @transform_1, window_bounds = array<i64: 36, 256>}, {pipeline_mode = #tpu.pipeline_mode<synchronous>, transform_indices = @transform_2, window_bounds = array<i64: 9, 128, 128>}, {pipeline_mode = #tpu.pipeline_mode<synchronous>, transform_indices = @transform_3, window_bounds = array<i64: 1, 128>}, {pipeline_mode = #tpu.pipeline_mode<synchronous>, transform_indices = @transform_4, window_bounds = array<i64: 1, 128>}, {pipeline_mode = #tpu.pipeline_mode<synchronous>, transform_indices = @transform_5, window_bounds = array<i64: 1, 128>}, {transform_indices = @transform_6, window_bounds = array<i64: 1, 8, 8, 128>}]} {
    %c0 = arith.constant 0 : index
    %c0_0 = arith.constant 0 : index
    %c0_1 = arith.constant 0 : index
    %c0_2 = arith.constant 0 : index
    %0 = vector.load %arg1[%c0, %c0_0, %c0_1, %c0_2] : memref<4x9x16x4xbf16, #tpu.memory_space<vmem>>, vector<1x8x8x4xbf16>
    %1 = vector.shape_cast %0 : vector<1x8x8x4xbf16> to vector<8x8x4xbf16>
    %2 = vector.shape_cast %1 : vector<8x8x4xbf16> to vector<64x4xbf16>
    %c1 = arith.constant 1 : index
    %c0_3 = arith.constant 0 : index
    %c0_4 = arith.constant 0 : index
    %c0_5 = arith.constant 0 : index
    %3 = vector.load %arg1[%c1, %c0_3, %c0_4, %c0_5] : memref<4x9x16x4xbf16, #tpu.memory_space<vmem>>, vector<1x8x8x4xbf16>
    %4 = vector.shape_cast %3 : vector<1x8x8x4xbf16> to vector<8x8x4xbf16>
    %5 = vector.shape_cast %4 : vector<8x8x4xbf16> to vector<64x4xbf16>
    %c0_6 = arith.constant 0 : index
    %c0_7 = arith.constant 0 : index
    %c1_8 = arith.constant 1 : index
    %c0_9 = arith.constant 0 : index
    %6 = vector.load %arg1[%c0_6, %c0_7, %c1_8, %c0_9] : memref<4x9x16x4xbf16, #tpu.memory_space<vmem>>, vector<1x8x8x4xbf16>
    %7 = vector.shape_cast %6 : vector<1x8x8x4xbf16> to vector<8x8x4xbf16>
    %8 = vector.shape_cast %7 : vector<8x8x4xbf16> to vector<64x4xbf16>
    %c2 = arith.constant 2 : index
    %c0_10 = arith.constant 0 : index
    %c0_11 = arith.constant 0 : index
    %c0_12 = arith.constant 0 : index
    %9 = vector.load %arg1[%c2, %c0_10, %c0_11, %c0_12] : memref<4x9x16x4xbf16, #tpu.memory_space<vmem>>, vector<1x8x8x4xbf16>
    %10 = vector.shape_cast %9 : vector<1x8x8x4xbf16> to vector<8x8x4xbf16>
    %11 = vector.shape_cast %10 : vector<8x8x4xbf16> to vector<64x4xbf16>
    %c3 = arith.constant 3 : index
    %c0_13 = arith.constant 0 : index
    %c0_14 = arith.constant 0 : index
    %c0_15 = arith.constant 0 : index
    %12 = vector.load %arg1[%c3, %c0_13, %c0_14, %c0_15] : memref<4x9x16x4xbf16, #tpu.memory_space<vmem>>, vector<1x8x8x4xbf16>
    %13 = vector.shape_cast %12 : vector<1x8x8x4xbf16> to vector<8x8x4xbf16>
    %14 = vector.shape_cast %13 : vector<8x8x4xbf16> to vector<64x4xbf16>
    %c2_16 = arith.constant 2 : index
    %c0_17 = arith.constant 0 : index
    %c1_18 = arith.constant 1 : index
    %c0_19 = arith.constant 0 : index
    %15 = vector.load %arg1[%c2_16, %c0_17, %c1_18, %c0_19] : memref<4x9x16x4xbf16, #tpu.memory_space<vmem>>, vector<1x8x8x4xbf16>
    %16 = vector.shape_cast %15 : vector<1x8x8x4xbf16> to vector<8x8x4xbf16>
    %17 = vector.shape_cast %16 : vector<8x8x4xbf16> to vector<64x4xbf16>
    %c0_20 = arith.constant 0 : index
    %c1_21 = arith.constant 1 : index
    %c0_22 = arith.constant 0 : index
    %c0_23 = arith.constant 0 : index
    %18 = vector.load %arg1[%c0_20, %c1_21, %c0_22, %c0_23] : memref<4x9x16x4xbf16, #tpu.memory_space<vmem>>, vector<1x8x8x4xbf16>
    %19 = vector.shape_cast %18 : vector<1x8x8x4xbf16> to vector<8x8x4xbf16>
    %20 = vector.shape_cast %19 : vector<8x8x4xbf16> to vector<64x4xbf16>
    %c1_24 = arith.constant 1 : index
    %c1_25 = arith.constant 1 : index
    %c0_26 = arith.constant 0 : index
    %c0_27 = arith.constant 0 : index
    %21 = vector.load %arg1[%c1_24, %c1_25, %c0_26, %c0_27] : memref<4x9x16x4xbf16, #tpu.memory_space<vmem>>, vector<1x8x8x4xbf16>
    %22 = vector.shape_cast %21 : vector<1x8x8x4xbf16> to vector<8x8x4xbf16>
    %23 = vector.shape_cast %22 : vector<8x8x4xbf16> to vector<64x4xbf16>
    %c0_28 = arith.constant 0 : index
    %c1_29 = arith.constant 1 : index
    %c1_30 = arith.constant 1 : index
    %c0_31 = arith.constant 0 : index
    %24 = vector.load %arg1[%c0_28, %c1_29, %c1_30, %c0_31] : memref<4x9x16x4xbf16, #tpu.memory_space<vmem>>, vector<1x8x8x4xbf16>
    %25 = vector.shape_cast %24 : vector<1x8x8x4xbf16> to vector<8x8x4xbf16>
    %26 = vector.shape_cast %25 : vector<8x8x4xbf16> to vector<64x4xbf16>
    %27 = tpu.concatenate %2, %5, %8, %11, %14, %17, %20, %23, %26 in 1 : vector<64x4xbf16>, vector<64x4xbf16>, vector<64x4xbf16>, vector<64x4xbf16>, vector<64x4xbf16>, vector<64x4xbf16>, vector<64x4xbf16>, vector<64x4xbf16>, vector<64x4xbf16> -> vector<64x36xbf16>
    %c0_32 = arith.constant 0 : index
    %c0_33 = arith.constant 0 : index
    %28 = vector.load %arg2[%c0_32, %c0_33] : memref<36x256xbf16, #tpu.memory_space<vmem>>, vector<36x256xbf16>
    %cst = arith.constant dense<0.000000e+00> : vector<64x256xf32>
    %29 = tpu.matmul %27, %28, %cst {dimension_numbers = #tpu.dot_dimension_numbers<[1], [0], [0], [1], [0, 0, 1, 1], [], []>} : vector<64x36xbf16>, vector<36x256xbf16>, vector<64x256xf32> -> vector<64x256xf32>
    %30 = vector.extract_strided_slice %29 {offsets = [0, 0], sizes = [64, 128], strides = [1, 1]} : vector<64x256xf32> to vector<64x128xf32>
    %c0_34 = arith.constant 0 : index
    %c0_35 = arith.constant 0 : index
    %31 = vector.load %arg4[%c0_34, %c0_35] : memref<1x128xf32, #tpu.memory_space<vmem>>, vector<1x128xf32>
    %32 = vector.broadcast %31 : vector<1x128xf32> to vector<64x128xf32>
    %33 = arith.addf %30, %32 : vector<64x128xf32>
    %cst_36 = arith.constant 0.000000e+00 : f32
    %34 = vector.broadcast %cst_36 : f32 to vector<64x128xf32>
    %35 = arith.maximumf %33, %34 : vector<64x128xf32>
    %36 = vector.extract_strided_slice %29 {offsets = [0, 128], sizes = [64, 128], strides = [1, 1]} : vector<64x256xf32> to vector<64x128xf32>
    %c0_37 = arith.constant 0 : index
    %c0_38 = arith.constant 0 : index
    %37 = vector.load %arg6[%c0_37, %c0_38] : memref<1x128xf32, #tpu.memory_space<vmem>>, vector<1x128xf32>
    %38 = vector.broadcast %37 : vector<1x128xf32> to vector<64x128xf32>
    %39 = arith.addf %36, %38 : vector<64x128xf32>
    %c0_39 = arith.constant 0 : index
    %c0_40 = arith.constant 0 : index
    %40 = vector.load %arg10[%c0_39, %c0_40] : memref<64x128xf32, #tpu.memory_space<vmem>>, vector<64x128xf32>
    tpu.vector_store %arg10[%c0_39, %c0_40], %39 {strides = array<i32>} : memref<64x128xf32, #tpu.memory_space<vmem>>, vector<64x128xf32>,
    %41 = arith.truncf %35 : vector<64x128xf32> to vector<64x128xbf16>
    %42 = vector.shape_cast %41 : vector<64x128xbf16> to vector<8x8x128xbf16>
    %43 = vector.extract_strided_slice %42 {offsets = [1, 0, 0], sizes = [1, 8, 128], strides = [1, 1, 1]} : vector<8x8x128xbf16> to vector<1x8x128xbf16>
    %44 = vector.extract_strided_slice %42 {offsets = [6, 0, 0], sizes = [1, 8, 128], strides = [1, 1, 1]} : vector<8x8x128xbf16> to vector<1x8x128xbf16>
    %45 = tpu.concatenate %43, %42, %44 in 0 : vector<1x8x128xbf16>, vector<8x8x128xbf16>, vector<1x8x128xbf16> -> vector<10x8x128xbf16>
    %46 = vector.extract_strided_slice %45 {offsets = [0, 1, 0], sizes = [10, 1, 128], strides = [1, 1, 1]} : vector<10x8x128xbf16> to vector<10x1x128xbf16>
    %47 = vector.extract_strided_slice %45 {offsets = [0, 6, 0], sizes = [10, 1, 128], strides = [1, 1, 1]} : vector<10x8x128xbf16> to vector<10x1x128xbf16>
    %cst_41 = arith.constant 0.000000e+00 : bf16
    %48 = vector.broadcast %cst_41 : bf16 to vector<10x6x128xbf16>
    %49 = tpu.concatenate %46, %45, %47, %48 in 1 : vector<10x1x128xbf16>, vector<10x8x128xbf16>, vector<10x1x128xbf16>, vector<10x6x128xbf16> -> vector<10x16x128xbf16>
    %c0_42 = arith.constant 0 : index
    %c0_43 = arith.constant 0 : index
    %c0_44 = arith.constant 0 : index
    %50 = vector.load %arg8[%c0_42, %c0_43, %c0_44] : memref<10x16x128xbf16, #tpu.memory_space<vmem>>, vector<10x16x128xbf16>
    tpu.vector_store %arg8[%c0_42, %c0_43, %c0_44], %49 {strides = array<i32>} : memref<10x16x128xbf16, #tpu.memory_space<vmem>>, vector<10x16x128xbf16>,
    %c0_45 = arith.constant 0 : index
    %c0_46 = arith.constant 0 : index
    %c0_47 = arith.constant 0 : index
    %51 = vector.load %arg8[%c0_45, %c0_46, %c0_47] : memref<10x16x128xbf16, #tpu.memory_space<vmem>>, vector<8x8x128xbf16>
    %52 = vector.shape_cast %51 : vector<8x8x128xbf16> to vector<64x128xbf16>
    %c0_48 = arith.constant 0 : index
    %c0_49 = arith.constant 0 : index
    %c0_50 = arith.constant 0 : index
    %53 = vector.load %arg3[%c0_48, %c0_49, %c0_50] : memref<9x128x128xbf16, #tpu.memory_space<vmem>>, vector<1x128x128xbf16>
    %54 = vector.shape_cast %53 : vector<1x128x128xbf16> to vector<128x128xbf16>
    %cst_51 = arith.constant dense<0.000000e+00> : vector<64x128xf32>
    %55 = tpu.matmul %52, %54, %cst_51 {dimension_numbers = #tpu.dot_dimension_numbers<[1], [0], [0], [1], [0, 0, 1, 1], [], []>} : vector<64x128xbf16>, vector<128x128xbf16>, vector<64x128xf32> -> vector<64x128xf32>
    %c0_52 = arith.constant 0 : index
    %c0_53 = arith.constant 0 : index
    %56 = vector.load %arg9[%c0_52, %c0_53] : memref<64x128xf32, #tpu.memory_space<vmem>>, vector<64x128xf32>
    tpu.vector_store %arg9[%c0_52, %c0_53], %55 {strides = array<i32>} : memref<64x128xf32, #tpu.memory_space<vmem>>, vector<64x128xf32>,
    %c0_54 = arith.constant 0 : index
    %c1_55 = arith.constant 1 : index
    %c0_56 = arith.constant 0 : index
    %57 = vector.load %arg8[%c0_54, %c1_55, %c0_56] : memref<10x16x128xbf16, #tpu.memory_space<vmem>>, vector<8x8x128xbf16>
    %58 = vector.shape_cast %57 : vector<8x8x128xbf16> to vector<64x128xbf16>
    %c1_57 = arith.constant 1 : index
    %c0_58 = arith.constant 0 : index
    %c0_59 = arith.constant 0 : index
    %59 = vector.load %arg3[%c1_57, %c0_58, %c0_59] : memref<9x128x128xbf16, #tpu.memory_space<vmem>>, vector<1x128x128xbf16>
    %60 = vector.shape_cast %59 : vector<1x128x128xbf16> to vector<128x128xbf16>
    %cst_60 = arith.constant dense<0.000000e+00> : vector<64x128xf32>
    %61 = tpu.matmul %58, %60, %cst_60 {dimension_numbers = #tpu.dot_dimension_numbers<[1], [0], [0], [1], [0, 0, 1, 1], [], []>} : vector<64x128xbf16>, vector<128x128xbf16>, vector<64x128xf32> -> vector<64x128xf32>
    %c0_61 = arith.constant 0 : index
    %c0_62 = arith.constant 0 : index
    %62 = vector.load %arg9[%c0_61, %c0_62] : memref<64x128xf32, #tpu.memory_space<vmem>>, vector<64x128xf32>
    %63 = arith.addf %62, %61 : vector<64x128xf32>
    %c0_63 = arith.constant 0 : index
    %c0_64 = arith.constant 0 : index
    %64 = vector.load %arg9[%c0_63, %c0_64] : memref<64x128xf32, #tpu.memory_space<vmem>>, vector<64x128xf32>
    tpu.vector_store %arg9[%c0_63, %c0_64], %63 {strides = array<i32>} : memref<64x128xf32, #tpu.memory_space<vmem>>, vector<64x128xf32>,
    %c0_65 = arith.constant 0 : index
    %c2_66 = arith.constant 2 : index
    %c0_67 = arith.constant 0 : index
    %65 = vector.load %arg8[%c0_65, %c2_66, %c0_67] : memref<10x16x128xbf16, #tpu.memory_space<vmem>>, vector<8x8x128xbf16>
    %66 = vector.shape_cast %65 : vector<8x8x128xbf16> to vector<64x128xbf16>
    %c2_68 = arith.constant 2 : index
    %c0_69 = arith.constant 0 : index
    %c0_70 = arith.constant 0 : index
    %67 = vector.load %arg3[%c2_68, %c0_69, %c0_70] : memref<9x128x128xbf16, #tpu.memory_space<vmem>>, vector<1x128x128xbf16>
    %68 = vector.shape_cast %67 : vector<1x128x128xbf16> to vector<128x128xbf16>
    %cst_71 = arith.constant dense<0.000000e+00> : vector<64x128xf32>
    %69 = tpu.matmul %66, %68, %cst_71 {dimension_numbers = #tpu.dot_dimension_numbers<[1], [0], [0], [1], [0, 0, 1, 1], [], []>} : vector<64x128xbf16>, vector<128x128xbf16>, vector<64x128xf32> -> vector<64x128xf32>
    %c0_72 = arith.constant 0 : index
    %c0_73 = arith.constant 0 : index
    %70 = vector.load %arg9[%c0_72, %c0_73] : memref<64x128xf32, #tpu.memory_space<vmem>>, vector<64x128xf32>
    %71 = arith.addf %70, %69 : vector<64x128xf32>
    %c0_74 = arith.constant 0 : index
    %c0_75 = arith.constant 0 : index
    %72 = vector.load %arg9[%c0_74, %c0_75] : memref<64x128xf32, #tpu.memory_space<vmem>>, vector<64x128xf32>
    tpu.vector_store %arg9[%c0_74, %c0_75], %71 {strides = array<i32>} : memref<64x128xf32, #tpu.memory_space<vmem>>, vector<64x128xf32>,
    %c1_76 = arith.constant 1 : index
    %c0_77 = arith.constant 0 : index
    %c0_78 = arith.constant 0 : index
    %73 = vector.load %arg8[%c1_76, %c0_77, %c0_78] : memref<10x16x128xbf16, #tpu.memory_space<vmem>>, vector<8x8x128xbf16>
    %74 = vector.shape_cast %73 : vector<8x8x128xbf16> to vector<64x128xbf16>
    %c3_79 = arith.constant 3 : index
    %c0_80 = arith.constant 0 : index
    %c0_81 = arith.constant 0 : index
    %75 = vector.load %arg3[%c3_79, %c0_80, %c0_81] : memref<9x128x128xbf16, #tpu.memory_space<vmem>>, vector<1x128x128xbf16>
    %76 = vector.shape_cast %75 : vector<1x128x128xbf16> to vector<128x128xbf16>
    %cst_82 = arith.constant dense<0.000000e+00> : vector<64x128xf32>
    %77 = tpu.matmul %74, %76, %cst_82 {dimension_numbers = #tpu.dot_dimension_numbers<[1], [0], [0], [1], [0, 0, 1, 1], [], []>} : vector<64x128xbf16>, vector<128x128xbf16>, vector<64x128xf32> -> vector<64x128xf32>
    %c0_83 = arith.constant 0 : index
    %c0_84 = arith.constant 0 : index
    %78 = vector.load %arg9[%c0_83, %c0_84] : memref<64x128xf32, #tpu.memory_space<vmem>>, vector<64x128xf32>
    %79 = arith.addf %78, %77 : vector<64x128xf32>
    %c0_85 = arith.constant 0 : index
    %c0_86 = arith.constant 0 : index
    %80 = vector.load %arg9[%c0_85, %c0_86] : memref<64x128xf32, #tpu.memory_space<vmem>>, vector<64x128xf32>
    tpu.vector_store %arg9[%c0_85, %c0_86], %79 {strides = array<i32>} : memref<64x128xf32, #tpu.memory_space<vmem>>, vector<64x128xf32>,
    %c1_87 = arith.constant 1 : index
    %c1_88 = arith.constant 1 : index
    %c0_89 = arith.constant 0 : index
    %81 = vector.load %arg8[%c1_87, %c1_88, %c0_89] : memref<10x16x128xbf16, #tpu.memory_space<vmem>>, vector<8x8x128xbf16>
    %82 = vector.shape_cast %81 : vector<8x8x128xbf16> to vector<64x128xbf16>
    %c4 = arith.constant 4 : index
    %c0_90 = arith.constant 0 : index
    %c0_91 = arith.constant 0 : index
    %83 = vector.load %arg3[%c4, %c0_90, %c0_91] : memref<9x128x128xbf16, #tpu.memory_space<vmem>>, vector<1x128x128xbf16>
    %84 = vector.shape_cast %83 : vector<1x128x128xbf16> to vector<128x128xbf16>
    %cst_92 = arith.constant dense<0.000000e+00> : vector<64x128xf32>
    %85 = tpu.matmul %82, %84, %cst_92 {dimension_numbers = #tpu.dot_dimension_numbers<[1], [0], [0], [1], [0, 0, 1, 1], [], []>} : vector<64x128xbf16>, vector<128x128xbf16>, vector<64x128xf32> -> vector<64x128xf32>
    %c0_93 = arith.constant 0 : index
    %c0_94 = arith.constant 0 : index
    %86 = vector.load %arg9[%c0_93, %c0_94] : memref<64x128xf32, #tpu.memory_space<vmem>>, vector<64x128xf32>
    %87 = arith.addf %86, %85 : vector<64x128xf32>
    %c0_95 = arith.constant 0 : index
    %c0_96 = arith.constant 0 : index
    %88 = vector.load %arg9[%c0_95, %c0_96] : memref<64x128xf32, #tpu.memory_space<vmem>>, vector<64x128xf32>
    tpu.vector_store %arg9[%c0_95, %c0_96], %87 {strides = array<i32>} : memref<64x128xf32, #tpu.memory_space<vmem>>, vector<64x128xf32>,
    %c1_97 = arith.constant 1 : index
    %c2_98 = arith.constant 2 : index
    %c0_99 = arith.constant 0 : index
    %89 = vector.load %arg8[%c1_97, %c2_98, %c0_99] : memref<10x16x128xbf16, #tpu.memory_space<vmem>>, vector<8x8x128xbf16>
    %90 = vector.shape_cast %89 : vector<8x8x128xbf16> to vector<64x128xbf16>
    %c5 = arith.constant 5 : index
    %c0_100 = arith.constant 0 : index
    %c0_101 = arith.constant 0 : index
    %91 = vector.load %arg3[%c5, %c0_100, %c0_101] : memref<9x128x128xbf16, #tpu.memory_space<vmem>>, vector<1x128x128xbf16>
    %92 = vector.shape_cast %91 : vector<1x128x128xbf16> to vector<128x128xbf16>
    %cst_102 = arith.constant dense<0.000000e+00> : vector<64x128xf32>
    %93 = tpu.matmul %90, %92, %cst_102 {dimension_numbers = #tpu.dot_dimension_numbers<[1], [0], [0], [1], [0, 0, 1, 1], [], []>} : vector<64x128xbf16>, vector<128x128xbf16>, vector<64x128xf32> -> vector<64x128xf32>
    %c0_103 = arith.constant 0 : index
    %c0_104 = arith.constant 0 : index
    %94 = vector.load %arg9[%c0_103, %c0_104] : memref<64x128xf32, #tpu.memory_space<vmem>>, vector<64x128xf32>
    %95 = arith.addf %94, %93 : vector<64x128xf32>
    %c0_105 = arith.constant 0 : index
    %c0_106 = arith.constant 0 : index
    %96 = vector.load %arg9[%c0_105, %c0_106] : memref<64x128xf32, #tpu.memory_space<vmem>>, vector<64x128xf32>
    tpu.vector_store %arg9[%c0_105, %c0_106], %95 {strides = array<i32>} : memref<64x128xf32, #tpu.memory_space<vmem>>, vector<64x128xf32>,
    %c2_107 = arith.constant 2 : index
    %c0_108 = arith.constant 0 : index
    %c0_109 = arith.constant 0 : index
    %97 = vector.load %arg8[%c2_107, %c0_108, %c0_109] : memref<10x16x128xbf16, #tpu.memory_space<vmem>>, vector<8x8x128xbf16>
    %98 = vector.shape_cast %97 : vector<8x8x128xbf16> to vector<64x128xbf16>
    %c6 = arith.constant 6 : index
    %c0_110 = arith.constant 0 : index
    %c0_111 = arith.constant 0 : index
    %99 = vector.load %arg3[%c6, %c0_110, %c0_111] : memref<9x128x128xbf16, #tpu.memory_space<vmem>>, vector<1x128x128xbf16>
    %100 = vector.shape_cast %99 : vector<1x128x128xbf16> to vector<128x128xbf16>
    %cst_112 = arith.constant dense<0.000000e+00> : vector<64x128xf32>
    %101 = tpu.matmul %98, %100, %cst_112 {dimension_numbers = #tpu.dot_dimension_numbers<[1], [0], [0], [1], [0, 0, 1, 1], [], []>} : vector<64x128xbf16>, vector<128x128xbf16>, vector<64x128xf32> -> vector<64x128xf32>
    %c0_113 = arith.constant 0 : index
    %c0_114 = arith.constant 0 : index
    %102 = vector.load %arg9[%c0_113, %c0_114] : memref<64x128xf32, #tpu.memory_space<vmem>>, vector<64x128xf32>
    %103 = arith.addf %102, %101 : vector<64x128xf32>
    %c0_115 = arith.constant 0 : index
    %c0_116 = arith.constant 0 : index
    %104 = vector.load %arg9[%c0_115, %c0_116] : memref<64x128xf32, #tpu.memory_space<vmem>>, vector<64x128xf32>
    tpu.vector_store %arg9[%c0_115, %c0_116], %103 {strides = array<i32>} : memref<64x128xf32, #tpu.memory_space<vmem>>, vector<64x128xf32>,
    %c2_117 = arith.constant 2 : index
    %c1_118 = arith.constant 1 : index
    %c0_119 = arith.constant 0 : index
    %105 = vector.load %arg8[%c2_117, %c1_118, %c0_119] : memref<10x16x128xbf16, #tpu.memory_space<vmem>>, vector<8x8x128xbf16>
    %106 = vector.shape_cast %105 : vector<8x8x128xbf16> to vector<64x128xbf16>
    %c7 = arith.constant 7 : index
    %c0_120 = arith.constant 0 : index
    %c0_121 = arith.constant 0 : index
    %107 = vector.load %arg3[%c7, %c0_120, %c0_121] : memref<9x128x128xbf16, #tpu.memory_space<vmem>>, vector<1x128x128xbf16>
    %108 = vector.shape_cast %107 : vector<1x128x128xbf16> to vector<128x128xbf16>
    %cst_122 = arith.constant dense<0.000000e+00> : vector<64x128xf32>
    %109 = tpu.matmul %106, %108, %cst_122 {dimension_numbers = #tpu.dot_dimension_numbers<[1], [0], [0], [1], [0, 0, 1, 1], [], []>} : vector<64x128xbf16>, vector<128x128xbf16>, vector<64x128xf32> -> vector<64x128xf32>
    %c0_123 = arith.constant 0 : index
    %c0_124 = arith.constant 0 : index
    %110 = vector.load %arg9[%c0_123, %c0_124] : memref<64x128xf32, #tpu.memory_space<vmem>>, vector<64x128xf32>
    %111 = arith.addf %110, %109 : vector<64x128xf32>
    %c0_125 = arith.constant 0 : index
    %c0_126 = arith.constant 0 : index
    %112 = vector.load %arg9[%c0_125, %c0_126] : memref<64x128xf32, #tpu.memory_space<vmem>>, vector<64x128xf32>
    tpu.vector_store %arg9[%c0_125, %c0_126], %111 {strides = array<i32>} : memref<64x128xf32, #tpu.memory_space<vmem>>, vector<64x128xf32>,
    %c2_127 = arith.constant 2 : index
    %c2_128 = arith.constant 2 : index
    %c0_129 = arith.constant 0 : index
    %113 = vector.load %arg8[%c2_127, %c2_128, %c0_129] : memref<10x16x128xbf16, #tpu.memory_space<vmem>>, vector<8x8x128xbf16>
    %114 = vector.shape_cast %113 : vector<8x8x128xbf16> to vector<64x128xbf16>
    %c8 = arith.constant 8 : index
    %c0_130 = arith.constant 0 : index
    %c0_131 = arith.constant 0 : index
    %115 = vector.load %arg3[%c8, %c0_130, %c0_131] : memref<9x128x128xbf16, #tpu.memory_space<vmem>>, vector<1x128x128xbf16>
    %116 = vector.shape_cast %115 : vector<1x128x128xbf16> to vector<128x128xbf16>
    %cst_132 = arith.constant dense<0.000000e+00> : vector<64x128xf32>
    %117 = tpu.matmul %114, %116, %cst_132 {dimension_numbers = #tpu.dot_dimension_numbers<[1], [0], [0], [1], [0, 0, 1, 1], [], []>} : vector<64x128xbf16>, vector<128x128xbf16>, vector<64x128xf32> -> vector<64x128xf32>
    %c0_133 = arith.constant 0 : index
    %c0_134 = arith.constant 0 : index
    %118 = vector.load %arg9[%c0_133, %c0_134] : memref<64x128xf32, #tpu.memory_space<vmem>>, vector<64x128xf32>
    %119 = arith.addf %118, %117 : vector<64x128xf32>
    %c0_135 = arith.constant 0 : index
    %c0_136 = arith.constant 0 : index
    %120 = vector.load %arg9[%c0_135, %c0_136] : memref<64x128xf32, #tpu.memory_space<vmem>>, vector<64x128xf32>
    tpu.vector_store %arg9[%c0_135, %c0_136], %119 {strides = array<i32>} : memref<64x128xf32, #tpu.memory_space<vmem>>, vector<64x128xf32>,
    %c0_137 = arith.constant 0 : index
    %c0_138 = arith.constant 0 : index
    %121 = vector.load %arg9[%c0_137, %c0_138] : memref<64x128xf32, #tpu.memory_space<vmem>>, vector<64x128xf32>
    %c0_139 = arith.constant 0 : index
    %c0_140 = arith.constant 0 : index
    %122 = vector.load %arg5[%c0_139, %c0_140] : memref<1x128xf32, #tpu.memory_space<vmem>>, vector<1x128xf32>
    %123 = vector.broadcast %122 : vector<1x128xf32> to vector<64x128xf32>
    %124 = arith.addf %121, %123 : vector<64x128xf32>
    %cst_141 = arith.constant 0.000000e+00 : f32
    %125 = vector.broadcast %cst_141 : f32 to vector<64x128xf32>
    %126 = arith.maximumf %124, %125 : vector<64x128xf32>
    %c0_142 = arith.constant 0 : index
    %c0_143 = arith.constant 0 : index
    %127 = vector.load %arg10[%c0_142, %c0_143] : memref<64x128xf32, #tpu.memory_space<vmem>>, vector<64x128xf32>
    %128 = arith.addf %126, %127 : vector<64x128xf32>
    %cst_144 = arith.constant 0.000000e+00 : f32
    %129 = vector.broadcast %cst_144 : f32 to vector<64x128xf32>
    %130 = arith.maximumf %128, %129 : vector<64x128xf32>
    %131 = vector.shape_cast %130 : vector<64x128xf32> to vector<1x8x8x128xf32>
    %132 = arith.truncf %131 : vector<1x8x8x128xf32> to vector<1x8x8x128xbf16>
    %c0_145 = arith.constant 0 : index
    %c0_146 = arith.constant 0 : index
    %c0_147 = arith.constant 0 : index
    %c0_148 = arith.constant 0 : index
    %133 = vector.load %arg7[%c0_145, %c0_146, %c0_147, %c0_148] : memref<1x8x8x128xbf16, #tpu.memory_space<vmem>>, vector<1x8x8x128xbf16>
    tpu.vector_store %arg7[%c0_145, %c0_146, %c0_147, %c0_148], %132 {strides = array<i32>} : memref<1x8x8x128xbf16, #tpu.memory_space<vmem>>, vector<1x8x8x128xbf16>,
    return
  }
  func.func @transform_0(%arg0: i32) -> (i32, i32, i32, i32) {
    %c0_i32 = arith.constant 0 : i32
    %c0_i32_0 = arith.constant 0 : i32
    %c0_i32_1 = arith.constant 0 : i32
    %c0_i32_2 = arith.constant 0 : i32
    return %arg0, %c0_i32, %c0_i32_0, %c0_i32_1 : i32, i32, i32, i32
  }
  func.func @transform_1(%arg0: i32) -> (i32, i32) {
    %c0_i32 = arith.constant 0 : i32
    %c0_i32_0 = arith.constant 0 : i32
    %c0_i32_1 = arith.constant 0 : i32
    return %c0_i32, %c0_i32_0 : i32, i32
  }
  func.func @transform_2(%arg0: i32) -> (i32, i32, i32) {
    %c0_i32 = arith.constant 0 : i32
    %c0_i32_0 = arith.constant 0 : i32
    %c0_i32_1 = arith.constant 0 : i32
    %c0_i32_2 = arith.constant 0 : i32
    return %c0_i32, %c0_i32_0, %c0_i32_1 : i32, i32, i32
  }
  func.func @transform_3(%arg0: i32) -> (i32, i32) {
    %c0_i32 = arith.constant 0 : i32
    %c0_i32_0 = arith.constant 0 : i32
    %c0_i32_1 = arith.constant 0 : i32
    return %c0_i32, %c0_i32_0 : i32, i32
  }
  func.func @transform_4(%arg0: i32) -> (i32, i32) {
    %c0_i32 = arith.constant 0 : i32
    %c0_i32_0 = arith.constant 0 : i32
    %c0_i32_1 = arith.constant 0 : i32
    return %c0_i32, %c0_i32_0 : i32, i32
  }
  func.func @transform_5(%arg0: i32) -> (i32, i32) {
    %c0_i32 = arith.constant 0 : i32
    %c0_i32_0 = arith.constant 0 : i32
    %c0_i32_1 = arith.constant 0 : i32
    return %c0_i32, %c0_i32_0 : i32, i32
  }
  func.func @transform_6(%arg0: i32) -> (i32, i32, i32, i32) {
    %c0_i32 = arith.constant 0 : i32
    %c0_i32_0 = arith.constant 0 : i32
    %c0_i32_1 = arith.constant 0 : i32
    %c0_i32_2 = arith.constant 0 : i32
    return %arg0, %c0_i32, %c0_i32_0, %c0_i32_1 : i32, i32, i32, i32
  }
}

</mosaic_0001>

<llo_original>
// kernel: resblock_forward.1
$region0: #{resblock_forward.1}
  #allocation0 [shape = 'u32[]', space=smem, size = 0x4, offset = 0x4, fixed_abs, tag = 'smem constant byte address 0x4 - core index']
  #allocation1 [shape = 'u32[144,128]{1,0:T(1,128)}', space=vmem, size = 0x12000, scoped, tag = 'internal scratch']
  #allocation2 [shape = 'bf16[10,16,128]{2,1,0:T(8,128)(2,1)}', space=vmem, size = 0xa000, scoped, tag = 'scratch operand']
  #allocation3 [shape = 'f32[64,128]{1,0:T(8,128)}', space=vmem, size = 0x8000, scoped, tag = 'scratch operand']
  #allocation4 [shape = 'f32[64,128]{1,0:T(8,128)}', space=vmem, size = 0x8000, scoped, tag = 'scratch operand']
  %s0 = inlined_call_operand.vmem [shape: bf16[8,9,16,4], index: 0, kind: input, shape index: {}]
  %s1 = inlined_call_operand.vmem [shape: bf16[36,256], index: 1, kind: input, shape index: {}]
  %s2 = inlined_call_operand.vmem [shape: bf16[9,128,128], index: 2, kind: input, shape index: {}]
  %s3 = inlined_call_operand.vmem [shape: f32[1,128], index: 3, kind: input, shape index: {}]
  %s4 = inlined_call_operand.vmem [shape: f32[1,128], index: 4, kind: input, shape index: {}]
  %s5 = inlined_call_operand.vmem [shape: f32[1,128], index: 5, kind: input, shape index: {}]
  %s6 = inlined_call_operand.vmem [shape: bf16[2,8,8,128], index: 6, kind: output, shape index: {}]
  %s7 = sld [smem:[#allocation0]]
  $region57: #{resblock_forward.1} parent=0
    _
  %s9 = ssub.s32 1, %s7
  %s10 = scalar_select 0, %s9, %s7
  loop: start=0, step=1, limit=4
  $region2: #{resblock_forward.1} parent=0 // loop_pre_header
    _
  $region3: #{resblock_forward.1} parent=0 // loop_header
    %s12 = sphi 0, %s16
    %p13 = scmp.ge.s32.totalorder %s12, 4
    %s22 = sphi 0, %s24
    %s25 = sphi 0, %s22
    %s26 = sphi 0, %s25
    %s42 = sphi 0, %s26
    %s46 = sphi 0, %s46
    %s48 = sphi 0, %s46
    %s49 = sphi 0, %s48
    %s63 = sphi 0, %s49
    %s67 = sphi 0, %s67
    %s69 = sphi 0, %s67
    %s70 = sphi 0, %s69
    %s84 = sphi 0, %s70
    %s88 = sphi 0, %s88
    %s90 = sphi 0, %s88
    %s91 = sphi 0, %s90
    %s105 = sphi 0, %s91
    %s109 = sphi 0, %s109
    %s111 = sphi 0, %s109
    %s112 = sphi 0, %s111
    %s126 = sphi 0, %s112
    %s130 = sphi 0, %s130
    %s132 = sphi 0, %s130
    %s133 = sphi 0, %s132
    %s147 = sphi 0, %s133
    %s153 = sphi 0, %s155
    %s156 = sphi 0, %s153
    %s157 = sphi 0, %s156
    %s173 = sphi 0, %s157
  $region4: #{resblock_forward.1} parent=0 // loop_header_branch
    %15 = sbr.rel (%p13) target = $region8
  $region5: #{resblock_forward.1} parent=0 // loop_body
    %s17 = ssub.s32 %s12, 1
    %s18 = ssub.s32 %s12, 2
    %s19 = sadd.s32 %s12, 1
    %s20 = ssub.s32 %s12, %s19
    %p21 = scmp.eq.s32.totalorder %s20, 0
    %s23 = sadd.s32 %s22, 1
    %s24 = scalar_select %p21, %s22, %s23
    %p27 = pneg %p21
    %p28 = scmp.eq.s32.totalorder %s12, 1
    %p29 = por %p27, %p28
    %p30 = scmp.ne.s32.totalorder %s22, %s25
    %p31 = scmp.eq.s32.totalorder %s12, 0
    %p32 = por %p30, %p31
    %p33 = scmp.ne.s32.totalorder %s22, %s25
    %p34 = scmp.eq.s32.totalorder %s17, 1
    %p35 = por %p33, %p34
    %p36 = scmp.ne.s32.totalorder %s25, %s26
    %p37 = scmp.eq.s32.totalorder %s17, 0
    %p38 = por %p36, %p37
    %p39 = scmp.ne.s32.totalorder %s25, %s26
    %p40 = scmp.eq.s32.totalorder %s18, 1
    %p41 = por %p39, %p40
    %p43 = scmp.ne.s32.totalorder %s26, %s42
    %p44 = scmp.eq.s32.totalorder %s18, 0
    %p45 = por %p43, %p44
    %s47 = sadd.s32 %s46, 1
    %p50 = scmp.eq.s32.totalorder %s12, 1
    %p51 = scmp.ne.s32.totalorder %s46, %s48
    %p52 = scmp.eq.s32.totalorder %s12, 0
    %p53 = por %p51, %p52
    %p54 = scmp.ne.s32.totalorder %s46, %s48
    %p55 = scmp.eq.s32.totalorder %s17, 1
    %p56 = por %p54, %p55
    %p57 = scmp.ne.s32.totalorder %s48, %s49
    %p58 = scmp.eq.s32.totalorder %s17, 0
    %p59 = por %p57, %p58
    %p60 = scmp.ne.s32.totalorder %s48, %s49
    %p61 = scmp.eq.s32.totalorder %s18, 1
    %p62 = por %p60, %p61
    %p64 = scmp.ne.s32.totalorder %s49, %s63
    %p65 = scmp.eq.s32.totalorder %s18, 0
    %p66 = por %p64, %p65
    %s68 = sadd.s32 %s67, 1
    %p71 = scmp.eq.s32.totalorder %s12, 1
    %p72 = scmp.ne.s32.totalorder %s67, %s69
    %p73 = scmp.eq.s32.totalorder %s12, 0
    %p74 = por %p72, %p73
    %p75 = scmp.ne.s32.totalorder %s67, %s69
    %p76 = scmp.eq.s32.totalorder %s17, 1
    %p77 = por %p75, %p76
    %p78 = scmp.ne.s32.totalorder %s69, %s70
    %p79 = scmp.eq.s32.totalorder %s17, 0
    %p80 = por %p78, %p79
    %p81 = scmp.ne.s32.totalorder %s69, %s70
    %p82 = scmp.eq.s32.totalorder %s18, 1
    %p83 = por %p81, %p82
    %p85 = scmp.ne.s32.totalorder %s70, %s84
    %p86 = scmp.eq.s32.totalorder %s18, 0
    %p87 = por %p85, %p86
    %s89 = sadd.s32 %s88, 1
    %p92 = scmp.eq.s32.totalorder %s12, 1
    %p93 = scmp.ne.s32.totalorder %s88, %s90
    %p94 = scmp.eq.s32.totalorder %s12, 0
    %p95 = por %p93, %p94
    %p96 = scmp.ne.s32.totalorder %s88, %s90
    %p97 = scmp.eq.s32.totalorder %s17, 1
    %p98 = por %p96, %p97
    %p99 = scmp.ne.s32.totalorder %s90, %s91
    %p100 = scmp.eq.s32.totalorder %s17, 0
    %p101 = por %p99, %p100
    %p102 = scmp.ne.s32.totalorder %s90, %s91
    %p103 = scmp.eq.s32.totalorder %s18, 1
    %p104 = por %p102, %p103
    %p106 = scmp.ne.s32.totalorder %s91, %s105
    %p107 = scmp.eq.s32.totalorder %s18, 0
    %p108 = por %p106, %p107
    %s110 = sadd.s32 %s109, 1
    %p113 = scmp.eq.s32.totalorder %s12, 1
    %p114 = scmp.ne.s32.totalorder %s109, %s111
    %p115 = scmp.eq.s32.totalorder %s12, 0
    %p116 = por %p114, %p115
    %p117 = scmp.ne.s32.totalorder %s109, %s111
    %p118 = scmp.eq.s32.totalorder %s17, 1
    %p119 = por %p117, %p118
    %p120 = scmp.ne.s32.totalorder %s111, %s112
    %p121 = scmp.eq.s32.totalorder %s17, 0
    %p122 = por %p120, %p121
    %p123 = scmp.ne.s32.totalorder %s111, %s112
    %p124 = scmp.eq.s32.totalorder %s18, 1
    %p125 = por %p123, %p124
    %p127 = scmp.ne.s32.totalorder %s112, %s126
    %p128 = scmp.eq.s32.totalorder %s18, 0
    %p129 = por %p127, %p128
    %s131 = sadd.s32 %s130, 1
    %p134 = scmp.eq.s32.totalorder %s12, 1
    %p135 = scmp.ne.s32.totalorder %s130, %s132
    %p136 = scmp.eq.s32.totalorder %s12, 0
    %p137 = por %p135, %p136
    %p138 = scmp.ne.s32.totalorder %s130, %s132
    %p139 = scmp.eq.s32.totalorder %s17, 1
    %p140 = por %p138, %p139
    %p141 = scmp.ne.s32.totalorder %s132, %s133
    %p142 = scmp.eq.s32.totalorder %s17, 0
    %p143 = por %p141, %p142
    %p144 = scmp.ne.s32.totalorder %s132, %s133
    %p145 = scmp.eq.s32.totalorder %s18, 1
    %p146 = por %p144, %p145
    %p148 = scmp.ne.s32.totalorder %s133, %s147
    %p149 = scmp.eq.s32.totalorder %s18, 0
    %p150 = por %p148, %p149
    %s151 = ssub.s32 %s12, %s19
    %p152 = scmp.eq.s32.totalorder %s151, 0
    %s154 = sadd.s32 %s153, 1
    %s155 = scalar_select %p152, %s153, %s154
    %p158 = pneg %p152
    %p159 = scmp.eq.s32.totalorder %s12, 1
    %p160 = por %p158, %p159
    %p161 = scmp.ne.s32.totalorder %s153, %s156
    %p162 = scmp.eq.s32.totalorder %s12, 0
    %p163 = por %p161, %p162
    %p164 = scmp.ne.s32.totalorder %s153, %s156
    %p165 = scmp.eq.s32.totalorder %s17, 1
    %p166 = por %p164, %p165
    %p167 = scmp.ne.s32.totalorder %s156, %s157
    %p168 = scmp.eq.s32.totalorder %s17, 0
    %p169 = por %p167, %p168
    %p170 = scmp.ne.s32.totalorder %s156, %s157
    %p171 = scmp.eq.s32.totalorder %s18, 1
    %p172 = por %p170, %p171
    %p174 = scmp.ne.s32.totalorder %s157, %s173
    %p175 = scmp.eq.s32.totalorder %s18, 0
    %p176 = por %p174, %p175
    %p177 = scmp.le.s32.totalorder 1, %s12
    %p178 = scmp.lt.s32.totalorder %s12, 3
    %p179 = pnand %p177, %p178
    %p180 = pneg %p179
    // Predicated region
    $region9: #{resblock_forward.1} parent=5 // pred_check
      _
    $region10: #{resblock_forward.1} parent=5 // pred_check_branch
      %182 = sbr.rel (%p179) target = $region12
    $region11: #{resblock_forward.1} parent=5 // pred_region
      %s183 = ssub.s32 %s12, 1
      // Predicated region
      $region13: #{resblock_forward.1} parent=11 // pred_check
        %p184 = pneg %p59
      $region14: #{resblock_forward.1} parent=11 // pred_check_branch
        %186 = sbr.rel (%p184) target = $region16
      $region15: #{resblock_forward.1} parent=11 // pred_region
        _
      $region16: #{resblock_forward.1} parent=11 // pred_fallthru
        _
      // Predicated region
      $region17: #{resblock_forward.1} parent=11 // pred_check
        %p187 = pneg %p80
      $region18: #{resblock_forward.1} parent=11 // pred_check_branch
        %189 = sbr.rel (%p187) target = $region20
      $region19: #{resblock_forward.1} parent=11 // pred_region
        _
      $region20: #{resblock_forward.1} parent=11 // pred_fallthru
        _
      // Predicated region
      $region21: #{resblock_forward.1} parent=11 // pred_check
        %p190 = pneg %p101
      $region22: #{resblock_forward.1} parent=11 // pred_check_branch
        %192 = sbr.rel (%p190) target = $region24
      $region23: #{resblock_forward.1} parent=11 // pred_region
        _
      $region24: #{resblock_forward.1} parent=11 // pred_fallthru
        _
      // Predicated region
      $region25: #{resblock_forward.1} parent=11 // pred_check
        %p193 = pneg %p122
      $region26: #{resblock_forward.1} parent=11 // pred_check_branch
        %195 = sbr.rel (%p193) target = $region28
      $region27: #{resblock_forward.1} parent=11 // pred_region
        _
      $region28: #{resblock_forward.1} parent=11 // pred_fallthru
        _
      // Predicated region
      $region29: #{resblock_forward.1} parent=11 // pred_check
        %p196 = pneg %p143
      $region30: #{resblock_forward.1} parent=11 // pred_check_branch
        %198 = sbr.rel (%p196) target = $region32
      $region31: #{resblock_forward.1} parent=11 // pred_region
        _
      $region32: #{resblock_forward.1} parent=11 // pred_fallthru
        _
    $region12: #{resblock_forward.1} parent=5 // pred_fallthru
      _
    %p199 = scmp.lt.s32.totalorder %s12, 2
    // Predicated region
    $region33: #{resblock_forward.1} parent=5 // pred_check
      %p200 = pneg %p199
    $region34: #{resblock_forward.1} parent=5 // pred_check_branch
      %202 = sbr.rel (%p200) target = $region36
    $region35: #{resblock_forward.1} parent=5 // pred_region
      // Predicated region
      $region37: #{resblock_forward.1} parent=35 // pred_check
        %p203 = pneg %p32
      $region38: #{resblock_forward.1} parent=35 // pred_check_branch
        %205 = sbr.rel (%p203) target = $region40
      $region39: #{resblock_forward.1} parent=35 // pred_region
        %s206 = smul.u32 4, %s12
        %p207 = scmp.lt.s32.totalorder %s206, 7
        %s208 = scalar_select %p207, %s206, 7
        %s209 = smul.addr %s208, 18
        %s210 = smul.addr %s209, 4
        %s211 = scalar_lea.vmem %s0, %s210
        %s212 = smul.u32 4, %s12
      $region40: #{resblock_forward.1} parent=35 // pred_fallthru
        _
    $region36: #{resblock_forward.1} parent=5 // pred_fallthru
      _
    %p213 = scmp.le.s32.totalorder 1, %s12
    %p214 = scmp.lt.s32.totalorder %s12, 3
    %p215 = pnand %p213, %p214
    %p216 = pneg %p215
    // Predicated region
    $region41: #{resblock_forward.1} parent=5 // pred_check
      _
    $region42: #{resblock_forward.1} parent=5 // pred_check_branch
      %218 = sbr.rel (%p215) target = $region44
    $region43: #{resblock_forward.1} parent=5 // pred_region
      %s219 = ssub.s32 %s12, 1
      %s220 = smul.u32 4, %s17
      %p221 = scmp.lt.s32.totalorder %s220, 7
      %s222 = scalar_select %p221, %s220, 7
      %s223 = smul.addr %s222, 18
      %s224 = smul.addr %s223, 4
      %s225 = scalar_lea.vmem %s0, %s224
      %p226 = pneg %p38
      %p227 = pneg %p35
      %p228 = pneg %p59
      %p229 = pneg %p56
      %p230 = pneg %p80
      %p231 = pneg %p77
      %p232 = pneg %p101
      %p233 = pneg %p98
      %p234 = pneg %p122
      %p235 = pneg %p119
      %p236 = pneg %p143
      %p237 = pneg %p140
      %p238 = pneg %p169
      %p239 = pneg %p166
      %p240 = scmp.lt.s32.totalorder %s17, 1
      %s241 = scalar_select %p240, %s17, 1
      %s242 = smul.addr %s241, 8
      %s243 = smul.addr %s242, 4
      %s244 = scalar_lea.vmem %s6, %s243
      %s245 = smul.u32 4, %s17
      %p246 = scmp.lt.s32.totalorder %s245, 7
      %s247 = scalar_select %p246, %s245, 7
      %s248 = smul.addr %s247, 18
      %s249 = smul.addr %s248, 4
      %s250 = scalar_lea.vmem %s0, %s249
      %s251 = smul.u32 4, %s17
      %p252 = scmp.lt.s32.totalorder %s17, 1
      %s253 = scalar_select %p252, %s17, 1
      %s254 = smul.addr %s253, 8
      %s255 = smul.addr %s254, 4
      %s256 = scalar_lea.vmem %s6, %s255
      %v258 = vld [vmem:[%s250] sm:$0xf]
      %v259 = vld [vmem:[%s250 + $0x8] sm:$0xf]
      %v260 = vld [vmem:[%s250 + $0x10] sm:$0xf]
      %v261 = vld [vmem:[%s250 + $0x18] sm:$0xf]
      %v262 = vld [vmem:[%s250 + $0x20] sm:$0xf]
      %v263 = vld [vmem:[%s250 + $0x28] sm:$0xf]
      %v264 = vld [vmem:[%s250 + $0x30] sm:$0xf]
      %v265 = vld [vmem:[%s250 + $0x38] sm:$0xf]
      %s266 = scalar_lea.vmem %s250, 72
      %v267 = vld [vmem:[%s266] sm:$0xf]
      %v268 = vld [vmem:[%s266 + $0x8] sm:$0xf]
      %v269 = vld [vmem:[%s266 + $0x10] sm:$0xf]
      %v270 = vld [vmem:[%s266 + $0x18] sm:$0xf]
      %v271 = vld [vmem:[%s266 + $0x20] sm:$0xf]
      %v272 = vld [vmem:[%s266 + $0x28] sm:$0xf]
      %v273 = vld [vmem:[%s266 + $0x30] sm:$0xf]
      %v274 = vld [vmem:[%s266 + $0x38] sm:$0xf]
      %v275 = vld [vmem:[%s250 + $0x4] sm:$0x1]
      %v276 = vld [vmem:[%s250 + $0xc] sm:$0x1]
      %v277 = vld [vmem:[%s250 + $0x14] sm:$0x1]
      %v278 = vld [vmem:[%s250 + $0x1c] sm:$0x1]
      %v279 = vld [vmem:[%s250 + $0x24] sm:$0x1]
      %v280 = vld [vmem:[%s250 + $0x2c] sm:$0x1]
      %v281 = vld [vmem:[%s250 + $0x34] sm:$0x1]
      %v282 = vld [vmem:[%s250 + $0x3c] sm:$0x1]
      %vm283 = vsmask.f32 3328
      %vm284 = vsmask.f32 7440
      %vm285 = vmor %vm283, %vm284
      %v287 = vshrl.u32 %v258, 16
      %v289 = vrot.slane %v287, 4
      %v290 = vshll.u32 %v258, 16
      %v292 = vrot.slane %v290, 5
      %v293 = vor.u32 %v289, %v292
      %v294 = vrot.slane %v293, 4
      %v296 = vshll.u32 %v275, 16
      %v298 = vrot.slane %v296, 5
      %v299 = vsel %vm285, %v294, %v298
      %v301 = vshrl.u32 %v259, 16
      %v303 = vrot.slane %v301, 4
      %v304 = vshll.u32 %v259, 16
      %v306 = vrot.slane %v304, 5
      %v307 = vor.u32 %v303, %v306
      %v308 = vrot.slane %v307, 4
      %v310 = vshll.u32 %v276, 16
      %v312 = vrot.slane %v310, 5
      %v313 = vsel %vm285, %v308, %v312
      %v315 = vshrl.u32 %v260, 16
      %v317 = vrot.slane %v315, 4
      %v318 = vshll.u32 %v260, 16
      %v320 = vrot.slane %v318, 5
      %v321 = vor.u32 %v317, %v320
      %v322 = vrot.slane %v321, 4
      %v324 = vshll.u32 %v277, 16
      %v326 = vrot.slane %v324, 5
      %v327 = vsel %vm285, %v322, %v326
      %v329 = vshrl.u32 %v261, 16
      %v331 = vrot.slane %v329, 4
      %v332 = vshll.u32 %v261, 16
      %v334 = vrot.slane %v332, 5
      %v335 = vor.u32 %v331, %v334
      %v336 = vrot.slane %v335, 4
      %v338 = vshll.u32 %v278, 16
      %v340 = vrot.slane %v338, 5
      %v341 = vsel %vm285, %v336, %v340
      %v343 = vshrl.u32 %v262, 16
      %v345 = vrot.slane %v343, 4
      %v346 = vshll.u32 %v262, 16
      %v348 = vrot.slane %v346, 5
      %v349 = vor.u32 %v345, %v348
      %v350 = vrot.slane %v349, 4
      %v352 = vshll.u32 %v279, 16
      %v354 = vrot.slane %v352, 5
      %v355 = vsel %vm285, %v350, %v354
      %v357 = vshrl.u32 %v263, 16
      %v359 = vrot.slane %v357, 4
      %v360 = vshll.u32 %v263, 16
      %v362 = vrot.slane %v360, 5
      %v363 = vor.u32 %v359, %v362
      %v364 = vrot.slane %v363, 4
      %v366 = vshll.u32 %v280, 16
      %v368 = vrot.slane %v366, 5
      %v369 = vsel %vm285, %v364, %v368
      %v371 = vshrl.u32 %v264, 16
      %v373 = vrot.slane %v371, 4
      %v374 = vshll.u32 %v264, 16
      %v376 = vrot.slane %v374, 5
      %v377 = vor.u32 %v373, %v376
      %v378 = vrot.slane %v377, 4
      %v380 = vshll.u32 %v281, 16
      %v382 = vrot.slane %v380, 5
      %v383 = vsel %vm285, %v378, %v382
      %v385 = vshrl.u32 %v265, 16
      %v387 = vrot.slane %v385, 4
      %v388 = vshll.u32 %v265, 16
      %v390 = vrot.slane %v388, 5
      %v391 = vor.u32 %v387, %v390
      %v392 = vrot.slane %v391, 4
      %v394 = vshll.u32 %v282, 16
      %v396 = vrot.slane %v394, 5
      %v397 = vsel %vm285, %v392, %v396
      %s398 = scalar_lea.vmem %s250, 144
      %v399 = vld [vmem:[%s398] sm:$0xf]
      %v400 = vld [vmem:[%s398 + $0x8] sm:$0xf]
      %v401 = vld [vmem:[%s398 + $0x10] sm:$0xf]
      %v402 = vld [vmem:[%s398 + $0x18] sm:$0xf]
      %v403 = vld [vmem:[%s398 + $0x20] sm:$0xf]
      %v404 = vld [vmem:[%s398 + $0x28] sm:$0xf]
      %v405 = vld [vmem:[%s398 + $0x30] sm:$0xf]
      %v406 = vld [vmem:[%s398 + $0x38] sm:$0xf]
      %s407 = scalar_lea.vmem %s250, 216
      %v408 = vld [vmem:[%s407] sm:$0xf]
      %v409 = vld [vmem:[%s407 + $0x8] sm:$0xf]
      %v410 = vld [vmem:[%s407 + $0x10] sm:$0xf]
      %v411 = vld [vmem:[%s407 + $0x18] sm:$0xf]
      %v412 = vld [vmem:[%s407 + $0x20] sm:$0xf]
      %v413 = vld [vmem:[%s407 + $0x28] sm:$0xf]
      %v414 = vld [vmem:[%s407 + $0x30] sm:$0xf]
      %v415 = vld [vmem:[%s407 + $0x38] sm:$0xf]
      %v416 = vld [vmem:[%s398 + $0x4] sm:$0x1]
      %v417 = vld [vmem:[%s398 + $0xc] sm:$0x1]
      %v418 = vld [vmem:[%s398 + $0x14] sm:$0x1]
      %v419 = vld [vmem:[%s398 + $0x1c] sm:$0x1]
      %v420 = vld [vmem:[%s398 + $0x24] sm:$0x1]
      %v421 = vld [vmem:[%s398 + $0x2c] sm:$0x1]
      %v422 = vld [vmem:[%s398 + $0x34] sm:$0x1]
      %v423 = vld [vmem:[%s398 + $0x3c] sm:$0x1]
      %v425 = vshrl.u32 %v399, 16
      %v427 = vrot.slane %v425, 4
      %v428 = vshll.u32 %v399, 16
      %v430 = vrot.slane %v428, 5
      %v431 = vor.u32 %v427, %v430
      %v432 = vrot.slane %v431, 4
      %v434 = vshll.u32 %v416, 16
      %v436 = vrot.slane %v434, 5
      %v437 = vsel %vm285, %v432, %v436
      %v439 = vshrl.u32 %v400, 16
      %v441 = vrot.slane %v439, 4
      %v442 = vshll.u32 %v400, 16
      %v444 = vrot.slane %v442, 5
      %v445 = vor.u32 %v441, %v444
      %v446 = vrot.slane %v445, 4
      %v448 = vshll.u32 %v417, 16
      %v450 = vrot.slane %v448, 5
      %v451 = vsel %vm285, %v446, %v450
      %v453 = vshrl.u32 %v401, 16
      %v455 = vrot.slane %v453, 4
      %v456 = vshll.u32 %v401, 16
      %v458 = vrot.slane %v456, 5
      %v459 = vor.u32 %v455, %v458
      %v460 = vrot.slane %v459, 4
      %v462 = vshll.u32 %v418, 16
      %v464 = vrot.slane %v462, 5
      %v465 = vsel %vm285, %v460, %v464
      %v467 = vshrl.u32 %v402, 16
      %v469 = vrot.slane %v467, 4
      %v470 = vshll.u32 %v402, 16
      %v472 = vrot.slane %v470, 5
      %v473 = vor.u32 %v469, %v472
      %v474 = vrot.slane %v473, 4
      %v476 = vshll.u32 %v419, 16
      %v478 = vrot.slane %v476, 5
      %v479 = vsel %vm285, %v474, %v478
      %v481 = vshrl.u32 %v403, 16
      %v483 = vrot.slane %v481, 4
      %v484 = vshll.u32 %v403, 16
      %v486 = vrot.slane %v484, 5
      %v487 = vor.u32 %v483, %v486
      %v488 = vrot.slane %v487, 4
      %v490 = vshll.u32 %v420, 16
      %v492 = vrot.slane %v490, 5
      %v493 = vsel %vm285, %v488, %v492
      %v495 = vshrl.u32 %v404, 16
      %v497 = vrot.slane %v495, 4
      %v498 = vshll.u32 %v404, 16
      %v500 = vrot.slane %v498, 5
      %v501 = vor.u32 %v497, %v500
      %v502 = vrot.slane %v501, 4
      %v504 = vshll.u32 %v421, 16
      %v506 = vrot.slane %v504, 5
      %v507 = vsel %vm285, %v502, %v506
      %v509 = vshrl.u32 %v405, 16
      %v511 = vrot.slane %v509, 4
      %v512 = vshll.u32 %v405, 16
      %v514 = vrot.slane %v512, 5
      %v515 = vor.u32 %v511, %v514
      %v516 = vrot.slane %v515, 4
      %v518 = vshll.u32 %v422, 16
      %v520 = vrot.slane %v518, 5
      %v521 = vsel %vm285, %v516, %v520
      %v523 = vshrl.u32 %v406, 16
      %v525 = vrot.slane %v523, 4
      %v526 = vshll.u32 %v406, 16
      %v528 = vrot.slane %v526, 5
      %v529 = vor.u32 %v525, %v528
      %v530 = vrot.slane %v529, 4
      %v532 = vshll.u32 %v423, 16
      %v534 = vrot.slane %v532, 5
      %v535 = vsel %vm285, %v530, %v534
      %s536 = scalar_lea.vmem %s250, 8
      %v537 = vld [vmem:[%s536] sm:$0xf]
      %v538 = vld [vmem:[%s536 + $0x8] sm:$0xf]
      %v539 = vld [vmem:[%s536 + $0x10] sm:$0xf]
      %v540 = vld [vmem:[%s536 + $0x18] sm:$0xf]
      %v541 = vld [vmem:[%s536 + $0x20] sm:$0xf]
      %v542 = vld [vmem:[%s536 + $0x28] sm:$0xf]
      %v543 = vld [vmem:[%s536 + $0x30] sm:$0xf]
      %v544 = vld [vmem:[%s536 + $0x38] sm:$0xf]
      %s545 = scalar_lea.vmem %s250, 80
      %v546 = vld [vmem:[%s545] sm:$0xf]
      %v547 = vld [vmem:[%s545 + $0x8] sm:$0xf]
      %v548 = vld [vmem:[%s545 + $0x10] sm:$0xf]
      %v549 = vld [vmem:[%s545 + $0x18] sm:$0xf]
      %v550 = vld [vmem:[%s545 + $0x20] sm:$0xf]
      %v551 = vld [vmem:[%s545 + $0x28] sm:$0xf]
      %v552 = vld [vmem:[%s545 + $0x30] sm:$0xf]
      %v553 = vld [vmem:[%s545 + $0x38] sm:$0xf]
      %v554 = vld [vmem:[%s536 + $0x4] sm:$0x1]
      %v555 = vld [vmem:[%s536 + $0xc] sm:$0x1]
      %v556 = vld [vmem:[%s536 + $0x14] sm:$0x1]
      %v557 = vld [vmem:[%s536 + $0x1c] sm:$0x1]
      %v558 = vld [vmem:[%s536 + $0x24] sm:$0x1]
      %v559 = vld [vmem:[%s536 + $0x2c] sm:$0x1]
      %v560 = vld [vmem:[%s536 + $0x34] sm:$0x1]
      %v561 = vld [vmem:[%s536 + $0x3c] sm:$0x1]
      %v563 = vshrl.u32 %v537, 16
      %v565 = vrot.slane %v563, 4
      %v566 = vshll.u32 %v537, 16
      %v568 = vrot.slane %v566, 5
      %v569 = vor.u32 %v565, %v568
      %v570 = vrot.slane %v569, 4
      %v572 = vshll.u32 %v554, 16
      %v574 = vrot.slane %v572, 5
      %v575 = vsel %vm285, %v570, %v574
      %v577 = vshrl.u32 %v538, 16
      %v579 = vrot.slane %v577, 4
      %v580 = vshll.u32 %v538, 16
      %v582 = vrot.slane %v580, 5
      %v583 = vor.u32 %v579, %v582
      %v584 = vrot.slane %v583, 4
      %v586 = vshll.u32 %v555, 16
      %v588 = vrot.slane %v586, 5
      %v589 = vsel %vm285, %v584, %v588
      %v591 = vshrl.u32 %v539, 16
      %v593 = vrot.slane %v591, 4
      %v594 = vshll.u32 %v539, 16
      %v596 = vrot.slane %v594, 5
      %v597 = vor.u32 %v593, %v596
      %v598 = vrot.slane %v597, 4
      %v600 = vshll.u32 %v556, 16
      %v602 = vrot.slane %v600, 5
      %v603 = vsel %vm285, %v598, %v602
      %v605 = vshrl.u32 %v540, 16
      %v607 = vrot.slane %v605, 4
      %v608 = vshll.u32 %v540, 16
      %v610 = vrot.slane %v608, 5
      %v611 = vor.u32 %v607, %v610
      %v612 = vrot.slane %v611, 4
      %v614 = vshll.u32 %v557, 16
      %v616 = vrot.slane %v614, 5
      %v617 = vsel %vm285, %v612, %v616
      %v619 = vshrl.u32 %v541, 16
      %v621 = vrot.slane %v619, 4
      %v622 = vshll.u32 %v541, 16
      %v624 = vrot.slane %v622, 5
      %v625 = vor.u32 %v621, %v624
      %v626 = vrot.slane %v625, 4
      %v628 = vshll.u32 %v558, 16
      %v630 = vrot.slane %v628, 5
      %v631 = vsel %vm285, %v626, %v630
      %v633 = vshrl.u32 %v542, 16
      %v635 = vrot.slane %v633, 4
      %v636 = vshll.u32 %v542, 16
      %v638 = vrot.slane %v636, 5
      %v639 = vor.u32 %v635, %v638
      %v640 = vrot.slane %v639, 4
      %v642 = vshll.u32 %v559, 16
      %v644 = vrot.slane %v642, 5
      %v645 = vsel %vm285, %v640, %v644
      %v647 = vshrl.u32 %v543, 16
      %v649 = vrot.slane %v647, 4
      %v650 = vshll.u32 %v543, 16
      %v652 = vrot.slane %v650, 5
      %v653 = vor.u32 %v649, %v652
      %v654 = vrot.slane %v653, 4
      %v656 = vshll.u32 %v560, 16
      %v658 = vrot.slane %v656, 5
      %v659 = vsel %vm285, %v654, %v658
      %v661 = vshrl.u32 %v544, 16
      %v663 = vrot.slane %v661, 4
      %v664 = vshll.u32 %v544, 16
      %v666 = vrot.slane %v664, 5
      %v667 = vor.u32 %v663, %v666
      %v668 = vrot.slane %v667, 4
      %v670 = vshll.u32 %v561, 16
      %v672 = vrot.slane %v670, 5
      %v673 = vsel %vm285, %v668, %v672
      %v682 = vunpack.c.l.b16 %v258
      %v683 = vunpack.c.l.b16 %v259
      %v684 = vunpack.c.l.b16 %v260
      %v685 = vunpack.c.l.b16 %v261
      %v686 = vunpack.c.l.b16 %v262
      %v687 = vunpack.c.l.b16 %v263
      %v688 = vunpack.c.l.b16 %v264
      %v689 = vunpack.c.l.b16 %v265
      %v690 = vpack.c.b16 %v683, %v682
      %v691 = vpack.c.b16 %v685, %v684
      %v692 = vpack.c.b16 %v687, %v686
      %v693 = vpack.c.b16 %v689, %v688
      %v702 = vunpack.c.l.b16 %v267
      %v703 = vunpack.c.l.b16 %v268
      %v704 = vunpack.c.l.b16 %v269
      %v705 = vunpack.c.l.b16 %v270
      %v706 = vunpack.c.l.b16 %v271
      %v707 = vunpack.c.l.b16 %v272
      %v708 = vunpack.c.l.b16 %v273
      %v709 = vunpack.c.l.b16 %v274
      %v710 = vpack.c.b16 %v703, %v702
      %v711 = vpack.c.b16 %v705, %v704
      %v712 = vpack.c.b16 %v707, %v706
      %v713 = vpack.c.b16 %v709, %v708
      %714 = vrot.lane.b32.xlu0 %v710, 4
      %v715 = vpop.permute.xlu0 %714
      %716 = vrot.lane.b32.xlu0 %v711, 4
      %v717 = vpop.permute.xlu0 %716
      %718 = vrot.lane.b32.xlu0 %v712, 4
      %v719 = vpop.permute.xlu0 %718
      %720 = vrot.lane.b32.xlu0 %v713, 4
      %v721 = vpop.permute.xlu0 %720
      %v722 = vunpack.c.l.b16 %v299
      %v723 = vunpack.c.l.b16 %v313
      %v724 = vunpack.c.l.b16 %v327
      %v725 = vunpack.c.l.b16 %v341
      %v726 = vunpack.c.l.b16 %v355
      %v727 = vunpack.c.l.b16 %v369
      %v728 = vunpack.c.l.b16 %v383
      %v729 = vunpack.c.l.b16 %v397
      %v730 = vpack.c.b16 %v723, %v722
      %v731 = vpack.c.b16 %v725, %v724
      %v732 = vpack.c.b16 %v727, %v726
      %v733 = vpack.c.b16 %v729, %v728
      %734 = vrot.lane.b32.xlu0 %v730, 8
      %v735 = vpop.permute.xlu0 %734
      %736 = vrot.lane.b32.xlu0 %v731, 8
      %v737 = vpop.permute.xlu0 %736
      %738 = vrot.lane.b32.xlu0 %v732, 8
      %v739 = vpop.permute.xlu0 %738
      %740 = vrot.lane.b32.xlu0 %v733, 8
      %v741 = vpop.permute.xlu0 %740
      %v750 = vunpack.c.l.b16 %v399
      %v751 = vunpack.c.l.b16 %v400
      %v752 = vunpack.c.l.b16 %v401
      %v753 = vunpack.c.l.b16 %v402
      %v754 = vunpack.c.l.b16 %v403
      %v755 = vunpack.c.l.b16 %v404
      %v756 = vunpack.c.l.b16 %v405
      %v757 = vunpack.c.l.b16 %v406
      %v758 = vpack.c.b16 %v751, %v750
      %v759 = vpack.c.b16 %v753, %v752
      %v760 = vpack.c.b16 %v755, %v754
      %v761 = vpack.c.b16 %v757, %v756
      %762 = vrot.lane.b32.xlu0 %v758, 12
      %v763 = vpop.permute.xlu0 %762
      %764 = vrot.lane.b32.xlu0 %v759, 12
      %v765 = vpop.permute.xlu0 %764
      %766 = vrot.lane.b32.xlu0 %v760, 12
      %v767 = vpop.permute.xlu0 %766
      %768 = vrot.lane.b32.xlu0 %v761, 12
      %v769 = vpop.permute.xlu0 %768
      %v778 = vunpack.c.l.b16 %v408
      %v779 = vunpack.c.l.b16 %v409
      %v780 = vunpack.c.l.b16 %v410
      %v781 = vunpack.c.l.b16 %v411
      %v782 = vunpack.c.l.b16 %v412
      %v783 = vunpack.c.l.b16 %v413
      %v784 = vunpack.c.l.b16 %v414
      %v785 = vunpack.c.l.b16 %v415
      %v786 = vpack.c.b16 %v779, %v778
      %v787 = vpack.c.b16 %v781, %v780
      %v788 = vpack.c.b16 %v783, %v782
      %v789 = vpack.c.b16 %v785, %v784
      %790 = vrot.lane.b32.xlu0 %v786, 16
      %v791 = vpop.permute.xlu0 %790
      %792 = vrot.lane.b32.xlu0 %v787, 16
      %v793 = vpop.permute.xlu0 %792
      %794 = vrot.lane.b32.xlu0 %v788, 16
      %v795 = vpop.permute.xlu0 %794
      %796 = vrot.lane.b32.xlu0 %v789, 16
      %v797 = vpop.permute.xlu0 %796
      %v798 = vunpack.c.l.b16 %v437
      %v799 = vunpack.c.l.b16 %v451
      %v800 = vunpack.c.l.b16 %v465
      %v801 = vunpack.c.l.b16 %v479
      %v802 = vunpack.c.l.b16 %v493
      %v803 = vunpack.c.l.b16 %v507
      %v804 = vunpack.c.l.b16 %v521
      %v805 = vunpack.c.l.b16 %v535
      %v806 = vpack.c.b16 %v799, %v798
      %v807 = vpack.c.b16 %v801, %v800
      %v808 = vpack.c.b16 %v803, %v802
      %v809 = vpack.c.b16 %v805, %v804
      %810 = vrot.lane.b32.xlu0 %v806, 20
      %v811 = vpop.permute.xlu0 %810
      %812 = vrot.lane.b32.xlu0 %v807, 20
      %v813 = vpop.permute.xlu0 %812
      %814 = vrot.lane.b32.xlu0 %v808, 20
      %v815 = vpop.permute.xlu0 %814
      %816 = vrot.lane.b32.xlu0 %v809, 20
      %v817 = vpop.permute.xlu0 %816
      %v826 = vunpack.c.l.b16 %v537
      %v827 = vunpack.c.l.b16 %v538
      %v828 = vunpack.c.l.b16 %v539
      %v829 = vunpack.c.l.b16 %v540
      %v830 = vunpack.c.l.b16 %v541
      %v831 = vunpack.c.l.b16 %v542
      %v832 = vunpack.c.l.b16 %v543
      %v833 = vunpack.c.l.b16 %v544
      %v834 = vpack.c.b16 %v827, %v826
      %v835 = vpack.c.b16 %v829, %v828
      %v836 = vpack.c.b16 %v831, %v830
      %v837 = vpack.c.b16 %v833, %v832
      %838 = vrot.lane.b32.xlu0 %v834, 24
      %v839 = vpop.permute.xlu0 %838
      %840 = vrot.lane.b32.xlu0 %v835, 24
      %v841 = vpop.permute.xlu0 %840
      %842 = vrot.lane.b32.xlu0 %v836, 24
      %v843 = vpop.permute.xlu0 %842
      %844 = vrot.lane.b32.xlu0 %v837, 24
      %v845 = vpop.permute.xlu0 %844
      %v854 = vunpack.c.l.b16 %v546
      %v855 = vunpack.c.l.b16 %v547
      %v856 = vunpack.c.l.b16 %v548
      %v857 = vunpack.c.l.b16 %v549
      %v858 = vunpack.c.l.b16 %v550
      %v859 = vunpack.c.l.b16 %v551
      %v860 = vunpack.c.l.b16 %v552
      %v861 = vunpack.c.l.b16 %v553
      %v862 = vpack.c.b16 %v855, %v854
      %v863 = vpack.c.b16 %v857, %v856
      %v864 = vpack.c.b16 %v859, %v858
      %v865 = vpack.c.b16 %v861, %v860
      %866 = vrot.lane.b32.xlu0 %v862, 28
      %v867 = vpop.permute.xlu0 %866
      %868 = vrot.lane.b32.xlu0 %v863, 28
      %v869 = vpop.permute.xlu0 %868
      %870 = vrot.lane.b32.xlu0 %v864, 28
      %v871 = vpop.permute.xlu0 %870
      %872 = vrot.lane.b32.xlu0 %v865, 28
      %v873 = vpop.permute.xlu0 %872
      %v874 = vunpack.c.l.b16 %v575
      %v875 = vunpack.c.l.b16 %v589
      %v876 = vunpack.c.l.b16 %v603
      %v877 = vunpack.c.l.b16 %v617
      %v878 = vunpack.c.l.b16 %v631
      %v879 = vunpack.c.l.b16 %v645
      %v880 = vunpack.c.l.b16 %v659
      %v881 = vunpack.c.l.b16 %v673
      %v882 = vpack.c.b16 %v875, %v874
      %v883 = vpack.c.b16 %v877, %v876
      %v884 = vpack.c.b16 %v879, %v878
      %v885 = vpack.c.b16 %v881, %v880
      %886 = vrot.lane.b32.xlu0 %v882, 32
      %v887 = vpop.permute.xlu0 %886
      %888 = vrot.lane.b32.xlu0 %v883, 32
      %v889 = vpop.permute.xlu0 %888
      %890 = vrot.lane.b32.xlu0 %v884, 32
      %v891 = vpop.permute.xlu0 %890
      %892 = vrot.lane.b32.xlu0 %v885, 32
      %v893 = vpop.permute.xlu0 %892
      %vm894 = vcmask 31744
      %v897 = vsel %vm894, %v690, %v715
      %v900 = vsel %vm894, %v691, %v717
      %v903 = vsel %vm894, %v692, %v719
      %v906 = vsel %vm894, %v693, %v721
      %vm907 = vcmask 64512
      %v909 = vsel %vm907, %v897, %v735
      %v911 = vsel %vm907, %v900, %v737
      %v913 = vsel %vm907, %v903, %v739
      %v915 = vsel %vm907, %v906, %v741
      %vm916 = vcmask 97280
      %v918 = vsel %vm916, %v909, %v763
      %v920 = vsel %vm916, %v911, %v765
      %v922 = vsel %vm916, %v913, %v767
      %v924 = vsel %vm916, %v915, %v769
      %vm925 = vcmask 130048
      %v927 = vsel %vm925, %v918, %v791
      %v929 = vsel %vm925, %v920, %v793
      %v931 = vsel %vm925, %v922, %v795
      %v933 = vsel %vm925, %v924, %v797
      %vm934 = vcmask 162816
      %v936 = vsel %vm934, %v927, %v811
      %v938 = vsel %vm934, %v929, %v813
      %v940 = vsel %vm934, %v931, %v815
      %v942 = vsel %vm934, %v933, %v817
      %vm943 = vcmask 195584
      %v945 = vsel %vm943, %v936, %v839
      %v947 = vsel %vm943, %v938, %v841
      %v949 = vsel %vm943, %v940, %v843
      %v951 = vsel %vm943, %v942, %v845
      %vm952 = vcmask 228352
      %v954 = vsel %vm952, %v945, %v867
      %v956 = vsel %vm952, %v947, %v869
      %v958 = vsel %vm952, %v949, %v871
      %v960 = vsel %vm952, %v951, %v873
      %vm961 = vcmask 261120
      %v963 = vsel %vm961, %v954, %v887
      %v965 = vsel %vm961, %v956, %v889
      %v967 = vsel %vm961, %v958, %v891
      %v969 = vsel %vm961, %v960, %v893
      %v970 = vld [vmem:[%s1] sm:$0xff]
      %v971 = vld [vmem:[%s1 + $0x8] sm:$0xff]
      %v972 = vld [vmem:[%s1 + $0x10] sm:$0xff]
      %v973 = vld [vmem:[%s1 + $0x18] sm:$0xff]
      %v974 = vld [vmem:[%s1 + $0x20] sm:$0x33]
      %v980 = vunpack.c.l.b16 %v970
      %v981 = vunpack.c.h.b16 %v970
      %v982 = vunpack.c.l.b16 %v971
      %v983 = vunpack.c.h.b16 %v971
      %v984 = vunpack.c.l.b16 %v972
      %v985 = vunpack.c.h.b16 %v972
      %v986 = vunpack.c.l.b16 %v973
      %v987 = vunpack.c.h.b16 %v973
      %v988 = vunpack.c.l.b16 %v974
      %v989 = vunpack.c.h.b16 %v974
      %v990 = vpack.c.b16 %v982, %v980
      %v991 = vpack.c.b16 %v983, %v981
      %v992 = vpack.c.b16 %v986, %v984
      %v993 = vpack.c.b16 %v987, %v985
      %v994 = vpack.c.b16 %v988, %v988
      %v995 = vpack.c.b16 %v989, %v989
      %vm1000 = vcmask 293888
      %v1001 = vsel %vm1000, %v963, 0
      %v1003 = vsel %vm1000, %v965, 0
      %v1005 = vsel %vm1000, %v967, 0
      %v1007 = vsel %vm1000, %v969, 0
      %vm1009 = vcmask 1041408
      %v1011 = vsel %vm1009, %v994, 0
      %v1014 = vsel %vm1009, %v995, 0
      %1016 = vmatprep.subr.bf16.mxu0 0
      %1017 = vmatpush1.bf16.msra.mxu0 0
      %1018 = vmatprep.subr.bf16.mxu0 0
      %1019 = vmatpush1.bf16.msra.mxu0 0
      %1020 = vmatprep.subr.bf16.mxu0 0
      %1021 = vmatpush1.bf16.msra.mxu0 0
      %1022 = vmatprep.subr.bf16.mxu0 0
      %1023 = vmatpush1.bf16.msra.mxu0 0
      %1024 = vmatprep.subr.bf16.mxu0 0
      %1025 = vmatpush1.bf16.msra.mxu0 0
      %1026 = vmatprep.subr.bf16.mxu0 %v1014
      %1027 = vmatpush1.bf16.msra.mxu0 %v1011
      %1028 = vmatprep.subr.bf16.mxu0 %v993
      %1029 = vmatpush1.bf16.msra.mxu0 %v992
      %1030 = vmatprep.subr.bf16.mxu0 %v991
      %1031 = vmatpush1.bf16.msra.mxu0 %v990
      %1032 = vmatprep.subr.bf16.mxu0 0
      %1033 = vmatpush2.bf16.msra.mxu0 0
      %1034 = vmatprep.subr.bf16.mxu0 0
      %1035 = vmatpush2.bf16.msra.mxu0 0
      %1036 = vmatprep.subr.bf16.mxu0 0
      %1037 = vmatpush2.bf16.msra.mxu0 0
      %1038 = vmatprep.subr.bf16.mxu0 0
      %1039 = vmatpush2.bf16.msra.mxu0 0
      %1040 = vmatprep.subr.bf16.mxu0 0
      %1041 = vmatpush2.bf16.msra.mxu0 0
      %1042 = vmatprep.subr.bf16.mxu0 0
      %1043 = vmatpush2.bf16.msra.mxu0 0
      %1044 = vmatprep.subr.bf16.mxu0 0
      %1045 = vmatpush2.bf16.msra.mxu0 0
      %1046 = vmatprep.subr.bf16.mxu0 0
      %1047 = vmatpush2.bf16.msra.mxu0 0
      %1048 = vmatprep.mubr.bf16.mxu0 0
      %1049 = vmatmul.mubr.bf16.gmra.mxu0 %v1001
      %v1050 = vpop.f32.mrf.mxu0
      %v1051 = vadd.f32 0.0, %v1050
      %v1052 = vpop.f32.mrf.mxu0
      %v1053 = vadd.f32 0.0, %v1052
      %v1054 = vpop.f32.mrf.mxu0
      %v1055 = vadd.f32 0.0, %v1054
      %v1056 = vpop.f32.mrf.mxu0
      %v1057 = vadd.f32 0.0, %v1056
      %1058 = vmatprep.mubr.bf16.mxu0 0
      %1059 = vmatmul.mubr.bf16.gmra.mxu0 %v1003
      %v1060 = vpop.f32.mrf.mxu0
      %v1061 = vadd.f32 0.0, %v1060
      %v1062 = vpop.f32.mrf.mxu0
      %v1063 = vadd.f32 0.0, %v1062
      %v1064 = vpop.f32.mrf.mxu0
      %v1065 = vadd.f32 0.0, %v1064
      %v1066 = vpop.f32.mrf.mxu0
      %v1067 = vadd.f32 0.0, %v1066
      %1068 = vmatprep.mubr.bf16.mxu0 0
      %1069 = vmatmul.mubr.bf16.gmra.mxu0 %v1005
      %v1070 = vpop.f32.mrf.mxu0
      %v1071 = vadd.f32 0.0, %v1070
      %v1072 = vpop.f32.mrf.mxu0
      %v1073 = vadd.f32 0.0, %v1072
      %v1074 = vpop.f32.mrf.mxu0
      %v1075 = vadd.f32 0.0, %v1074
      %v1076 = vpop.f32.mrf.mxu0
      %v1077 = vadd.f32 0.0, %v1076
      %1078 = vmatprep.mubr.bf16.mxu0 0
      %1079 = vmatmul.mubr.bf16.gmra.mxu0 %v1007
      %v1080 = vpop.f32.mrf.mxu0
      %v1081 = vadd.f32 0.0, %v1080
      %v1082 = vpop.f32.mrf.mxu0
      %v1083 = vadd.f32 0.0, %v1082
      %v1084 = vpop.f32.mrf.mxu0
      %v1085 = vadd.f32 0.0, %v1084
      %v1086 = vpop.f32.mrf.mxu0
      %v1087 = vadd.f32 0.0, %v1086
      %1088 = vdwg.mxu0
      %v1089 = vld [vmem:[%s3] sm:$0x1]
      %v1091 = vlaneseq
      %v1092 = vshrl.u32 %v1091, 7
      %v1093 = vsub.s32 0, %v1092
      %v1094 = vrot.slane %v1089, %v1093
      %v1096 = vadd.f32 %v1051, %v1094
      %v1097 = vadd.f32 %v1055, %v1094
      %v1098 = vadd.f32 %v1061, %v1094
      %v1099 = vadd.f32 %v1065, %v1094
      %v1100 = vadd.f32 %v1071, %v1094
      %v1101 = vadd.f32 %v1075, %v1094
      %v1102 = vadd.f32 %v1081, %v1094
      %v1103 = vadd.f32 %v1085, %v1094
      %v1104 = vmax.f32 %v1096, 0.0
      %v1105 = vmax.f32 %v1097, 0.0
      %v1106 = vmax.f32 %v1098, 0.0
      %v1107 = vmax.f32 %v1099, 0.0
      %v1108 = vmax.f32 %v1100, 0.0
      %v1109 = vmax.f32 %v1101, 0.0
      %v1110 = vmax.f32 %v1102, 0.0
      %v1111 = vmax.f32 %v1103, 0.0
      %v1112 = vld [vmem:[%s5] sm:$0x1]
      %v1114 = vlaneseq
      %v1115 = vshrl.u32 %v1114, 7
      %v1116 = vsub.s32 0, %v1115
      %v1117 = vrot.slane %v1112, %v1116
      %v1119 = vadd.f32 %v1053, %v1117
      %v1120 = vadd.f32 %v1057, %v1117
      %v1121 = vadd.f32 %v1063, %v1117
      %v1122 = vadd.f32 %v1067, %v1117
      %v1123 = vadd.f32 %v1073, %v1117
      %v1124 = vadd.f32 %v1077, %v1117
      %v1125 = vadd.f32 %v1083, %v1117
      %v1126 = vadd.f32 %v1087, %v1117
      %1127 = vst [vmem:[#allocation4] sm:$0xff] %v1119
      %1128 = vst [vmem:[#allocation4 + $0x8] sm:$0xff] %v1120
      %1129 = vst [vmem:[#allocation4 + $0x10] sm:$0xff] %v1121
      %1130 = vst [vmem:[#allocation4 + $0x18] sm:$0xff] %v1122
      %1131 = vst [vmem:[#allocation4 + $0x20] sm:$0xff] %v1123
      %1132 = vst [vmem:[#allocation4 + $0x28] sm:$0xff] %v1124
      %1133 = vst [vmem:[#allocation4 + $0x30] sm:$0xff] %v1125
      %1134 = vst [vmem:[#allocation4 + $0x38] sm:$0xff] %v1126
      %v1135 = vpack.c.bf16 %v1105, %v1104
      %v1136 = vpack.c.bf16 %v1107, %v1106
      %v1137 = vpack.c.bf16 %v1109, %v1108
      %v1138 = vpack.c.bf16 %v1111, %v1110
      %v1143 = vunpack.c.l.b16 %v1135
      %v1144 = vunpack.c.h.b16 %v1135
      %v1145 = vunpack.c.l.b16 %v1136
      %v1146 = vunpack.c.h.b16 %v1136
      %v1147 = vunpack.c.l.b16 %v1137
      %v1148 = vunpack.c.h.b16 %v1137
      %v1149 = vunpack.c.l.b16 %v1138
      %v1150 = vunpack.c.h.b16 %v1138
      %v1151 = vpack.c.b16 %v1144, %v1144
      %v1152 = vpack.c.b16 %v1143, %v1143
      %v1153 = vpack.c.b16 %v1145, %v1145
      %v1154 = vpack.c.b16 %v1146, %v1146
      %v1155 = vpack.c.b16 %v1147, %v1147
      %v1156 = vpack.c.b16 %v1148, %v1148
      %v1157 = vpack.c.b16 %v1149, %v1149
      %v1158 = vpack.c.b16 %v1150, %v1150
      %v1160 = vshrl.u32 %v1151, 16
      %v1163 = vshrl.u32 %v1152, 16
      %v1166 = vshrl.u32 %v1153, 16
      %v1169 = vshrl.u32 %v1154, 16
      %v1172 = vshrl.u32 %v1155, 16
      %v1175 = vshrl.u32 %v1156, 16
      %v1178 = vshrl.u32 %v1157, 16
      %v1181 = vshrl.u32 %v1158, 16
      %v1191 = vrot.slane %v1160, 7
      %v1192 = vshll.u32 %v1151, 16
      %v1194 = vor.u32 %v1191, %v1192
      %v1195 = vrot.slane %v1163, 7
      %v1196 = vshll.u32 %v1152, 16
      %v1198 = vor.u32 %v1195, %v1196
      %v1199 = vrot.slane %v1166, 7
      %v1200 = vshll.u32 %v1153, 16
      %v1202 = vor.u32 %v1199, %v1200
      %v1203 = vrot.slane %v1169, 7
      %v1204 = vshll.u32 %v1154, 16
      %v1206 = vor.u32 %v1203, %v1204
      %v1207 = vrot.slane %v1172, 7
      %v1208 = vshll.u32 %v1155, 16
      %v1210 = vor.u32 %v1207, %v1208
      %v1211 = vrot.slane %v1175, 7
      %v1212 = vshll.u32 %v1156, 16
      %v1214 = vor.u32 %v1211, %v1212
      %v1215 = vrot.slane %v1178, 7
      %v1216 = vshll.u32 %v1157, 16
      %v1218 = vor.u32 %v1215, %v1216
      %v1219 = vrot.slane %v1181, 7
      %v1220 = vshll.u32 %v1158, 16
      %v1222 = vor.u32 %v1219, %v1220
      %v1231 = vrot.slane %v1192, 7
      %v1232 = vrot.slane %v1196, 7
      %v1233 = vrot.slane %v1200, 7
      %v1234 = vrot.slane %v1204, 7
      %v1235 = vrot.slane %v1208, 7
      %v1236 = vrot.slane %v1212, 7
      %v1237 = vrot.slane %v1216, 7
      %v1238 = vrot.slane %v1220, 7
      %vm1247 = vcmask 1040384
      %vm1248 = vsmask.f32 256
      %vm1249 = vmand %vm1247, %vm1248
      %v1250 = vsel %vm1249, %v1160, %v1194
      %v1251 = vsel %vm1249, %v1163, %v1198
      %v1252 = vsel %vm1249, %v1166, %v1202
      %v1253 = vsel %vm1249, %v1169, %v1206
      %v1254 = vsel %vm1249, %v1172, %v1210
      %v1255 = vsel %vm1249, %v1175, %v1214
      %v1256 = vsel %vm1249, %v1178, %v1218
      %v1257 = vsel %vm1249, %v1181, %v1222
      %vm1258 = vcmask 1044480
      %vm1259 = vsmask.f32 4352
      %vm1260 = vmand %vm1258, %vm1259
      %v1261 = vsel %vm1260, %v1250, %v1231
      %v1262 = vsel %vm1260, %v1251, %v1232
      %v1263 = vsel %vm1260, %v1252, %v1233
      %v1264 = vsel %vm1260, %v1253, %v1234
      %v1265 = vsel %vm1260, %v1254, %v1235
      %v1266 = vsel %vm1260, %v1255, %v1236
      %v1267 = vsel %vm1260, %v1256, %v1237
      %v1268 = vsel %vm1260, %v1257, %v1238
      %vm1269 = vcmask 1044480
      %v1272 = vsel %vm1269, %v1261, 0
      %v1274 = vsel %vm1269, %v1262, 0
      %v1276 = vsel %vm1269, %v1263, 0
      %v1278 = vsel %vm1269, %v1264, 0
      %v1280 = vsel %vm1269, %v1265, 0
      %v1282 = vsel %vm1269, %v1266, 0
      %v1284 = vsel %vm1269, %v1267, 0
      %v1286 = vsel %vm1269, %v1268, 0
      %v1295 = vunpack.c.l.b16 %v1272
      %v1296 = vunpack.c.h.b16 %v1272
      %v1297 = vunpack.c.l.b16 %v1274
      %v1298 = vunpack.c.h.b16 %v1274
      %v1299 = vunpack.c.l.b16 %v1276
      %v1300 = vunpack.c.h.b16 %v1276
      %v1301 = vunpack.c.l.b16 %v1278
      %v1302 = vunpack.c.h.b16 %v1278
      %v1303 = vunpack.c.l.b16 %v1280
      %v1304 = vunpack.c.h.b16 %v1280
      %v1305 = vunpack.c.l.b16 %v1282
      %v1306 = vunpack.c.h.b16 %v1282
      %v1307 = vunpack.c.l.b16 %v1284
      %v1308 = vunpack.c.h.b16 %v1284
      %v1309 = vunpack.c.l.b16 %v1286
      %v1310 = vunpack.c.h.b16 %v1286
      %v1311 = vpack.c.b16 %v1295, %v1295
      %v1312 = vpack.c.b16 %v1296, %v1296
      %v1313 = vpack.c.b16 %v1297, %v1297
      %v1314 = vpack.c.b16 %v1298, %v1298
      %v1315 = vpack.c.b16 %v1299, %v1299
      %v1316 = vpack.c.b16 %v1300, %v1300
      %v1317 = vpack.c.b16 %v1301, %v1301
      %v1318 = vpack.c.b16 %v1302, %v1302
      %v1319 = vpack.c.b16 %v1303, %v1303
      %v1320 = vpack.c.b16 %v1304, %v1304
      %v1321 = vpack.c.b16 %v1305, %v1305
      %v1322 = vpack.c.b16 %v1306, %v1306
      %v1323 = vpack.c.b16 %v1307, %v1307
      %v1324 = vpack.c.b16 %v1308, %v1308
      %v1325 = vpack.c.b16 %v1309, %v1309
      %v1326 = vpack.c.b16 %v1310, %v1310
      %1343 = vst [vmem:[#allocation2] sm:$0xf] %v1311
      %1344 = vst [vmem:[#allocation2 + $0x4] sm:$0xf] %v1312
      %1345 = vst [vmem:[#allocation2 + $0x8] sm:$0xf] %v1313
      %1346 = vst [vmem:[#allocation2 + $0xc] sm:$0xf] %v1314
      %1347 = vst [vmem:[#allocation2 + $0x10] sm:$0xf] %v1311
      %1348 = vst [vmem:[#allocation2 + $0x14] sm:$0xf] %v1312
      %1349 = vst [vmem:[#allocation2 + $0x18] sm:$0xf] %v1315
      %1350 = vst [vmem:[#allocation2 + $0x1c] sm:$0xf] %v1316
      %1351 = vst [vmem:[#allocation2 + $0x20] sm:$0xf] %v1317
      %1352 = vst [vmem:[#allocation2 + $0x24] sm:$0xf] %v1318
      %1353 = vst [vmem:[#allocation2 + $0x28] sm:$0xf] %v1319
      %1354 = vst [vmem:[#allocation2 + $0x2c] sm:$0xf] %v1320
      %1355 = vst [vmem:[#allocation2 + $0x30] sm:$0xf] %v1321
      %1356 = vst [vmem:[#allocation2 + $0x34] sm:$0xf] %v1322
      %1357 = vst [vmem:[#allocation2 + $0x38] sm:$0xf] %v1323
      %1358 = vst [vmem:[#allocation2 + $0x3c] sm:$0xf] %v1324
      %1359 = vst [vmem:[#allocation2 + $0x40] sm:$0xf] %v1325
      %1360 = vst [vmem:[#allocation2 + $0x44] sm:$0xf] %v1326
      %1361 = vst [vmem:[#allocation2 + $0x48] sm:$0xf] %v1323
      %1362 = vst [vmem:[#allocation2 + $0x4c] sm:$0xf] %v1324
      %v1363 = vld [vmem:[#allocation2] sm:$0xf]
      %v1364 = vld [vmem:[#allocation2 + $0x8] sm:$0xf]
      %v1365 = vld [vmem:[#allocation2 + $0x10] sm:$0xf]
      %v1366 = vld [vmem:[#allocation2 + $0x18] sm:$0xf]
      %v1367 = vld [vmem:[#allocation2 + $0x20] sm:$0xf]
      %v1368 = vld [vmem:[#allocation2 + $0x28] sm:$0xf]
      %v1369 = vld [vmem:[#allocation2 + $0x30] sm:$0xf]
      %v1370 = vld [vmem:[#allocation2 + $0x38] sm:$0xf]
      %v1371 = vld [vmem:[%s2] sm:$0xf]
      %v1372 = vld [vmem:[%s2 + $0x4] sm:$0xf]
      %v1373 = vld [vmem:[%s2 + $0x8] sm:$0xf]
      %v1374 = vld [vmem:[%s2 + $0xc] sm:$0xf]
      %v1375 = vld [vmem:[%s2 + $0x10] sm:$0xf]
      %v1376 = vld [vmem:[%s2 + $0x14] sm:$0xf]
      %v1377 = vld [vmem:[%s2 + $0x18] sm:$0xf]
      %v1378 = vld [vmem:[%s2 + $0x1c] sm:$0xf]
      %v1379 = vld [vmem:[%s2 + $0x20] sm:$0xf]
      %v1380 = vld [vmem:[%s2 + $0x24] sm:$0xf]
      %v1381 = vld [vmem:[%s2 + $0x28] sm:$0xf]
      %v1382 = vld [vmem:[%s2 + $0x2c] sm:$0xf]
      %v1383 = vld [vmem:[%s2 + $0x30] sm:$0xf]
      %v1384 = vld [vmem:[%s2 + $0x34] sm:$0xf]
      %v1385 = vld [vmem:[%s2 + $0x38] sm:$0xf]
      %v1386 = vld [vmem:[%s2 + $0x3c] sm:$0xf]
      %v1395 = vunpack.c.l.b16 %v1363
      %v1396 = vunpack.c.l.b16 %v1364
      %v1397 = vunpack.c.l.b16 %v1365
      %v1398 = vunpack.c.l.b16 %v1366
      %v1399 = vunpack.c.l.b16 %v1367
      %v1400 = vunpack.c.l.b16 %v1368
      %v1401 = vunpack.c.l.b16 %v1369
      %v1402 = vunpack.c.l.b16 %v1370
      %v1403 = vpack.c.b16 %v1396, %v1395
      %v1404 = vpack.c.b16 %v1398, %v1397
      %v1405 = vpack.c.b16 %v1400, %v1399
      %v1406 = vpack.c.b16 %v1402, %v1401
      %v1427 = vunpack.c.l.b16 %v1371
      %v1428 = vunpack.c.l.b16 %v1372
      %v1429 = vunpack.c.l.b16 %v1373
      %v1430 = vunpack.c.l.b16 %v1374
      %v1431 = vunpack.c.l.b16 %v1375
      %v1432 = vunpack.c.l.b16 %v1376
      %v1433 = vunpack.c.l.b16 %v1377
      %v1434 = vunpack.c.l.b16 %v1378
      %v1435 = vunpack.c.l.b16 %v1379
      %v1436 = vunpack.c.l.b16 %v1380
      %v1437 = vunpack.c.l.b16 %v1381
      %v1438 = vunpack.c.l.b16 %v1382
      %v1439 = vunpack.c.l.b16 %v1383
      %v1440 = vunpack.c.l.b16 %v1384
      %v1441 = vunpack.c.l.b16 %v1385
      %v1442 = vunpack.c.l.b16 %v1386
      %v1443 = vpack.c.b16 %v1428, %v1427
      %v1444 = vpack.c.b16 %v1430, %v1429
      %v1445 = vpack.c.b16 %v1432, %v1431
      %v1446 = vpack.c.b16 %v1434, %v1433
      %v1447 = vpack.c.b16 %v1436, %v1435
      %v1448 = vpack.c.b16 %v1438, %v1437
      %v1449 = vpack.c.b16 %v1440, %v1439
      %v1450 = vpack.c.b16 %v1442, %v1441
      %1459 = vmatprep.subr.bf16.mxu0 0
      %1460 = vmatpush1.bf16.msra.mxu0 %v1450
      %1461 = vmatprep.subr.bf16.mxu0 0
      %1462 = vmatpush1.bf16.msra.mxu0 %v1449
      %1463 = vmatprep.subr.bf16.mxu0 0
      %1464 = vmatpush1.bf16.msra.mxu0 %v1448
      %1465 = vmatprep.subr.bf16.mxu0 0
      %1466 = vmatpush1.bf16.msra.mxu0 %v1447
      %1467 = vmatprep.subr.bf16.mxu0 0
      %1468 = vmatpush1.bf16.msra.mxu0 %v1446
      %1469 = vmatprep.subr.bf16.mxu0 0
      %1470 = vmatpush1.bf16.msra.mxu0 %v1445
      %1471 = vmatprep.subr.bf16.mxu0 0
      %1472 = vmatpush1.bf16.msra.mxu0 %v1444
      %1473 = vmatprep.subr.bf16.mxu0 0
      %1474 = vmatpush1.bf16.msra.mxu0 %v1443
      %1475 = vmatprep.subr.bf16.mxu0 0
      %1476 = vmatpush2.bf16.msra.mxu0 0
      %1477 = vmatprep.subr.bf16.mxu0 0
      %1478 = vmatpush2.bf16.msra.mxu0 0
      %1479 = vmatprep.subr.bf16.mxu0 0
      %1480 = vmatpush2.bf16.msra.mxu0 0
      %1481 = vmatprep.subr.bf16.mxu0 0
      %1482 = vmatpush2.bf16.msra.mxu0 0
      %1483 = vmatprep.subr.bf16.mxu0 0
      %1484 = vmatpush2.bf16.msra.mxu0 0
      %1485 = vmatprep.subr.bf16.mxu0 0
      %1486 = vmatpush2.bf16.msra.mxu0 0
      %1487 = vmatprep.subr.bf16.mxu0 0
      %1488 = vmatpush2.bf16.msra.mxu0 0
      %1489 = vmatprep.subr.bf16.mxu0 0
      %1490 = vmatpush2.bf16.msra.mxu0 0
      %1491 = vmatprep.mubr.bf16.mxu0 0
      %1492 = vmatmul.mubr.bf16.gmra.mxu0 %v1403
      %v1493 = vpop.f32.mrf.mxu0
      %v1494 = vadd.f32 0.0, %v1493
      %v1495 = vpop.f32.mrf.mxu0
      %v1496 = vpop.f32.mrf.mxu0
      %v1497 = vadd.f32 0.0, %v1496
      %v1498 = vpop.f32.mrf.mxu0
      %1499 = vmatprep.mubr.bf16.mxu0 0
      %1500 = vmatmul.mubr.bf16.gmra.mxu0 %v1404
      %v1501 = vpop.f32.mrf.mxu0
      %v1502 = vadd.f32 0.0, %v1501
      %v1503 = vpop.f32.mrf.mxu0
      %v1504 = vpop.f32.mrf.mxu0
      %v1505 = vadd.f32 0.0, %v1504
      %v1506 = vpop.f32.mrf.mxu0
      %1507 = vmatprep.mubr.bf16.mxu0 0
      %1508 = vmatmul.mubr.bf16.gmra.mxu0 %v1405
      %v1509 = vpop.f32.mrf.mxu0
      %v1510 = vadd.f32 0.0, %v1509
      %v1511 = vpop.f32.mrf.mxu0
      %v1512 = vpop.f32.mrf.mxu0
      %v1513 = vadd.f32 0.0, %v1512
      %v1514 = vpop.f32.mrf.mxu0
      %1515 = vmatprep.mubr.bf16.mxu0 0
      %1516 = vmatmul.mubr.bf16.gmra.mxu0 %v1406
      %v1517 = vpop.f32.mrf.mxu0
      %v1518 = vadd.f32 0.0, %v1517
      %v1519 = vpop.f32.mrf.mxu0
      %v1520 = vpop.f32.mrf.mxu0
      %v1521 = vadd.f32 0.0, %v1520
      %v1522 = vpop.f32.mrf.mxu0
      %1523 = vdwg.mxu0
      %1524 = vst [vmem:[#allocation3] sm:$0xff] %v1494
      %1525 = vst [vmem:[#allocation3 + $0x8] sm:$0xff] %v1497
      %1526 = vst [vmem:[#allocation3 + $0x10] sm:$0xff] %v1502
      %1527 = vst [vmem:[#allocation3 + $0x18] sm:$0xff] %v1505
      %1528 = vst [vmem:[#allocation3 + $0x20] sm:$0xff] %v1510
      %1529 = vst [vmem:[#allocation3 + $0x28] sm:$0xff] %v1513
      %1530 = vst [vmem:[#allocation3 + $0x30] sm:$0xff] %v1518
      %1531 = vst [vmem:[#allocation3 + $0x38] sm:$0xff] %v1521
      %v1532 = vld [vmem:[#allocation2] sm:$0xf]
      %v1533 = vld [vmem:[#allocation2 + $0x4] sm:$0x1]
      %v1534 = vld [vmem:[#allocation2 + $0x8] sm:$0xf]
      %v1535 = vld [vmem:[#allocation2 + $0xc] sm:$0x1]
      %v1536 = vld [vmem:[#allocation2 + $0x10] sm:$0xf]
      %v1537 = vld [vmem:[#allocation2 + $0x14] sm:$0x1]
      %v1538 = vld [vmem:[#allocation2 + $0x18] sm:$0xf]
      %v1539 = vld [vmem:[#allocation2 + $0x1c] sm:$0x1]
      %v1540 = vld [vmem:[#allocation2 + $0x20] sm:$0xf]
      %v1541 = vld [vmem:[#allocation2 + $0x24] sm:$0x1]
      %v1542 = vld [vmem:[#allocation2 + $0x28] sm:$0xf]
      %v1543 = vld [vmem:[#allocation2 + $0x2c] sm:$0x1]
      %v1544 = vld [vmem:[#allocation2 + $0x30] sm:$0xf]
      %v1545 = vld [vmem:[#allocation2 + $0x34] sm:$0x1]
      %v1546 = vld [vmem:[#allocation2 + $0x38] sm:$0xf]
      %v1547 = vld [vmem:[#allocation2 + $0x3c] sm:$0x1]
      %v1549 = vshrl.u32 %v1532, 16
      %v1551 = vrot.slane %v1549, 4
      %v1552 = vshll.u32 %v1532, 16
      %v1554 = vrot.slane %v1552, 5
      %v1555 = vor.u32 %v1551, %v1554
      %v1556 = vrot.slane %v1555, 4
      %v1558 = vshll.u32 %v1533, 16
      %v1560 = vrot.slane %v1558, 5
      %v1561 = vsel %vm285, %v1556, %v1560
      %v1563 = vshrl.u32 %v1534, 16
      %v1565 = vrot.slane %v1563, 4
      %v1566 = vshll.u32 %v1534, 16
      %v1568 = vrot.slane %v1566, 5
      %v1569 = vor.u32 %v1565, %v1568
      %v1570 = vrot.slane %v1569, 4
      %v1572 = vshll.u32 %v1535, 16
      %v1574 = vrot.slane %v1572, 5
      %v1575 = vsel %vm285, %v1570, %v1574
      %v1577 = vshrl.u32 %v1536, 16
      %v1579 = vrot.slane %v1577, 4
      %v1580 = vshll.u32 %v1536, 16
      %v1582 = vrot.slane %v1580, 5
      %v1583 = vor.u32 %v1579, %v1582
      %v1584 = vrot.slane %v1583, 4
      %v1586 = vshll.u32 %v1537, 16
      %v1588 = vrot.slane %v1586, 5
      %v1589 = vsel %vm285, %v1584, %v1588
      %v1591 = vshrl.u32 %v1538, 16
      %v1593 = vrot.slane %v1591, 4
      %v1594 = vshll.u32 %v1538, 16
      %v1596 = vrot.slane %v1594, 5
      %v1597 = vor.u32 %v1593, %v1596
      %v1598 = vrot.slane %v1597, 4
      %v1600 = vshll.u32 %v1539, 16
      %v1602 = vrot.slane %v1600, 5
      %v1603 = vsel %vm285, %v1598, %v1602
      %v1605 = vshrl.u32 %v1540, 16
      %v1607 = vrot.slane %v1605, 4
      %v1608 = vshll.u32 %v1540, 16
      %v1610 = vrot.slane %v1608, 5
      %v1611 = vor.u32 %v1607, %v1610
      %v1612 = vrot.slane %v1611, 4
      %v1614 = vshll.u32 %v1541, 16
      %v1616 = vrot.slane %v1614, 5
      %v1617 = vsel %vm285, %v1612, %v1616
      %v1619 = vshrl.u32 %v1542, 16
      %v1621 = vrot.slane %v1619, 4
      %v1622 = vshll.u32 %v1542, 16
      %v1624 = vrot.slane %v1622, 5
      %v1625 = vor.u32 %v1621, %v1624
      %v1626 = vrot.slane %v1625, 4
      %v1628 = vshll.u32 %v1543, 16
      %v1630 = vrot.slane %v1628, 5
      %v1631 = vsel %vm285, %v1626, %v1630
      %v1633 = vshrl.u32 %v1544, 16
      %v1635 = vrot.slane %v1633, 4
      %v1636 = vshll.u32 %v1544, 16
      %v1638 = vrot.slane %v1636, 5
      %v1639 = vor.u32 %v1635, %v1638
      %v1640 = vrot.slane %v1639, 4
      %v1642 = vshll.u32 %v1545, 16
      %v1644 = vrot.slane %v1642, 5
      %v1645 = vsel %vm285, %v1640, %v1644
      %v1647 = vshrl.u32 %v1546, 16
      %v1649 = vrot.slane %v1647, 4
      %v1650 = vshll.u32 %v1546, 16
      %v1652 = vrot.slane %v1650, 5
      %v1653 = vor.u32 %v1649, %v1652
      %v1654 = vrot.slane %v1653, 4
      %v1656 = vshll.u32 %v1547, 16
      %v1658 = vrot.slane %v1656, 5
      %v1659 = vsel %vm285, %v1654, %v1658
      %s1660 = scalar_lea.vmem %s2, 64
      %v1661 = vld [vmem:[%s1660] sm:$0xf]
      %v1662 = vld [vmem:[%s1660 + $0x4] sm:$0xf]
      %v1663 = vld [vmem:[%s1660 + $0x8] sm:$0xf]
      %v1664 = vld [vmem:[%s1660 + $0xc] sm:$0xf]
      %v1665 = vld [vmem:[%s1660 + $0x10] sm:$0xf]
      %v1666 = vld [vmem:[%s1660 + $0x14] sm:$0xf]
      %v1667 = vld [vmem:[%s1660 + $0x18] sm:$0xf]
      %v1668 = vld [vmem:[%s1660 + $0x1c] sm:$0xf]
      %v1669 = vld [vmem:[%s1660 + $0x20] sm:$0xf]
      %v1670 = vld [vmem:[%s1660 + $0x24] sm:$0xf]
      %v1671 = vld [vmem:[%s1660 + $0x28] sm:$0xf]
      %v1672 = vld [vmem:[%s1660 + $0x2c] sm:$0xf]
      %v1673 = vld [vmem:[%s1660 + $0x30] sm:$0xf]
      %v1674 = vld [vmem:[%s1660 + $0x34] sm:$0xf]
      %v1675 = vld [vmem:[%s1660 + $0x38] sm:$0xf]
      %v1676 = vld [vmem:[%s1660 + $0x3c] sm:$0xf]
      %v1677 = vunpack.c.l.b16 %v1561
      %v1678 = vunpack.c.l.b16 %v1575
      %v1679 = vunpack.c.l.b16 %v1589
      %v1680 = vunpack.c.l.b16 %v1603
      %v1681 = vunpack.c.l.b16 %v1617
      %v1682 = vunpack.c.l.b16 %v1631
      %v1683 = vunpack.c.l.b16 %v1645
      %v1684 = vunpack.c.l.b16 %v1659
      %v1685 = vpack.c.b16 %v1678, %v1677
      %v1686 = vpack.c.b16 %v1680, %v1679
      %v1687 = vpack.c.b16 %v1682, %v1681
      %v1688 = vpack.c.b16 %v1684, %v1683
      %v1709 = vunpack.c.l.b16 %v1661
      %v1710 = vunpack.c.l.b16 %v1662
      %v1711 = vunpack.c.l.b16 %v1663
      %v1712 = vunpack.c.l.b16 %v1664
      %v1713 = vunpack.c.l.b16 %v1665
      %v1714 = vunpack.c.l.b16 %v1666
      %v1715 = vunpack.c.l.b16 %v1667
      %v1716 = vunpack.c.l.b16 %v1668
      %v1717 = vunpack.c.l.b16 %v1669
      %v1718 = vunpack.c.l.b16 %v1670
      %v1719 = vunpack.c.l.b16 %v1671
      %v1720 = vunpack.c.l.b16 %v1672
      %v1721 = vunpack.c.l.b16 %v1673
      %v1722 = vunpack.c.l.b16 %v1674
      %v1723 = vunpack.c.l.b16 %v1675
      %v1724 = vunpack.c.l.b16 %v1676
      %v1725 = vpack.c.b16 %v1710, %v1709
      %v1726 = vpack.c.b16 %v1712, %v1711
      %v1727 = vpack.c.b16 %v1714, %v1713
      %v1728 = vpack.c.b16 %v1716, %v1715
      %v1729 = vpack.c.b16 %v1718, %v1717
      %v1730 = vpack.c.b16 %v1720, %v1719
      %v1731 = vpack.c.b16 %v1722, %v1721
      %v1732 = vpack.c.b16 %v1724, %v1723
      %1741 = vmatprep.subr.bf16.mxu0 0
      %1742 = vmatpush1.bf16.msra.mxu0 %v1732
      %1743 = vmatprep.subr.bf16.mxu0 0
      %1744 = vmatpush1.bf16.msra.mxu0 %v1731
      %1745 = vmatprep.subr.bf16.mxu0 0
      %1746 = vmatpush1.bf16.msra.mxu0 %v1730
      %1747 = vmatprep.subr.bf16.mxu0 0
      %1748 = vmatpush1.bf16.msra.mxu0 %v1729
      %1749 = vmatprep.subr.bf16.mxu0 0
      %1750 = vmatpush1.bf16.msra.mxu0 %v1728
      %1751 = vmatprep.subr.bf16.mxu0 0
      %1752 = vmatpush1.bf16.msra.mxu0 %v1727
      %1753 = vmatprep.subr.bf16.mxu0 0
      %1754 = vmatpush1.bf16.msra.mxu0 %v1726
      %1755 = vmatprep.subr.bf16.mxu0 0
      %1756 = vmatpush1.bf16.msra.mxu0 %v1725
      %1757 = vmatprep.subr.bf16.mxu0 0
      %1758 = vmatpush2.bf16.msra.mxu0 0
      %1759 = vmatprep.subr.bf16.mxu0 0
      %1760 = vmatpush2.bf16.msra.mxu0 0
      %1761 = vmatprep.subr.bf16.mxu0 0
      %1762 = vmatpush2.bf16.msra.mxu0 0
      %1763 = vmatprep.subr.bf16.mxu0 0
      %1764 = vmatpush2.bf16.msra.mxu0 0
      %1765 = vmatprep.subr.bf16.mxu0 0
      %1766 = vmatpush2.bf16.msra.mxu0 0
      %1767 = vmatprep.subr.bf16.mxu0 0
      %1768 = vmatpush2.bf16.msra.mxu0 0
      %1769 = vmatprep.subr.bf16.mxu0 0
      %1770 = vmatpush2.bf16.msra.mxu0 0
      %1771 = vmatprep.subr.bf16.mxu0 0
      %1772 = vmatpush2.bf16.msra.mxu0 0
      %1773 = vmatprep.mubr.bf16.mxu0 0
      %1774 = vmatmul.mubr.bf16.gmra.mxu0 %v1685
      %v1775 = vpop.f32.mrf.mxu0
      %v1776 = vadd.f32 0.0, %v1775
      %v1777 = vpop.f32.mrf.mxu0
      %v1778 = vpop.f32.mrf.mxu0
      %v1779 = vadd.f32 0.0, %v1778
      %v1780 = vpop.f32.mrf.mxu0
      %1781 = vmatprep.mubr.bf16.mxu0 0
      %1782 = vmatmul.mubr.bf16.gmra.mxu0 %v1686
      %v1783 = vpop.f32.mrf.mxu0
      %v1784 = vadd.f32 0.0, %v1783
      %v1785 = vpop.f32.mrf.mxu0
      %v1786 = vpop.f32.mrf.mxu0
      %v1787 = vadd.f32 0.0, %v1786
      %v1788 = vpop.f32.mrf.mxu0
      %1789 = vmatprep.mubr.bf16.mxu0 0
      %1790 = vmatmul.mubr.bf16.gmra.mxu0 %v1687
      %v1791 = vpop.f32.mrf.mxu0
      %v1792 = vadd.f32 0.0, %v1791
      %v1793 = vpop.f32.mrf.mxu0
      %v1794 = vpop.f32.mrf.mxu0
      %v1795 = vadd.f32 0.0, %v1794
      %v1796 = vpop.f32.mrf.mxu0
      %1797 = vmatprep.mubr.bf16.mxu0 0
      %1798 = vmatmul.mubr.bf16.gmra.mxu0 %v1688
      %v1799 = vpop.f32.mrf.mxu0
      %v1800 = vadd.f32 0.0, %v1799
      %v1801 = vpop.f32.mrf.mxu0
      %v1802 = vpop.f32.mrf.mxu0
      %v1803 = vadd.f32 0.0, %v1802
      %v1804 = vpop.f32.mrf.mxu0
      %1805 = vdwg.mxu0
      %v1806 = vld [vmem:[#allocation3] sm:$0xff]
      %v1807 = vld [vmem:[#allocation3 + $0x8] sm:$0xff]
      %v1808 = vld [vmem:[#allocation3 + $0x10] sm:$0xff]
      %v1809 = vld [vmem:[#allocation3 + $0x18] sm:$0xff]
      %v1810 = vld [vmem:[#allocation3 + $0x20] sm:$0xff]
      %v1811 = vld [vmem:[#allocation3 + $0x28] sm:$0xff]
      %v1812 = vld [vmem:[#allocation3 + $0x30] sm:$0xff]
      %v1813 = vld [vmem:[#allocation3 + $0x38] sm:$0xff]
      %v1814 = vadd.f32 %v1806, %v1776
      %v1815 = vadd.f32 %v1807, %v1779
      %v1816 = vadd.f32 %v1808, %v1784
      %v1817 = vadd.f32 %v1809, %v1787
      %v1818 = vadd.f32 %v1810, %v1792
      %v1819 = vadd.f32 %v1811, %v1795
      %v1820 = vadd.f32 %v1812, %v1800
      %v1821 = vadd.f32 %v1813, %v1803
      %1822 = vst [vmem:[#allocation3] sm:$0xff] %v1814
      %1823 = vst [vmem:[#allocation3 + $0x8] sm:$0xff] %v1815
      %1824 = vst [vmem:[#allocation3 + $0x10] sm:$0xff] %v1816
      %1825 = vst [vmem:[#allocation3 + $0x18] sm:$0xff] %v1817
      %1826 = vst [vmem:[#allocation3 + $0x20] sm:$0xff] %v1818
      %1827 = vst [vmem:[#allocation3 + $0x28] sm:$0xff] %v1819
      %1828 = vst [vmem:[#allocation3 + $0x30] sm:$0xff] %v1820
      %1829 = vst [vmem:[#allocation3 + $0x38] sm:$0xff] %v1821
      %v1830 = vld [vmem:[#allocation2] sm:$0xe]
      %v1831 = vld [vmem:[#allocation2 + $0x4] sm:$0x1]
      %v1832 = vld [vmem:[#allocation2 + $0x8] sm:$0xe]
      %v1833 = vld [vmem:[#allocation2 + $0xc] sm:$0x1]
      %v1834 = vld [vmem:[#allocation2 + $0x10] sm:$0xe]
      %v1835 = vld [vmem:[#allocation2 + $0x14] sm:$0x1]
      %v1836 = vld [vmem:[#allocation2 + $0x18] sm:$0xe]
      %v1837 = vld [vmem:[#allocation2 + $0x1c] sm:$0x1]
      %v1838 = vld [vmem:[#allocation2 + $0x20] sm:$0xe]
      %v1839 = vld [vmem:[#allocation2 + $0x24] sm:$0x1]
      %v1840 = vld [vmem:[#allocation2 + $0x28] sm:$0xe]
      %v1841 = vld [vmem:[#allocation2 + $0x2c] sm:$0x1]
      %v1842 = vld [vmem:[#allocation2 + $0x30] sm:$0xe]
      %v1843 = vld [vmem:[#allocation2 + $0x34] sm:$0x1]
      %v1844 = vld [vmem:[#allocation2 + $0x38] sm:$0xe]
      %v1845 = vld [vmem:[#allocation2 + $0x3c] sm:$0x1]
      %vm1862 = vcmask 1042432
      %vm1863 = vcmask 1046532
      %vm1864 = vmor %vm1862, %vm1863
      %v1865 = vrot.slane %v1830, 5
      %v1866 = vrot.slane %v1865, 4
      %v1867 = vrot.slane %v1831, 5
      %v1868 = vsel %vm1864, %v1866, %v1867
      %v1869 = vrot.slane %v1832, 5
      %v1870 = vrot.slane %v1869, 4
      %v1871 = vrot.slane %v1833, 5
      %v1872 = vsel %vm1864, %v1870, %v1871
      %v1873 = vrot.slane %v1834, 5
      %v1874 = vrot.slane %v1873, 4
      %v1875 = vrot.slane %v1835, 5
      %v1876 = vsel %vm1864, %v1874, %v1875
      %v1877 = vrot.slane %v1836, 5
      %v1878 = vrot.slane %v1877, 4
      %v1879 = vrot.slane %v1837, 5
      %v1880 = vsel %vm1864, %v1878, %v1879
      %v1881 = vrot.slane %v1838, 5
      %v1882 = vrot.slane %v1881, 4
      %v1883 = vrot.slane %v1839, 5
      %v1884 = vsel %vm1864, %v1882, %v1883
      %v1885 = vrot.slane %v1840, 5
      %v1886 = vrot.slane %v1885, 4
      %v1887 = vrot.slane %v1841, 5
      %v1888 = vsel %vm1864, %v1886, %v1887
      %v1889 = vrot.slane %v1842, 5
      %v1890 = vrot.slane %v1889, 4
      %v1891 = vrot.slane %v1843, 5
      %v1892 = vsel %vm1864, %v1890, %v1891
      %v1893 = vrot.slane %v1844, 5
      %v1894 = vrot.slane %v1893, 4
      %v1895 = vrot.slane %v1845, 5
      %v1896 = vsel %vm1864, %v1894, %v1895
      %s1897 = scalar_lea.vmem %s2, 128
      %v1898 = vld [vmem:[%s1897] sm:$0xf]
      %v1899 = vld [vmem:[%s1897 + $0x4] sm:$0xf]
      %v1900 = vld [vmem:[%s1897 + $0x8] sm:$0xf]
      %v1901 = vld [vmem:[%s1897 + $0xc] sm:$0xf]
      %v1902 = vld [vmem:[%s1897 + $0x10] sm:$0xf]
      %v1903 = vld [vmem:[%s1897 + $0x14] sm:$0xf]
      %v1904 = vld [vmem:[%s1897 + $0x18] sm:$0xf]
      %v1905 = vld [vmem:[%s1897 + $0x1c] sm:$0xf]
      %v1906 = vld [vmem:[%s1897 + $0x20] sm:$0xf]
      %v1907 = vld [vmem:[%s1897 + $0x24] sm:$0xf]
      %v1908 = vld [vmem:[%s1897 + $0x28] sm:$0xf]
      %v1909 = vld [vmem:[%s1897 + $0x2c] sm:$0xf]
      %v1910 = vld [vmem:[%s1897 + $0x30] sm:$0xf]
      %v1911 = vld [vmem:[%s1897 + $0x34] sm:$0xf]
      %v1912 = vld [vmem:[%s1897 + $0x38] sm:$0xf]
      %v1913 = vld [vmem:[%s1897 + $0x3c] sm:$0xf]
      %v1914 = vunpack.c.l.b16 %v1868
      %v1915 = vunpack.c.l.b16 %v1872
      %v1916 = vunpack.c.l.b16 %v1876
      %v1917 = vunpack.c.l.b16 %v1880
      %v1918 = vunpack.c.l.b16 %v1884
      %v1919 = vunpack.c.l.b16 %v1888
      %v1920 = vunpack.c.l.b16 %v1892
      %v1921 = vunpack.c.l.b16 %v1896
      %v1922 = vpack.c.b16 %v1915, %v1914
      %v1923 = vpack.c.b16 %v1917, %v1916
      %v1924 = vpack.c.b16 %v1919, %v1918
      %v1925 = vpack.c.b16 %v1921, %v1920
      %v1946 = vunpack.c.l.b16 %v1898
      %v1947 = vunpack.c.l.b16 %v1899
      %v1948 = vunpack.c.l.b16 %v1900
      %v1949 = vunpack.c.l.b16 %v1901
      %v1950 = vunpack.c.l.b16 %v1902
      %v1951 = vunpack.c.l.b16 %v1903
      %v1952 = vunpack.c.l.b16 %v1904
      %v1953 = vunpack.c.l.b16 %v1905
      %v1954 = vunpack.c.l.b16 %v1906
      %v1955 = vunpack.c.l.b16 %v1907
      %v1956 = vunpack.c.l.b16 %v1908
      %v1957 = vunpack.c.l.b16 %v1909
      %v1958 = vunpack.c.l.b16 %v1910
      %v1959 = vunpack.c.l.b16 %v1911
      %v1960 = vunpack.c.l.b16 %v1912
      %v1961 = vunpack.c.l.b16 %v1913
      %v1962 = vpack.c.b16 %v1947, %v1946
      %v1963 = vpack.c.b16 %v1949, %v1948
      %v1964 = vpack.c.b16 %v1951, %v1950
      %v1965 = vpack.c.b16 %v1953, %v1952
      %v1966 = vpack.c.b16 %v1955, %v1954
      %v1967 = vpack.c.b16 %v1957, %v1956
      %v1968 = vpack.c.b16 %v1959, %v1958
      %v1969 = vpack.c.b16 %v1961, %v1960
      %1978 = vmatprep.subr.bf16.mxu0 0
      %1979 = vmatpush1.bf16.msra.mxu0 %v1969
      %1980 = vmatprep.subr.bf16.mxu0 0
      %1981 = vmatpush1.bf16.msra.mxu0 %v1968
      %1982 = vmatprep.subr.bf16.mxu0 0
      %1983 = vmatpush1.bf16.msra.mxu0 %v1967
      %1984 = vmatprep.subr.bf16.mxu0 0
      %1985 = vmatpush1.bf16.msra.mxu0 %v1966
      %1986 = vmatprep.subr.bf16.mxu0 0
      %1987 = vmatpush1.bf16.msra.mxu0 %v1965
      %1988 = vmatprep.subr.bf16.mxu0 0
      %1989 = vmatpush1.bf16.msra.mxu0 %v1964
      %1990 = vmatprep.subr.bf16.mxu0 0
      %1991 = vmatpush1.bf16.msra.mxu0 %v1963
      %1992 = vmatprep.subr.bf16.mxu0 0
      %1993 = vmatpush1.bf16.msra.mxu0 %v1962
      %1994 = vmatprep.subr.bf16.mxu0 0
      %1995 = vmatpush2.bf16.msra.mxu0 0
      %1996 = vmatprep.subr.bf16.mxu0 0
      %1997 = vmatpush2.bf16.msra.mxu0 0
      %1998 = vmatprep.subr.bf16.mxu0 0
      %1999 = vmatpush2.bf16.msra.mxu0 0
      %2000 = vmatprep.subr.bf16.mxu0 0
      %2001 = vmatpush2.bf16.msra.mxu0 0
      %2002 = vmatprep.subr.bf16.mxu0 0
      %2003 = vmatpush2.bf16.msra.mxu0 0
      %2004 = vmatprep.subr.bf16.mxu0 0
      %2005 = vmatpush2.bf16.msra.mxu0 0
      %2006 = vmatprep.subr.bf16.mxu0 0
      %2007 = vmatpush2.bf16.msra.mxu0 0
      %2008 = vmatprep.subr.bf16.mxu0 0
      %2009 = vmatpush2.bf16.msra.mxu0 0
      %2010 = vmatprep.mubr.bf16.mxu0 0
      %2011 = vmatmul.mubr.bf16.gmra.mxu0 %v1922
      %v2012 = vpop.f32.mrf.mxu0
      %v2013 = vadd.f32 0.0, %v2012
      %v2014 = vpop.f32.mrf.mxu0
      %v2015 = vpop.f32.mrf.mxu0
      %v2016 = vadd.f32 0.0, %v2015
      %v2017 = vpop.f32.mrf.mxu0
      %2018 = vmatprep.mubr.bf16.mxu0 0
      %2019 = vmatmul.mubr.bf16.gmra.mxu0 %v1923
      %v2020 = vpop.f32.mrf.mxu0
      %v2021 = vadd.f32 0.0, %v2020
      %v2022 = vpop.f32.mrf.mxu0
      %v2023 = vpop.f32.mrf.mxu0
      %v2024 = vadd.f32 0.0, %v2023
      %v2025 = vpop.f32.mrf.mxu0
      %2026 = vmatprep.mubr.bf16.mxu0 0
      %2027 = vmatmul.mubr.bf16.gmra.mxu0 %v1924
      %v2028 = vpop.f32.mrf.mxu0
      %v2029 = vadd.f32 0.0, %v2028
      %v2030 = vpop.f32.mrf.mxu0
      %v2031 = vpop.f32.mrf.mxu0
      %v2032 = vadd.f32 0.0, %v2031
      %v2033 = vpop.f32.mrf.mxu0
      %2034 = vmatprep.mubr.bf16.mxu0 0
      %2035 = vmatmul.mubr.bf16.gmra.mxu0 %v1925
      %v2036 = vpop.f32.mrf.mxu0
      %v2037 = vadd.f32 0.0, %v2036
      %v2038 = vpop.f32.mrf.mxu0
      %v2039 = vpop.f32.mrf.mxu0
      %v2040 = vadd.f32 0.0, %v2039
      %v2041 = vpop.f32.mrf.mxu0
      %2042 = vdwg.mxu0
      %v2043 = vld [vmem:[#allocation3] sm:$0xff]
      %v2044 = vld [vmem:[#allocation3 + $0x8] sm:$0xff]
      %v2045 = vld [vmem:[#allocation3 + $0x10] sm:$0xff]
      %v2046 = vld [vmem:[#allocation3 + $0x18] sm:$0xff]
      %v2047 = vld [vmem:[#allocation3 + $0x20] sm:$0xff]
      %v2048 = vld [vmem:[#allocation3 + $0x28] sm:$0xff]
      %v2049 = vld [vmem:[#allocation3 + $0x30] sm:$0xff]
      %v2050 = vld [vmem:[#allocation3 + $0x38] sm:$0xff]
      %v2051 = vadd.f32 %v2043, %v2013
      %v2052 = vadd.f32 %v2044, %v2016
      %v2053 = vadd.f32 %v2045, %v2021
      %v2054 = vadd.f32 %v2046, %v2024
      %v2055 = vadd.f32 %v2047, %v2029
      %v2056 = vadd.f32 %v2048, %v2032
      %v2057 = vadd.f32 %v2049, %v2037
      %v2058 = vadd.f32 %v2050, %v2040
      %2059 = vst [vmem:[#allocation3] sm:$0xff] %v2051
      %2060 = vst [vmem:[#allocation3 + $0x8] sm:$0xff] %v2052
      %2061 = vst [vmem:[#allocation3 + $0x10] sm:$0xff] %v2053
      %2062 = vst [vmem:[#allocation3 + $0x18] sm:$0xff] %v2054
      %2063 = vst [vmem:[#allocation3 + $0x20] sm:$0xff] %v2055
      %2064 = vst [vmem:[#allocation3 + $0x28] sm:$0xff] %v2056
      %2065 = vst [vmem:[#allocation3 + $0x30] sm:$0xff] %v2057
      %2066 = vst [vmem:[#allocation3 + $0x38] sm:$0xff] %v2058
      %s2067 = scalar_lea.vmem [#allocation2], 8
      %v2068 = vld [vmem:[%s2067] sm:$0xf]
      %v2069 = vld [vmem:[%s2067 + $0x8] sm:$0xf]
      %v2070 = vld [vmem:[%s2067 + $0x10] sm:$0xf]
      %v2071 = vld [vmem:[%s2067 + $0x18] sm:$0xf]
      %v2072 = vld [vmem:[%s2067 + $0x20] sm:$0xf]
      %v2073 = vld [vmem:[%s2067 + $0x28] sm:$0xf]
      %v2074 = vld [vmem:[%s2067 + $0x30] sm:$0xf]
      %v2075 = vld [vmem:[%s2067 + $0x38] sm:$0xf]
      %s2076 = scalar_lea.vmem %s2, 192
      %v2077 = vld [vmem:[%s2076] sm:$0xf]
      %v2078 = vld [vmem:[%s2076 + $0x4] sm:$0xf]
      %v2079 = vld [vmem:[%s2076 + $0x8] sm:$0xf]
      %v2080 = vld [vmem:[%s2076 + $0xc] sm:$0xf]
      %v2081 = vld [vmem:[%s2076 + $0x10] sm:$0xf]
      %v2082 = vld [vmem:[%s2076 + $0x14] sm:$0xf]
      %v2083 = vld [vmem:[%s2076 + $0x18] sm:$0xf]
      %v2084 = vld [vmem:[%s2076 + $0x1c] sm:$0xf]
      %v2085 = vld [vmem:[%s2076 + $0x20] sm:$0xf]
      %v2086 = vld [vmem:[%s2076 + $0x24] sm:$0xf]
      %v2087 = vld [vmem:[%s2076 + $0x28] sm:$0xf]
      %v2088 = vld [vmem:[%s2076 + $0x2c] sm:$0xf]
      %v2089 = vld [vmem:[%s2076 + $0x30] sm:$0xf]
      %v2090 = vld [vmem:[%s2076 + $0x34] sm:$0xf]
      %v2091 = vld [vmem:[%s2076 + $0x38] sm:$0xf]
      %v2092 = vld [vmem:[%s2076 + $0x3c] sm:$0xf]
      %v2101 = vunpack.c.l.b16 %v2068
      %v2102 = vunpack.c.l.b16 %v2069
      %v2103 = vunpack.c.l.b16 %v2070
      %v2104 = vunpack.c.l.b16 %v2071
      %v2105 = vunpack.c.l.b16 %v2072
      %v2106 = vunpack.c.l.b16 %v2073
      %v2107 = vunpack.c.l.b16 %v2074
      %v2108 = vunpack.c.l.b16 %v2075
      %v2109 = vpack.c.b16 %v2102, %v2101
      %v2110 = vpack.c.b16 %v2104, %v2103
      %v2111 = vpack.c.b16 %v2106, %v2105
      %v2112 = vpack.c.b16 %v2108, %v2107
      %v2133 = vunpack.c.l.b16 %v2077
      %v2134 = vunpack.c.l.b16 %v2078
      %v2135 = vunpack.c.l.b16 %v2079
      %v2136 = vunpack.c.l.b16 %v2080
      %v2137 = vunpack.c.l.b16 %v2081
      %v2138 = vunpack.c.l.b16 %v2082
      %v2139 = vunpack.c.l.b16 %v2083
      %v2140 = vunpack.c.l.b16 %v2084
      %v2141 = vunpack.c.l.b16 %v2085
      %v2142 = vunpack.c.l.b16 %v2086
      %v2143 = vunpack.c.l.b16 %v2087
      %v2144 = vunpack.c.l.b16 %v2088
      %v2145 = vunpack.c.l.b16 %v2089
      %v2146 = vunpack.c.l.b16 %v2090
      %v2147 = vunpack.c.l.b16 %v2091
      %v2148 = vunpack.c.l.b16 %v2092
      %v2149 = vpack.c.b16 %v2134, %v2133
      %v2150 = vpack.c.b16 %v2136, %v2135
      %v2151 = vpack.c.b16 %v2138, %v2137
      %v2152 = vpack.c.b16 %v2140, %v2139
      %v2153 = vpack.c.b16 %v2142, %v2141
      %v2154 = vpack.c.b16 %v2144, %v2143
      %v2155 = vpack.c.b16 %v2146, %v2145
      %v2156 = vpack.c.b16 %v2148, %v2147
      %2165 = vmatprep.subr.bf16.mxu0 0
      %2166 = vmatpush1.bf16.msra.mxu0 %v2156
      %2167 = vmatprep.subr.bf16.mxu0 0
      %2168 = vmatpush1.bf16.msra.mxu0 %v2155
      %2169 = vmatprep.subr.bf16.mxu0 0
      %2170 = vmatpush1.bf16.msra.mxu0 %v2154
      %2171 = vmatprep.subr.bf16.mxu0 0
      %2172 = vmatpush1.bf16.msra.mxu0 %v2153
      %2173 = vmatprep.subr.bf16.mxu0 0
      %2174 = vmatpush1.bf16.msra.mxu0 %v2152
      %2175 = vmatprep.subr.bf16.mxu0 0
      %2176 = vmatpush1.bf16.msra.mxu0 %v2151
      %2177 = vmatprep.subr.bf16.mxu0 0
      %2178 = vmatpush1.bf16.msra.mxu0 %v2150
      %2179 = vmatprep.subr.bf16.mxu0 0
      %2180 = vmatpush1.bf16.msra.mxu0 %v2149
      %2181 = vmatprep.subr.bf16.mxu0 0
      %2182 = vmatpush2.bf16.msra.mxu0 0
      %2183 = vmatprep.subr.bf16.mxu0 0
      %2184 = vmatpush2.bf16.msra.mxu0 0
      %2185 = vmatprep.subr.bf16.mxu0 0
      %2186 = vmatpush2.bf16.msra.mxu0 0
      %2187 = vmatprep.subr.bf16.mxu0 0
      %2188 = vmatpush2.bf16.msra.mxu0 0
      %2189 = vmatprep.subr.bf16.mxu0 0
      %2190 = vmatpush2.bf16.msra.mxu0 0
      %2191 = vmatprep.subr.bf16.mxu0 0
      %2192 = vmatpush2.bf16.msra.mxu0 0
      %2193 = vmatprep.subr.bf16.mxu0 0
      %2194 = vmatpush2.bf16.msra.mxu0 0
      %2195 = vmatprep.subr.bf16.mxu0 0
      %2196 = vmatpush2.bf16.msra.mxu0 0
      %2197 = vmatprep.mubr.bf16.mxu0 0
      %2198 = vmatmul.mubr.bf16.gmra.mxu0 %v2109
      %v2199 = vpop.f32.mrf.mxu0
      %v2200 = vadd.f32 0.0, %v2199
      %v2201 = vpop.f32.mrf.mxu0
      %v2202 = vpop.f32.mrf.mxu0
      %v2203 = vadd.f32 0.0, %v2202
      %v2204 = vpop.f32.mrf.mxu0
      %2205 = vmatprep.mubr.bf16.mxu0 0
      %2206 = vmatmul.mubr.bf16.gmra.mxu0 %v2110
      %v2207 = vpop.f32.mrf.mxu0
      %v2208 = vadd.f32 0.0, %v2207
      %v2209 = vpop.f32.mrf.mxu0
      %v2210 = vpop.f32.mrf.mxu0
      %v2211 = vadd.f32 0.0, %v2210
      %v2212 = vpop.f32.mrf.mxu0
      %2213 = vmatprep.mubr.bf16.mxu0 0
      %2214 = vmatmul.mubr.bf16.gmra.mxu0 %v2111
      %v2215 = vpop.f32.mrf.mxu0
      %v2216 = vadd.f32 0.0, %v2215
      %v2217 = vpop.f32.mrf.mxu0
      %v2218 = vpop.f32.mrf.mxu0
      %v2219 = vadd.f32 0.0, %v2218
      %v2220 = vpop.f32.mrf.mxu0
      %2221 = vmatprep.mubr.bf16.mxu0 0
      %2222 = vmatmul.mubr.bf16.gmra.mxu0 %v2112
      %v2223 = vpop.f32.mrf.mxu0
      %v2224 = vadd.f32 0.0, %v2223
      %v2225 = vpop.f32.mrf.mxu0
      %v2226 = vpop.f32.mrf.mxu0
      %v2227 = vadd.f32 0.0, %v2226
      %v2228 = vpop.f32.mrf.mxu0
      %2229 = vdwg.mxu0
      %v2230 = vld [vmem:[#allocation3] sm:$0xff]
      %v2231 = vld [vmem:[#allocation3 + $0x8] sm:$0xff]
      %v2232 = vld [vmem:[#allocation3 + $0x10] sm:$0xff]
      %v2233 = vld [vmem:[#allocation3 + $0x18] sm:$0xff]
      %v2234 = vld [vmem:[#allocation3 + $0x20] sm:$0xff]
      %v2235 = vld [vmem:[#allocation3 + $0x28] sm:$0xff]
      %v2236 = vld [vmem:[#allocation3 + $0x30] sm:$0xff]
      %v2237 = vld [vmem:[#allocation3 + $0x38] sm:$0xff]
      %v2238 = vadd.f32 %v2230, %v2200
      %v2239 = vadd.f32 %v2231, %v2203
      %v2240 = vadd.f32 %v2232, %v2208
      %v2241 = vadd.f32 %v2233, %v2211
      %v2242 = vadd.f32 %v2234, %v2216
      %v2243 = vadd.f32 %v2235, %v2219
      %v2244 = vadd.f32 %v2236, %v2224
      %v2245 = vadd.f32 %v2237, %v2227
      %2246 = vst [vmem:[#allocation3] sm:$0xff] %v2238
      %2247 = vst [vmem:[#allocation3 + $0x8] sm:$0xff] %v2239
      %2248 = vst [vmem:[#allocation3 + $0x10] sm:$0xff] %v2240
      %2249 = vst [vmem:[#allocation3 + $0x18] sm:$0xff] %v2241
      %2250 = vst [vmem:[#allocation3 + $0x20] sm:$0xff] %v2242
      %2251 = vst [vmem:[#allocation3 + $0x28] sm:$0xff] %v2243
      %2252 = vst [vmem:[#allocation3 + $0x30] sm:$0xff] %v2244
      %2253 = vst [vmem:[#allocation3 + $0x38] sm:$0xff] %v2245
      %v2254 = vld [vmem:[%s2067] sm:$0xf]
      %v2255 = vld [vmem:[%s2067 + $0x4] sm:$0x1]
      %v2256 = vld [vmem:[%s2067 + $0x8] sm:$0xf]
      %v2257 = vld [vmem:[%s2067 + $0xc] sm:$0x1]
      %v2258 = vld [vmem:[%s2067 + $0x10] sm:$0xf]
      %v2259 = vld [vmem:[%s2067 + $0x14] sm:$0x1]
      %v2260 = vld [vmem:[%s2067 + $0x18] sm:$0xf]
      %v2261 = vld [vmem:[%s2067 + $0x1c] sm:$0x1]
      %v2262 = vld [vmem:[%s2067 + $0x20] sm:$0xf]
      %v2263 = vld [vmem:[%s2067 + $0x24] sm:$0x1]
      %v2264 = vld [vmem:[%s2067 + $0x28] sm:$0xf]
      %v2265 = vld [vmem:[%s2067 + $0x2c] sm:$0x1]
      %v2266 = vld [vmem:[%s2067 + $0x30] sm:$0xf]
      %v2267 = vld [vmem:[%s2067 + $0x34] sm:$0x1]
      %v2268 = vld [vmem:[%s2067 + $0x38] sm:$0xf]
      %v2269 = vld [vmem:[%s2067 + $0x3c] sm:$0x1]
      %v2271 = vshrl.u32 %v2254, 16
      %v2273 = vrot.slane %v2271, 4
      %v2274 = vshll.u32 %v2254, 16
      %v2276 = vrot.slane %v2274, 5
      %v2277 = vor.u32 %v2273, %v2276
      %v2278 = vrot.slane %v2277, 4
      %v2280 = vshll.u32 %v2255, 16
      %v2282 = vrot.slane %v2280, 5
      %v2283 = vsel %vm285, %v2278, %v2282
      %v2285 = vshrl.u32 %v2256, 16
      %v2287 = vrot.slane %v2285, 4
      %v2288 = vshll.u32 %v2256, 16
      %v2290 = vrot.slane %v2288, 5
      %v2291 = vor.u32 %v2287, %v2290
      %v2292 = vrot.slane %v2291, 4
      %v2294 = vshll.u32 %v2257, 16
      %v2296 = vrot.slane %v2294, 5
      %v2297 = vsel %vm285, %v2292, %v2296
      %v2299 = vshrl.u32 %v2258, 16
      %v2301 = vrot.slane %v2299, 4
      %v2302 = vshll.u32 %v2258, 16
      %v2304 = vrot.slane %v2302, 5
      %v2305 = vor.u32 %v2301, %v2304
      %v2306 = vrot.slane %v2305, 4
      %v2308 = vshll.u32 %v2259, 16
      %v2310 = vrot.slane %v2308, 5
      %v2311 = vsel %vm285, %v2306, %v2310
      %v2313 = vshrl.u32 %v2260, 16
      %v2315 = vrot.slane %v2313, 4
      %v2316 = vshll.u32 %v2260, 16
      %v2318 = vrot.slane %v2316, 5
      %v2319 = vor.u32 %v2315, %v2318
      %v2320 = vrot.slane %v2319, 4
      %v2322 = vshll.u32 %v2261, 16
      %v2324 = vrot.slane %v2322, 5
      %v2325 = vsel %vm285, %v2320, %v2324
      %v2327 = vshrl.u32 %v2262, 16
      %v2329 = vrot.slane %v2327, 4
      %v2330 = vshll.u32 %v2262, 16
      %v2332 = vrot.slane %v2330, 5
      %v2333 = vor.u32 %v2329, %v2332
      %v2334 = vrot.slane %v2333, 4
      %v2336 = vshll.u32 %v2263, 16
      %v2338 = vrot.slane %v2336, 5
      %v2339 = vsel %vm285, %v2334, %v2338
      %v2341 = vshrl.u32 %v2264, 16
      %v2343 = vrot.slane %v2341, 4
      %v2344 = vshll.u32 %v2264, 16
      %v2346 = vrot.slane %v2344, 5
      %v2347 = vor.u32 %v2343, %v2346
      %v2348 = vrot.slane %v2347, 4
      %v2350 = vshll.u32 %v2265, 16
      %v2352 = vrot.slane %v2350, 5
      %v2353 = vsel %vm285, %v2348, %v2352
      %v2355 = vshrl.u32 %v2266, 16
      %v2357 = vrot.slane %v2355, 4
      %v2358 = vshll.u32 %v2266, 16
      %v2360 = vrot.slane %v2358, 5
      %v2361 = vor.u32 %v2357, %v2360
      %v2362 = vrot.slane %v2361, 4
      %v2364 = vshll.u32 %v2267, 16
      %v2366 = vrot.slane %v2364, 5
      %v2367 = vsel %vm285, %v2362, %v2366
      %v2369 = vshrl.u32 %v2268, 16
      %v2371 = vrot.slane %v2369, 4
      %v2372 = vshll.u32 %v2268, 16
      %v2374 = vrot.slane %v2372, 5
      %v2375 = vor.u32 %v2371, %v2374
      %v2376 = vrot.slane %v2375, 4
      %v2378 = vshll.u32 %v2269, 16
      %v2380 = vrot.slane %v2378, 5
      %v2381 = vsel %vm285, %v2376, %v2380
      %s2382 = scalar_lea.vmem %s2, 256
      %v2383 = vld [vmem:[%s2382] sm:$0xf]
      %v2384 = vld [vmem:[%s2382 + $0x4] sm:$0xf]
      %v2385 = vld [vmem:[%s2382 + $0x8] sm:$0xf]
      %v2386 = vld [vmem:[%s2382 + $0xc] sm:$0xf]
      %v2387 = vld [vmem:[%s2382 + $0x10] sm:$0xf]
      %v2388 = vld [vmem:[%s2382 + $0x14] sm:$0xf]
      %v2389 = vld [vmem:[%s2382 + $0x18] sm:$0xf]
      %v2390 = vld [vmem:[%s2382 + $0x1c] sm:$0xf]
      %v2391 = vld [vmem:[%s2382 + $0x20] sm:$0xf]
      %v2392 = vld [vmem:[%s2382 + $0x24] sm:$0xf]
      %v2393 = vld [vmem:[%s2382 + $0x28] sm:$0xf]
      %v2394 = vld [vmem:[%s2382 + $0x2c] sm:$0xf]
      %v2395 = vld [vmem:[%s2382 + $0x30] sm:$0xf]
      %v2396 = vld [vmem:[%s2382 + $0x34] sm:$0xf]
      %v2397 = vld [vmem:[%s2382 + $0x38] sm:$0xf]
      %v2398 = vld [vmem:[%s2382 + $0x3c] sm:$0xf]
      %v2399 = vunpack.c.l.b16 %v2283
      %v2400 = vunpack.c.l.b16 %v2297
      %v2401 = vunpack.c.l.b16 %v2311
      %v2402 = vunpack.c.l.b16 %v2325
      %v2403 = vunpack.c.l.b16 %v2339
      %v2404 = vunpack.c.l.b16 %v2353
      %v2405 = vunpack.c.l.b16 %v2367
      %v2406 = vunpack.c.l.b16 %v2381
      %v2407 = vpack.c.b16 %v2400, %v2399
      %v2408 = vpack.c.b16 %v2402, %v2401
      %v2409 = vpack.c.b16 %v2404, %v2403
      %v2410 = vpack.c.b16 %v2406, %v2405
      %v2431 = vunpack.c.l.b16 %v2383
      %v2432 = vunpack.c.l.b16 %v2384
      %v2433 = vunpack.c.l.b16 %v2385
      %v2434 = vunpack.c.l.b16 %v2386
      %v2435 = vunpack.c.l.b16 %v2387
      %v2436 = vunpack.c.l.b16 %v2388
      %v2437 = vunpack.c.l.b16 %v2389
      %v2438 = vunpack.c.l.b16 %v2390
      %v2439 = vunpack.c.l.b16 %v2391
      %v2440 = vunpack.c.l.b16 %v2392
      %v2441 = vunpack.c.l.b16 %v2393
      %v2442 = vunpack.c.l.b16 %v2394
      %v2443 = vunpack.c.l.b16 %v2395
      %v2444 = vunpack.c.l.b16 %v2396
      %v2445 = vunpack.c.l.b16 %v2397
      %v2446 = vunpack.c.l.b16 %v2398
      %v2447 = vpack.c.b16 %v2432, %v2431
      %v2448 = vpack.c.b16 %v2434, %v2433
      %v2449 = vpack.c.b16 %v2436, %v2435
      %v2450 = vpack.c.b16 %v2438, %v2437
      %v2451 = vpack.c.b16 %v2440, %v2439
      %v2452 = vpack.c.b16 %v2442, %v2441
      %v2453 = vpack.c.b16 %v2444, %v2443
      %v2454 = vpack.c.b16 %v2446, %v2445
      %2463 = vmatprep.subr.bf16.mxu0 0
      %2464 = vmatpush1.bf16.msra.mxu0 %v2454
      %2465 = vmatprep.subr.bf16.mxu0 0
      %2466 = vmatpush1.bf16.msra.mxu0 %v2453
      %2467 = vmatprep.subr.bf16.mxu0 0
      %2468 = vmatpush1.bf16.msra.mxu0 %v2452
      %2469 = vmatprep.subr.bf16.mxu0 0
      %2470 = vmatpush1.bf16.msra.mxu0 %v2451
      %2471 = vmatprep.subr.bf16.mxu0 0
      %2472 = vmatpush1.bf16.msra.mxu0 %v2450
      %2473 = vmatprep.subr.bf16.mxu0 0
      %2474 = vmatpush1.bf16.msra.mxu0 %v2449
      %2475 = vmatprep.subr.bf16.mxu0 0
      %2476 = vmatpush1.bf16.msra.mxu0 %v2448
      %2477 = vmatprep.subr.bf16.mxu0 0
      %2478 = vmatpush1.bf16.msra.mxu0 %v2447
      %2479 = vmatprep.subr.bf16.mxu0 0
      %2480 = vmatpush2.bf16.msra.mxu0 0
      %2481 = vmatprep.subr.bf16.mxu0 0
      %2482 = vmatpush2.bf16.msra.mxu0 0
      %2483 = vmatprep.subr.bf16.mxu0 0
      %2484 = vmatpush2.bf16.msra.mxu0 0
      %2485 = vmatprep.subr.bf16.mxu0 0
      %2486 = vmatpush2.bf16.msra.mxu0 0
      %2487 = vmatprep.subr.bf16.mxu0 0
      %2488 = vmatpush2.bf16.msra.mxu0 0
      %2489 = vmatprep.subr.bf16.mxu0 0
      %2490 = vmatpush2.bf16.msra.mxu0 0
      %2491 = vmatprep.subr.bf16.mxu0 0
      %2492 = vmatpush2.bf16.msra.mxu0 0
      %2493 = vmatprep.subr.bf16.mxu0 0
      %2494 = vmatpush2.bf16.msra.mxu0 0
      %2495 = vmatprep.mubr.bf16.mxu0 0
      %2496 = vmatmul.mubr.bf16.gmra.mxu0 %v2407
      %v2497 = vpop.f32.mrf.mxu0
      %v2498 = vadd.f32 0.0, %v2497
      %v2499 = vpop.f32.mrf.mxu0
      %v2500 = vpop.f32.mrf.mxu0
      %v2501 = vadd.f32 0.0, %v2500
      %v2502 = vpop.f32.mrf.mxu0
      %2503 = vmatprep.mubr.bf16.mxu0 0
      %2504 = vmatmul.mubr.bf16.gmra.mxu0 %v2408
      %v2505 = vpop.f32.mrf.mxu0
      %v2506 = vadd.f32 0.0, %v2505
      %v2507 = vpop.f32.mrf.mxu0
      %v2508 = vpop.f32.mrf.mxu0
      %v2509 = vadd.f32 0.0, %v2508
      %v2510 = vpop.f32.mrf.mxu0
      %2511 = vmatprep.mubr.bf16.mxu0 0
      %2512 = vmatmul.mubr.bf16.gmra.mxu0 %v2409
      %v2513 = vpop.f32.mrf.mxu0
      %v2514 = vadd.f32 0.0, %v2513
      %v2515 = vpop.f32.mrf.mxu0
      %v2516 = vpop.f32.mrf.mxu0
      %v2517 = vadd.f32 0.0, %v2516
      %v2518 = vpop.f32.mrf.mxu0
      %2519 = vmatprep.mubr.bf16.mxu0 0
      %2520 = vmatmul.mubr.bf16.gmra.mxu0 %v2410
      %v2521 = vpop.f32.mrf.mxu0
      %v2522 = vadd.f32 0.0, %v2521
      %v2523 = vpop.f32.mrf.mxu0
      %v2524 = vpop.f32.mrf.mxu0
      %v2525 = vadd.f32 0.0, %v2524
      %v2526 = vpop.f32.mrf.mxu0
      %2527 = vdwg.mxu0
      %v2528 = vld [vmem:[#allocation3] sm:$0xff]
      %v2529 = vld [vmem:[#allocation3 + $0x8] sm:$0xff]
      %v2530 = vld [vmem:[#allocation3 + $0x10] sm:$0xff]
      %v2531 = vld [vmem:[#allocation3 + $0x18] sm:$0xff]
      %v2532 = vld [vmem:[#allocation3 + $0x20] sm:$0xff]
      %v2533 = vld [vmem:[#allocation3 + $0x28] sm:$0xff]
      %v2534 = vld [vmem:[#allocation3 + $0x30] sm:$0xff]
      %v2535 = vld [vmem:[#allocation3 + $0x38] sm:$0xff]
      %v2536 = vadd.f32 %v2528, %v2498
      %v2537 = vadd.f32 %v2529, %v2501
      %v2538 = vadd.f32 %v2530, %v2506
      %v2539 = vadd.f32 %v2531, %v2509
      %v2540 = vadd.f32 %v2532, %v2514
      %v2541 = vadd.f32 %v2533, %v2517
      %v2542 = vadd.f32 %v2534, %v2522
      %v2543 = vadd.f32 %v2535, %v2525
      %2544 = vst [vmem:[#allocation3] sm:$0xff] %v2536
      %2545 = vst [vmem:[#allocation3 + $0x8] sm:$0xff] %v2537
      %2546 = vst [vmem:[#allocation3 + $0x10] sm:$0xff] %v2538
      %2547 = vst [vmem:[#allocation3 + $0x18] sm:$0xff] %v2539
      %2548 = vst [vmem:[#allocation3 + $0x20] sm:$0xff] %v2540
      %2549 = vst [vmem:[#allocation3 + $0x28] sm:$0xff] %v2541
      %2550 = vst [vmem:[#allocation3 + $0x30] sm:$0xff] %v2542
      %2551 = vst [vmem:[#allocation3 + $0x38] sm:$0xff] %v2543
      %v2552 = vld [vmem:[%s2067] sm:$0xe]
      %v2553 = vld [vmem:[%s2067 + $0x4] sm:$0x1]
      %v2554 = vld [vmem:[%s2067 + $0x8] sm:$0xe]
      %v2555 = vld [vmem:[%s2067 + $0xc] sm:$0x1]
      %v2556 = vld [vmem:[%s2067 + $0x10] sm:$0xe]
      %v2557 = vld [vmem:[%s2067 + $0x14] sm:$0x1]
      %v2558 = vld [vmem:[%s2067 + $0x18] sm:$0xe]
      %v2559 = vld [vmem:[%s2067 + $0x1c] sm:$0x1]
      %v2560 = vld [vmem:[%s2067 + $0x20] sm:$0xe]
      %v2561 = vld [vmem:[%s2067 + $0x24] sm:$0x1]
      %v2562 = vld [vmem:[%s2067 + $0x28] sm:$0xe]
      %v2563 = vld [vmem:[%s2067 + $0x2c] sm:$0x1]
      %v2564 = vld [vmem:[%s2067 + $0x30] sm:$0xe]
      %v2565 = vld [vmem:[%s2067 + $0x34] sm:$0x1]
      %v2566 = vld [vmem:[%s2067 + $0x38] sm:$0xe]
      %v2567 = vld [vmem:[%s2067 + $0x3c] sm:$0x1]
      %v2584 = vrot.slane %v2552, 5
      %v2585 = vrot.slane %v2584, 4
      %v2586 = vrot.slane %v2553, 5
      %v2587 = vsel %vm1864, %v2585, %v2586
      %v2588 = vrot.slane %v2554, 5
      %v2589 = vrot.slane %v2588, 4
      %v2590 = vrot.slane %v2555, 5
      %v2591 = vsel %vm1864, %v2589, %v2590
      %v2592 = vrot.slane %v2556, 5
      %v2593 = vrot.slane %v2592, 4
      %v2594 = vrot.slane %v2557, 5
      %v2595 = vsel %vm1864, %v2593, %v2594
      %v2596 = vrot.slane %v2558, 5
      %v2597 = vrot.slane %v2596, 4
      %v2598 = vrot.slane %v2559, 5
      %v2599 = vsel %vm1864, %v2597, %v2598
      %v2600 = vrot.slane %v2560, 5
      %v2601 = vrot.slane %v2600, 4
      %v2602 = vrot.slane %v2561, 5
      %v2603 = vsel %vm1864, %v2601, %v2602
      %v2604 = vrot.slane %v2562, 5
      %v2605 = vrot.slane %v2604, 4
      %v2606 = vrot.slane %v2563, 5
      %v2607 = vsel %vm1864, %v2605, %v2606
      %v2608 = vrot.slane %v2564, 5
      %v2609 = vrot.slane %v2608, 4
      %v2610 = vrot.slane %v2565, 5
      %v2611 = vsel %vm1864, %v2609, %v2610
      %v2612 = vrot.slane %v2566, 5
      %v2613 = vrot.slane %v2612, 4
      %v2614 = vrot.slane %v2567, 5
      %v2615 = vsel %vm1864, %v2613, %v2614
      %s2616 = scalar_lea.vmem %s2, 320
      %v2617 = vld [vmem:[%s2616] sm:$0xf]
      %v2618 = vld [vmem:[%s2616 + $0x4] sm:$0xf]
      %v2619 = vld [vmem:[%s2616 + $0x8] sm:$0xf]
      %v2620 = vld [vmem:[%s2616 + $0xc] sm:$0xf]
      %v2621 = vld [vmem:[%s2616 + $0x10] sm:$0xf]
      %v2622 = vld [vmem:[%s2616 + $0x14] sm:$0xf]
      %v2623 = vld [vmem:[%s2616 + $0x18] sm:$0xf]
      %v2624 = vld [vmem:[%s2616 + $0x1c] sm:$0xf]
      %v2625 = vld [vmem:[%s2616 + $0x20] sm:$0xf]
      %v2626 = vld [vmem:[%s2616 + $0x24] sm:$0xf]
      %v2627 = vld [vmem:[%s2616 + $0x28] sm:$0xf]
      %v2628 = vld [vmem:[%s2616 + $0x2c] sm:$0xf]
      %v2629 = vld [vmem:[%s2616 + $0x30] sm:$0xf]
      %v2630 = vld [vmem:[%s2616 + $0x34] sm:$0xf]
      %v2631 = vld [vmem:[%s2616 + $0x38] sm:$0xf]
      %v2632 = vld [vmem:[%s2616 + $0x3c] sm:$0xf]
      %v2633 = vunpack.c.l.b16 %v2587
      %v2634 = vunpack.c.l.b16 %v2591
      %v2635 = vunpack.c.l.b16 %v2595
      %v2636 = vunpack.c.l.b16 %v2599
      %v2637 = vunpack.c.l.b16 %v2603
      %v2638 = vunpack.c.l.b16 %v2607
      %v2639 = vunpack.c.l.b16 %v2611
      %v2640 = vunpack.c.l.b16 %v2615
      %v2641 = vpack.c.b16 %v2634, %v2633
      %v2642 = vpack.c.b16 %v2636, %v2635
      %v2643 = vpack.c.b16 %v2638, %v2637
      %v2644 = vpack.c.b16 %v2640, %v2639
      %v2665 = vunpack.c.l.b16 %v2617
      %v2666 = vunpack.c.l.b16 %v2618
      %v2667 = vunpack.c.l.b16 %v2619
      %v2668 = vunpack.c.l.b16 %v2620
      %v2669 = vunpack.c.l.b16 %v2621
      %v2670 = vunpack.c.l.b16 %v2622
      %v2671 = vunpack.c.l.b16 %v2623
      %v2672 = vunpack.c.l.b16 %v2624
      %v2673 = vunpack.c.l.b16 %v2625
      %v2674 = vunpack.c.l.b16 %v2626
      %v2675 = vunpack.c.l.b16 %v2627
      %v2676 = vunpack.c.l.b16 %v2628
      %v2677 = vunpack.c.l.b16 %v2629
      %v2678 = vunpack.c.l.b16 %v2630
      %v2679 = vunpack.c.l.b16 %v2631
      %v2680 = vunpack.c.l.b16 %v2632
      %v2681 = vpack.c.b16 %v2666, %v2665
      %v2682 = vpack.c.b16 %v2668, %v2667
      %v2683 = vpack.c.b16 %v2670, %v2669
      %v2684 = vpack.c.b16 %v2672, %v2671
      %v2685 = vpack.c.b16 %v2674, %v2673
      %v2686 = vpack.c.b16 %v2676, %v2675
      %v2687 = vpack.c.b16 %v2678, %v2677
      %v2688 = vpack.c.b16 %v2680, %v2679
      %2697 = vmatprep.subr.bf16.mxu0 0
      %2698 = vmatpush1.bf16.msra.mxu0 %v2688
      %2699 = vmatprep.subr.bf16.mxu0 0
      %2700 = vmatpush1.bf16.msra.mxu0 %v2687
      %2701 = vmatprep.subr.bf16.mxu0 0
      %2702 = vmatpush1.bf16.msra.mxu0 %v2686
      %2703 = vmatprep.subr.bf16.mxu0 0
      %2704 = vmatpush1.bf16.msra.mxu0 %v2685
      %2705 = vmatprep.subr.bf16.mxu0 0
      %2706 = vmatpush1.bf16.msra.mxu0 %v2684
      %2707 = vmatprep.subr.bf16.mxu0 0
      %2708 = vmatpush1.bf16.msra.mxu0 %v2683
      %2709 = vmatprep.subr.bf16.mxu0 0
      %2710 = vmatpush1.bf16.msra.mxu0 %v2682
      %2711 = vmatprep.subr.bf16.mxu0 0
      %2712 = vmatpush1.bf16.msra.mxu0 %v2681
      %2713 = vmatprep.subr.bf16.mxu0 0
      %2714 = vmatpush2.bf16.msra.mxu0 0
      %2715 = vmatprep.subr.bf16.mxu0 0
      %2716 = vmatpush2.bf16.msra.mxu0 0
      %2717 = vmatprep.subr.bf16.mxu0 0
      %2718 = vmatpush2.bf16.msra.mxu0 0
      %2719 = vmatprep.subr.bf16.mxu0 0
      %2720 = vmatpush2.bf16.msra.mxu0 0
      %2721 = vmatprep.subr.bf16.mxu0 0
      %2722 = vmatpush2.bf16.msra.mxu0 0
      %2723 = vmatprep.subr.bf16.mxu0 0
      %2724 = vmatpush2.bf16.msra.mxu0 0
      %2725 = vmatprep.subr.bf16.mxu0 0
      %2726 = vmatpush2.bf16.msra.mxu0 0
      %2727 = vmatprep.subr.bf16.mxu0 0
      %2728 = vmatpush2.bf16.msra.mxu0 0
      %2729 = vmatprep.mubr.bf16.mxu0 0
      %2730 = vmatmul.mubr.bf16.gmra.mxu0 %v2641
      %v2731 = vpop.f32.mrf.mxu0
      %v2732 = vadd.f32 0.0, %v2731
      %v2733 = vpop.f32.mrf.mxu0
      %v2734 = vpop.f32.mrf.mxu0
      %v2735 = vadd.f32 0.0, %v2734
      %v2736 = vpop.f32.mrf.mxu0
      %2737 = vmatprep.mubr.bf16.mxu0 0
      %2738 = vmatmul.mubr.bf16.gmra.mxu0 %v2642
      %v2739 = vpop.f32.mrf.mxu0
      %v2740 = vadd.f32 0.0, %v2739
      %v2741 = vpop.f32.mrf.mxu0
      %v2742 = vpop.f32.mrf.mxu0
      %v2743 = vadd.f32 0.0, %v2742
      %v2744 = vpop.f32.mrf.mxu0
      %2745 = vmatprep.mubr.bf16.mxu0 0
      %2746 = vmatmul.mubr.bf16.gmra.mxu0 %v2643
      %v2747 = vpop.f32.mrf.mxu0
      %v2748 = vadd.f32 0.0, %v2747
      %v2749 = vpop.f32.mrf.mxu0
      %v2750 = vpop.f32.mrf.mxu0
      %v2751 = vadd.f32 0.0, %v2750
      %v2752 = vpop.f32.mrf.mxu0
      %2753 = vmatprep.mubr.bf16.mxu0 0
      %2754 = vmatmul.mubr.bf16.gmra.mxu0 %v2644
      %v2755 = vpop.f32.mrf.mxu0
      %v2756 = vadd.f32 0.0, %v2755
      %v2757 = vpop.f32.mrf.mxu0
      %v2758 = vpop.f32.mrf.mxu0
      %v2759 = vadd.f32 0.0, %v2758
      %v2760 = vpop.f32.mrf.mxu0
      %2761 = vdwg.mxu0
      %v2762 = vld [vmem:[#allocation3] sm:$0xff]
      %v2763 = vld [vmem:[#allocation3 + $0x8] sm:$0xff]
      %v2764 = vld [vmem:[#allocation3 + $0x10] sm:$0xff]
      %v2765 = vld [vmem:[#allocation3 + $0x18] sm:$0xff]
      %v2766 = vld [vmem:[#allocation3 + $0x20] sm:$0xff]
      %v2767 = vld [vmem:[#allocation3 + $0x28] sm:$0xff]
      %v2768 = vld [vmem:[#allocation3 + $0x30] sm:$0xff]
      %v2769 = vld [vmem:[#allocation3 + $0x38] sm:$0xff]
      %v2770 = vadd.f32 %v2762, %v2732
      %v2771 = vadd.f32 %v2763, %v2735
      %v2772 = vadd.f32 %v2764, %v2740
      %v2773 = vadd.f32 %v2765, %v2743
      %v2774 = vadd.f32 %v2766, %v2748
      %v2775 = vadd.f32 %v2767, %v2751
      %v2776 = vadd.f32 %v2768, %v2756
      %v2777 = vadd.f32 %v2769, %v2759
      %2778 = vst [vmem:[#allocation3] sm:$0xff] %v2770
      %2779 = vst [vmem:[#allocation3 + $0x8] sm:$0xff] %v2771
      %2780 = vst [vmem:[#allocation3 + $0x10] sm:$0xff] %v2772
      %2781 = vst [vmem:[#allocation3 + $0x18] sm:$0xff] %v2773
      %2782 = vst [vmem:[#allocation3 + $0x20] sm:$0xff] %v2774
      %2783 = vst [vmem:[#allocation3 + $0x28] sm:$0xff] %v2775
      %2784 = vst [vmem:[#allocation3 + $0x30] sm:$0xff] %v2776
      %2785 = vst [vmem:[#allocation3 + $0x38] sm:$0xff] %v2777
      %s2786 = scalar_lea.vmem [#allocation2], 16
      %v2787 = vld [vmem:[%s2786] sm:$0xf]
      %v2788 = vld [vmem:[%s2786 + $0x8] sm:$0xf]
      %v2789 = vld [vmem:[%s2786 + $0x10] sm:$0xf]
      %v2790 = vld [vmem:[%s2786 + $0x18] sm:$0xf]
      %v2791 = vld [vmem:[%s2786 + $0x20] sm:$0xf]
      %v2792 = vld [vmem:[%s2786 + $0x28] sm:$0xf]
      %v2793 = vld [vmem:[%s2786 + $0x30] sm:$0xf]
      %v2794 = vld [vmem:[%s2786 + $0x38] sm:$0xf]
      %s2795 = scalar_lea.vmem %s2, 384
      %v2796 = vld [vmem:[%s2795] sm:$0xf]
      %v2797 = vld [vmem:[%s2795 + $0x4] sm:$0xf]
      %v2798 = vld [vmem:[%s2795 + $0x8] sm:$0xf]
      %v2799 = vld [vmem:[%s2795 + $0xc] sm:$0xf]
      %v2800 = vld [vmem:[%s2795 + $0x10] sm:$0xf]
      %v2801 = vld [vmem:[%s2795 + $0x14] sm:$0xf]
      %v2802 = vld [vmem:[%s2795 + $0x18] sm:$0xf]
      %v2803 = vld [vmem:[%s2795 + $0x1c] sm:$0xf]
      %v2804 = vld [vmem:[%s2795 + $0x20] sm:$0xf]
      %v2805 = vld [vmem:[%s2795 + $0x24] sm:$0xf]
      %v2806 = vld [vmem:[%s2795 + $0x28] sm:$0xf]
      %v2807 = vld [vmem:[%s2795 + $0x2c] sm:$0xf]
      %v2808 = vld [vmem:[%s2795 + $0x30] sm:$0xf]
      %v2809 = vld [vmem:[%s2795 + $0x34] sm:$0xf]
      %v2810 = vld [vmem:[%s2795 + $0x38] sm:$0xf]
      %v2811 = vld [vmem:[%s2795 + $0x3c] sm:$0xf]
      %v2820 = vunpack.c.l.b16 %v2787
      %v2821 = vunpack.c.l.b16 %v2788
      %v2822 = vunpack.c.l.b16 %v2789
      %v2823 = vunpack.c.l.b16 %v2790
      %v2824 = vunpack.c.l.b16 %v2791
      %v2825 = vunpack.c.l.b16 %v2792
      %v2826 = vunpack.c.l.b16 %v2793
      %v2827 = vunpack.c.l.b16 %v2794
      %v2828 = vpack.c.b16 %v2821, %v2820
      %v2829 = vpack.c.b16 %v2823, %v2822
      %v2830 = vpack.c.b16 %v2825, %v2824
      %v2831 = vpack.c.b16 %v2827, %v2826
      %v2852 = vunpack.c.l.b16 %v2796
      %v2853 = vunpack.c.l.b16 %v2797
      %v2854 = vunpack.c.l.b16 %v2798
      %v2855 = vunpack.c.l.b16 %v2799
      %v2856 = vunpack.c.l.b16 %v2800
      %v2857 = vunpack.c.l.b16 %v2801
      %v2858 = vunpack.c.l.b16 %v2802
      %v2859 = vunpack.c.l.b16 %v2803
      %v2860 = vunpack.c.l.b16 %v2804
      %v2861 = vunpack.c.l.b16 %v2805
      %v2862 = vunpack.c.l.b16 %v2806
      %v2863 = vunpack.c.l.b16 %v2807
      %v2864 = vunpack.c.l.b16 %v2808
      %v2865 = vunpack.c.l.b16 %v2809
      %v2866 = vunpack.c.l.b16 %v2810
      %v2867 = vunpack.c.l.b16 %v2811
      %v2868 = vpack.c.b16 %v2853, %v2852
      %v2869 = vpack.c.b16 %v2855, %v2854
      %v2870 = vpack.c.b16 %v2857, %v2856
      %v2871 = vpack.c.b16 %v2859, %v2858
      %v2872 = vpack.c.b16 %v2861, %v2860
      %v2873 = vpack.c.b16 %v2863, %v2862
      %v2874 = vpack.c.b16 %v2865, %v2864
      %v2875 = vpack.c.b16 %v2867, %v2866
      %2884 = vmatprep.subr.bf16.mxu0 0
      %2885 = vmatpush1.bf16.msra.mxu0 %v2875
      %2886 = vmatprep.subr.bf16.mxu0 0
      %2887 = vmatpush1.bf16.msra.mxu0 %v2874
      %2888 = vmatprep.subr.bf16.mxu0 0
      %2889 = vmatpush1.bf16.msra.mxu0 %v2873
      %2890 = vmatprep.subr.bf16.mxu0 0
      %2891 = vmatpush1.bf16.msra.mxu0 %v2872
      %2892 = vmatprep.subr.bf16.mxu0 0
      %2893 = vmatpush1.bf16.msra.mxu0 %v2871
      %2894 = vmatprep.subr.bf16.mxu0 0
      %2895 = vmatpush1.bf16.msra.mxu0 %v2870
      %2896 = vmatprep.subr.bf16.mxu0 0
      %2897 = vmatpush1.bf16.msra.mxu0 %v2869
      %2898 = vmatprep.subr.bf16.mxu0 0
      %2899 = vmatpush1.bf16.msra.mxu0 %v2868
      %2900 = vmatprep.subr.bf16.mxu0 0
      %2901 = vmatpush2.bf16.msra.mxu0 0
      %2902 = vmatprep.subr.bf16.mxu0 0
      %2903 = vmatpush2.bf16.msra.mxu0 0
      %2904 = vmatprep.subr.bf16.mxu0 0
      %2905 = vmatpush2.bf16.msra.mxu0 0
      %2906 = vmatprep.subr.bf16.mxu0 0
      %2907 = vmatpush2.bf16.msra.mxu0 0
      %2908 = vmatprep.subr.bf16.mxu0 0
      %2909 = vmatpush2.bf16.msra.mxu0 0
      %2910 = vmatprep.subr.bf16.mxu0 0
      %2911 = vmatpush2.bf16.msra.mxu0 0
      %2912 = vmatprep.subr.bf16.mxu0 0
      %2913 = vmatpush2.bf16.msra.mxu0 0
      %2914 = vmatprep.subr.bf16.mxu0 0
      %2915 = vmatpush2.bf16.msra.mxu0 0
      %2916 = vmatprep.mubr.bf16.mxu0 0
      %2917 = vmatmul.mubr.bf16.gmra.mxu0 %v2828
      %v2918 = vpop.f32.mrf.mxu0
      %v2919 = vadd.f32 0.0, %v2918
      %v2920 = vpop.f32.mrf.mxu0
      %v2921 = vpop.f32.mrf.mxu0
      %v2922 = vadd.f32 0.0, %v2921
      %v2923 = vpop.f32.mrf.mxu0
      %2924 = vmatprep.mubr.bf16.mxu0 0
      %2925 = vmatmul.mubr.bf16.gmra.mxu0 %v2829
      %v2926 = vpop.f32.mrf.mxu0
      %v2927 = vadd.f32 0.0, %v2926
      %v2928 = vpop.f32.mrf.mxu0
      %v2929 = vpop.f32.mrf.mxu0
      %v2930 = vadd.f32 0.0, %v2929
      %v2931 = vpop.f32.mrf.mxu0
      %2932 = vmatprep.mubr.bf16.mxu0 0
      %2933 = vmatmul.mubr.bf16.gmra.mxu0 %v2830
      %v2934 = vpop.f32.mrf.mxu0
      %v2935 = vadd.f32 0.0, %v2934
      %v2936 = vpop.f32.mrf.mxu0
      %v2937 = vpop.f32.mrf.mxu0
      %v2938 = vadd.f32 0.0, %v2937
      %v2939 = vpop.f32.mrf.mxu0
      %2940 = vmatprep.mubr.bf16.mxu0 0
      %2941 = vmatmul.mubr.bf16.gmra.mxu0 %v2831
      %v2942 = vpop.f32.mrf.mxu0
      %v2943 = vadd.f32 0.0, %v2942
      %v2944 = vpop.f32.mrf.mxu0
      %v2945 = vpop.f32.mrf.mxu0
      %v2946 = vadd.f32 0.0, %v2945
      %v2947 = vpop.f32.mrf.mxu0
      %2948 = vdwg.mxu0
      %v2949 = vld [vmem:[#allocation3] sm:$0xff]
      %v2950 = vld [vmem:[#allocation3 + $0x8] sm:$0xff]
      %v2951 = vld [vmem:[#allocation3 + $0x10] sm:$0xff]
      %v2952 = vld [vmem:[#allocation3 + $0x18] sm:$0xff]
      %v2953 = vld [vmem:[#allocation3 + $0x20] sm:$0xff]
      %v2954 = vld [vmem:[#allocation3 + $0x28] sm:$0xff]
      %v2955 = vld [vmem:[#allocation3 + $0x30] sm:$0xff]
      %v2956 = vld [vmem:[#allocation3 + $0x38] sm:$0xff]
      %v2957 = vadd.f32 %v2949, %v2919
      %v2958 = vadd.f32 %v2950, %v2922
      %v2959 = vadd.f32 %v2951, %v2927
      %v2960 = vadd.f32 %v2952, %v2930
      %v2961 = vadd.f32 %v2953, %v2935
      %v2962 = vadd.f32 %v2954, %v2938
      %v2963 = vadd.f32 %v2955, %v2943
      %v2964 = vadd.f32 %v2956, %v2946
      %2965 = vst [vmem:[#allocation3] sm:$0xff] %v2957
      %2966 = vst [vmem:[#allocation3 + $0x8] sm:$0xff] %v2958
      %2967 = vst [vmem:[#allocation3 + $0x10] sm:$0xff] %v2959
      %2968 = vst [vmem:[#allocation3 + $0x18] sm:$0xff] %v2960
      %2969 = vst [vmem:[#allocation3 + $0x20] sm:$0xff] %v2961
      %2970 = vst [vmem:[#allocation3 + $0x28] sm:$0xff] %v2962
      %2971 = vst [vmem:[#allocation3 + $0x30] sm:$0xff] %v2963
      %2972 = vst [vmem:[#allocation3 + $0x38] sm:$0xff] %v2964
      %v2973 = vld [vmem:[%s2786] sm:$0xf]
      %v2974 = vld [vmem:[%s2786 + $0x4] sm:$0x1]
      %v2975 = vld [vmem:[%s2786 + $0x8] sm:$0xf]
      %v2976 = vld [vmem:[%s2786 + $0xc] sm:$0x1]
      %v2977 = vld [vmem:[%s2786 + $0x10] sm:$0xf]
      %v2978 = vld [vmem:[%s2786 + $0x14] sm:$0x1]
      %v2979 = vld [vmem:[%s2786 + $0x18] sm:$0xf]
      %v2980 = vld [vmem:[%s2786 + $0x1c] sm:$0x1]
      %v2981 = vld [vmem:[%s2786 + $0x20] sm:$0xf]
      %v2982 = vld [vmem:[%s2786 + $0x24] sm:$0x1]
      %v2983 = vld [vmem:[%s2786 + $0x28] sm:$0xf]
      %v2984 = vld [vmem:[%s2786 + $0x2c] sm:$0x1]
      %v2985 = vld [vmem:[%s2786 + $0x30] sm:$0xf]
      %v2986 = vld [vmem:[%s2786 + $0x34] sm:$0x1]
      %v2987 = vld [vmem:[%s2786 + $0x38] sm:$0xf]
      %v2988 = vld [vmem:[%s2786 + $0x3c] sm:$0x1]
      %v2990 = vshrl.u32 %v2973, 16
      %v2992 = vrot.slane %v2990, 4
      %v2993 = vshll.u32 %v2973, 16
      %v2995 = vrot.slane %v2993, 5
      %v2996 = vor.u32 %v2992, %v2995
      %v2997 = vrot.slane %v2996, 4
      %v2999 = vshll.u32 %v2974, 16
      %v3001 = vrot.slane %v2999, 5
      %v3002 = vsel %vm285, %v2997, %v3001
      %v3004 = vshrl.u32 %v2975, 16
      %v3006 = vrot.slane %v3004, 4
      %v3007 = vshll.u32 %v2975, 16
      %v3009 = vrot.slane %v3007, 5
      %v3010 = vor.u32 %v3006, %v3009
      %v3011 = vrot.slane %v3010, 4
      %v3013 = vshll.u32 %v2976, 16
      %v3015 = vrot.slane %v3013, 5
      %v3016 = vsel %vm285, %v3011, %v3015
      %v3018 = vshrl.u32 %v2977, 16
      %v3020 = vrot.slane %v3018, 4
      %v3021 = vshll.u32 %v2977, 16
      %v3023 = vrot.slane %v3021, 5
      %v3024 = vor.u32 %v3020, %v3023
      %v3025 = vrot.slane %v3024, 4
      %v3027 = vshll.u32 %v2978, 16
      %v3029 = vrot.slane %v3027, 5
      %v3030 = vsel %vm285, %v3025, %v3029
      %v3032 = vshrl.u32 %v2979, 16
      %v3034 = vrot.slane %v3032, 4
      %v3035 = vshll.u32 %v2979, 16
      %v3037 = vrot.slane %v3035, 5
      %v3038 = vor.u32 %v3034, %v3037
      %v3039 = vrot.slane %v3038, 4
      %v3041 = vshll.u32 %v2980, 16
      %v3043 = vrot.slane %v3041, 5
      %v3044 = vsel %vm285, %v3039, %v3043
      %v3046 = vshrl.u32 %v2981, 16
      %v3048 = vrot.slane %v3046, 4
      %v3049 = vshll.u32 %v2981, 16
      %v3051 = vrot.slane %v3049, 5
      %v3052 = vor.u32 %v3048, %v3051
      %v3053 = vrot.slane %v3052, 4
      %v3055 = vshll.u32 %v2982, 16
      %v3057 = vrot.slane %v3055, 5
      %v3058 = vsel %vm285, %v3053, %v3057
      %v3060 = vshrl.u32 %v2983, 16
      %v3062 = vrot.slane %v3060, 4
      %v3063 = vshll.u32 %v2983, 16
      %v3065 = vrot.slane %v3063, 5
      %v3066 = vor.u32 %v3062, %v3065
      %v3067 = vrot.slane %v3066, 4
      %v3069 = vshll.u32 %v2984, 16
      %v3071 = vrot.slane %v3069, 5
      %v3072 = vsel %vm285, %v3067, %v3071
      %v3074 = vshrl.u32 %v2985, 16
      %v3076 = vrot.slane %v3074, 4
      %v3077 = vshll.u32 %v2985, 16
      %v3079 = vrot.slane %v3077, 5
      %v3080 = vor.u32 %v3076, %v3079
      %v3081 = vrot.slane %v3080, 4
      %v3083 = vshll.u32 %v2986, 16
      %v3085 = vrot.slane %v3083, 5
      %v3086 = vsel %vm285, %v3081, %v3085
      %v3088 = vshrl.u32 %v2987, 16
      %v3090 = vrot.slane %v3088, 4
      %v3091 = vshll.u32 %v2987, 16
      %v3093 = vrot.slane %v3091, 5
      %v3094 = vor.u32 %v3090, %v3093
      %v3095 = vrot.slane %v3094, 4
      %v3097 = vshll.u32 %v2988, 16
      %v3099 = vrot.slane %v3097, 5
      %v3100 = vsel %vm285, %v3095, %v3099
      %s3101 = scalar_lea.vmem %s2, 448
      %v3102 = vld [vmem:[%s3101] sm:$0xf]
      %v3103 = vld [vmem:[%s3101 + $0x4] sm:$0xf]
      %v3104 = vld [vmem:[%s3101 + $0x8] sm:$0xf]
      %v3105 = vld [vmem:[%s3101 + $0xc] sm:$0xf]
      %v3106 = vld [vmem:[%s3101 + $0x10] sm:$0xf]
      %v3107 = vld [vmem:[%s3101 + $0x14] sm:$0xf]
      %v3108 = vld [vmem:[%s3101 + $0x18] sm:$0xf]
      %v3109 = vld [vmem:[%s3101 + $0x1c] sm:$0xf]
      %v3110 = vld [vmem:[%s3101 + $0x20] sm:$0xf]
      %v3111 = vld [vmem:[%s3101 + $0x24] sm:$0xf]
      %v3112 = vld [vmem:[%s3101 + $0x28] sm:$0xf]
      %v3113 = vld [vmem:[%s3101 + $0x2c] sm:$0xf]
      %v3114 = vld [vmem:[%s3101 + $0x30] sm:$0xf]
      %v3115 = vld [vmem:[%s3101 + $0x34] sm:$0xf]
      %v3116 = vld [vmem:[%s3101 + $0x38] sm:$0xf]
      %v3117 = vld [vmem:[%s3101 + $0x3c] sm:$0xf]
      %v3118 = vunpack.c.l.b16 %v3002
      %v3119 = vunpack.c.l.b16 %v3016
      %v3120 = vunpack.c.l.b16 %v3030
      %v3121 = vunpack.c.l.b16 %v3044
      %v3122 = vunpack.c.l.b16 %v3058
      %v3123 = vunpack.c.l.b16 %v3072
      %v3124 = vunpack.c.l.b16 %v3086
      %v3125 = vunpack.c.l.b16 %v3100
      %v3126 = vpack.c.b16 %v3119, %v3118
      %v3127 = vpack.c.b16 %v3121, %v3120
      %v3128 = vpack.c.b16 %v3123, %v3122
      %v3129 = vpack.c.b16 %v3125, %v3124
      %v3150 = vunpack.c.l.b16 %v3102
      %v3151 = vunpack.c.l.b16 %v3103
      %v3152 = vunpack.c.l.b16 %v3104
      %v3153 = vunpack.c.l.b16 %v3105
      %v3154 = vunpack.c.l.b16 %v3106
      %v3155 = vunpack.c.l.b16 %v3107
      %v3156 = vunpack.c.l.b16 %v3108
      %v3157 = vunpack.c.l.b16 %v3109
      %v3158 = vunpack.c.l.b16 %v3110
      %v3159 = vunpack.c.l.b16 %v3111
      %v3160 = vunpack.c.l.b16 %v3112
      %v3161 = vunpack.c.l.b16 %v3113
      %v3162 = vunpack.c.l.b16 %v3114
      %v3163 = vunpack.c.l.b16 %v3115
      %v3164 = vunpack.c.l.b16 %v3116
      %v3165 = vunpack.c.l.b16 %v3117
      %v3166 = vpack.c.b16 %v3151, %v3150
      %v3167 = vpack.c.b16 %v3153, %v3152
      %v3168 = vpack.c.b16 %v3155, %v3154
      %v3169 = vpack.c.b16 %v3157, %v3156
      %v3170 = vpack.c.b16 %v3159, %v3158
      %v3171 = vpack.c.b16 %v3161, %v3160
      %v3172 = vpack.c.b16 %v3163, %v3162
      %v3173 = vpack.c.b16 %v3165, %v3164
      %3182 = vmatprep.subr.bf16.mxu0 0
      %3183 = vmatpush1.bf16.msra.mxu0 %v3173
      %3184 = vmatprep.subr.bf16.mxu0 0
      %3185 = vmatpush1.bf16.msra.mxu0 %v3172
      %3186 = vmatprep.subr.bf16.mxu0 0
      %3187 = vmatpush1.bf16.msra.mxu0 %v3171
      %3188 = vmatprep.subr.bf16.mxu0 0
      %3189 = vmatpush1.bf16.msra.mxu0 %v3170
      %3190 = vmatprep.subr.bf16.mxu0 0
      %3191 = vmatpush1.bf16.msra.mxu0 %v3169
      %3192 = vmatprep.subr.bf16.mxu0 0
      %3193 = vmatpush1.bf16.msra.mxu0 %v3168
      %3194 = vmatprep.subr.bf16.mxu0 0
      %3195 = vmatpush1.bf16.msra.mxu0 %v3167
      %3196 = vmatprep.subr.bf16.mxu0 0
      %3197 = vmatpush1.bf16.msra.mxu0 %v3166
      %3198 = vmatprep.subr.bf16.mxu0 0
      %3199 = vmatpush2.bf16.msra.mxu0 0
      %3200 = vmatprep.subr.bf16.mxu0 0
      %3201 = vmatpush2.bf16.msra.mxu0 0
      %3202 = vmatprep.subr.bf16.mxu0 0
      %3203 = vmatpush2.bf16.msra.mxu0 0
      %3204 = vmatprep.subr.bf16.mxu0 0
      %3205 = vmatpush2.bf16.msra.mxu0 0
      %3206 = vmatprep.subr.bf16.mxu0 0
      %3207 = vmatpush2.bf16.msra.mxu0 0
      %3208 = vmatprep.subr.bf16.mxu0 0
      %3209 = vmatpush2.bf16.msra.mxu0 0
      %3210 = vmatprep.subr.bf16.mxu0 0
      %3211 = vmatpush2.bf16.msra.mxu0 0
      %3212 = vmatprep.subr.bf16.mxu0 0
      %3213 = vmatpush2.bf16.msra.mxu0 0
      %3214 = vmatprep.mubr.bf16.mxu0 0
      %3215 = vmatmul.mubr.bf16.gmra.mxu0 %v3126
      %v3216 = vpop.f32.mrf.mxu0
      %v3217 = vadd.f32 0.0, %v3216
      %v3218 = vpop.f32.mrf.mxu0
      %v3219 = vpop.f32.mrf.mxu0
      %v3220 = vadd.f32 0.0, %v3219
      %v3221 = vpop.f32.mrf.mxu0
      %3222 = vmatprep.mubr.bf16.mxu0 0
      %3223 = vmatmul.mubr.bf16.gmra.mxu0 %v3127
      %v3224 = vpop.f32.mrf.mxu0
      %v3225 = vadd.f32 0.0, %v3224
      %v3226 = vpop.f32.mrf.mxu0
      %v3227 = vpop.f32.mrf.mxu0
      %v3228 = vadd.f32 0.0, %v3227
      %v3229 = vpop.f32.mrf.mxu0
      %3230 = vmatprep.mubr.bf16.mxu0 0
      %3231 = vmatmul.mubr.bf16.gmra.mxu0 %v3128
      %v3232 = vpop.f32.mrf.mxu0
      %v3233 = vadd.f32 0.0, %v3232
      %v3234 = vpop.f32.mrf.mxu0
      %v3235 = vpop.f32.mrf.mxu0
      %v3236 = vadd.f32 0.0, %v3235
      %v3237 = vpop.f32.mrf.mxu0
      %3238 = vmatprep.mubr.bf16.mxu0 0
      %3239 = vmatmul.mubr.bf16.gmra.mxu0 %v3129
      %v3240 = vpop.f32.mrf.mxu0
      %v3241 = vadd.f32 0.0, %v3240
      %v3242 = vpop.f32.mrf.mxu0
      %v3243 = vpop.f32.mrf.mxu0
      %v3244 = vadd.f32 0.0, %v3243
      %v3245 = vpop.f32.mrf.mxu0
      %3246 = vdwg.mxu0
      %v3247 = vld [vmem:[#allocation3] sm:$0xff]
      %v3248 = vld [vmem:[#allocation3 + $0x8] sm:$0xff]
      %v3249 = vld [vmem:[#allocation3 + $0x10] sm:$0xff]
      %v3250 = vld [vmem:[#allocation3 + $0x18] sm:$0xff]
      %v3251 = vld [vmem:[#allocation3 + $0x20] sm:$0xff]
      %v3252 = vld [vmem:[#allocation3 + $0x28] sm:$0xff]
      %v3253 = vld [vmem:[#allocation3 + $0x30] sm:$0xff]
      %v3254 = vld [vmem:[#allocation3 + $0x38] sm:$0xff]
      %v3255 = vadd.f32 %v3247, %v3217
      %v3256 = vadd.f32 %v3248, %v3220
      %v3257 = vadd.f32 %v3249, %v3225
      %v3258 = vadd.f32 %v3250, %v3228
      %v3259 = vadd.f32 %v3251, %v3233
      %v3260 = vadd.f32 %v3252, %v3236
      %v3261 = vadd.f32 %v3253, %v3241
      %v3262 = vadd.f32 %v3254, %v3244
      %3263 = vst [vmem:[#allocation3] sm:$0xff] %v3255
      %3264 = vst [vmem:[#allocation3 + $0x8] sm:$0xff] %v3256
      %3265 = vst [vmem:[#allocation3 + $0x10] sm:$0xff] %v3257
      %3266 = vst [vmem:[#allocation3 + $0x18] sm:$0xff] %v3258
      %3267 = vst [vmem:[#allocation3 + $0x20] sm:$0xff] %v3259
      %3268 = vst [vmem:[#allocation3 + $0x28] sm:$0xff] %v3260
      %3269 = vst [vmem:[#allocation3 + $0x30] sm:$0xff] %v3261
      %3270 = vst [vmem:[#allocation3 + $0x38] sm:$0xff] %v3262
      %v3271 = vld [vmem:[%s2786] sm:$0xe]
      %v3272 = vld [vmem:[%s2786 + $0x4] sm:$0x1]
      %v3273 = vld [vmem:[%s2786 + $0x8] sm:$0xe]
      %v3274 = vld [vmem:[%s2786 + $0xc] sm:$0x1]
      %v3275 = vld [vmem:[%s2786 + $0x10] sm:$0xe]
      %v3276 = vld [vmem:[%s2786 + $0x14] sm:$0x1]
      %v3277 = vld [vmem:[%s2786 + $0x18] sm:$0xe]
      %v3278 = vld [vmem:[%s2786 + $0x1c] sm:$0x1]
      %v3279 = vld [vmem:[%s2786 + $0x20] sm:$0xe]
      %v3280 = vld [vmem:[%s2786 + $0x24] sm:$0x1]
      %v3281 = vld [vmem:[%s2786 + $0x28] sm:$0xe]
      %v3282 = vld [vmem:[%s2786 + $0x2c] sm:$0x1]
      %v3283 = vld [vmem:[%s2786 + $0x30] sm:$0xe]
      %v3284 = vld [vmem:[%s2786 + $0x34] sm:$0x1]
      %v3285 = vld [vmem:[%s2786 + $0x38] sm:$0xe]
      %v3286 = vld [vmem:[%s2786 + $0x3c] sm:$0x1]
      %v3303 = vrot.slane %v3271, 5
      %v3304 = vrot.slane %v3303, 4
      %v3305 = vrot.slane %v3272, 5
      %v3306 = vsel %vm1864, %v3304, %v3305
      %v3307 = vrot.slane %v3273, 5
      %v3308 = vrot.slane %v3307, 4
      %v3309 = vrot.slane %v3274, 5
      %v3310 = vsel %vm1864, %v3308, %v3309
      %v3311 = vrot.slane %v3275, 5
      %v3312 = vrot.slane %v3311, 4
      %v3313 = vrot.slane %v3276, 5
      %v3314 = vsel %vm1864, %v3312, %v3313
      %v3315 = vrot.slane %v3277, 5
      %v3316 = vrot.slane %v3315, 4
      %v3317 = vrot.slane %v3278, 5
      %v3318 = vsel %vm1864, %v3316, %v3317
      %v3319 = vrot.slane %v3279, 5
      %v3320 = vrot.slane %v3319, 4
      %v3321 = vrot.slane %v3280, 5
      %v3322 = vsel %vm1864, %v3320, %v3321
      %v3323 = vrot.slane %v3281, 5
      %v3324 = vrot.slane %v3323, 4
      %v3325 = vrot.slane %v3282, 5
      %v3326 = vsel %vm1864, %v3324, %v3325
      %v3327 = vrot.slane %v3283, 5
      %v3328 = vrot.slane %v3327, 4
      %v3329 = vrot.slane %v3284, 5
      %v3330 = vsel %vm1864, %v3328, %v3329
      %v3331 = vrot.slane %v3285, 5
      %v3332 = vrot.slane %v3331, 4
      %v3333 = vrot.slane %v3286, 5
      %v3334 = vsel %vm1864, %v3332, %v3333
      %s3335 = scalar_lea.vmem %s2, 512
      %v3336 = vld [vmem:[%s3335] sm:$0xf]
      %v3337 = vld [vmem:[%s3335 + $0x4] sm:$0xf]
      %v3338 = vld [vmem:[%s3335 + $0x8] sm:$0xf]
      %v3339 = vld [vmem:[%s3335 + $0xc] sm:$0xf]
      %v3340 = vld [vmem:[%s3335 + $0x10] sm:$0xf]
      %v3341 = vld [vmem:[%s3335 + $0x14] sm:$0xf]
      %v3342 = vld [vmem:[%s3335 + $0x18] sm:$0xf]
      %v3343 = vld [vmem:[%s3335 + $0x1c] sm:$0xf]
      %v3344 = vld [vmem:[%s3335 + $0x20] sm:$0xf]
      %v3345 = vld [vmem:[%s3335 + $0x24] sm:$0xf]
      %v3346 = vld [vmem:[%s3335 + $0x28] sm:$0xf]
      %v3347 = vld [vmem:[%s3335 + $0x2c] sm:$0xf]
      %v3348 = vld [vmem:[%s3335 + $0x30] sm:$0xf]
      %v3349 = vld [vmem:[%s3335 + $0x34] sm:$0xf]
      %v3350 = vld [vmem:[%s3335 + $0x38] sm:$0xf]
      %v3351 = vld [vmem:[%s3335 + $0x3c] sm:$0xf]
      %v3352 = vunpack.c.l.b16 %v3306
      %v3353 = vunpack.c.l.b16 %v3310
      %v3354 = vunpack.c.l.b16 %v3314
      %v3355 = vunpack.c.l.b16 %v3318
      %v3356 = vunpack.c.l.b16 %v3322
      %v3357 = vunpack.c.l.b16 %v3326
      %v3358 = vunpack.c.l.b16 %v3330
      %v3359 = vunpack.c.l.b16 %v3334
      %v3360 = vpack.c.b16 %v3353, %v3352
      %v3361 = vpack.c.b16 %v3355, %v3354
      %v3362 = vpack.c.b16 %v3357, %v3356
      %v3363 = vpack.c.b16 %v3359, %v3358
      %v3384 = vunpack.c.l.b16 %v3336
      %v3385 = vunpack.c.l.b16 %v3337
      %v3386 = vunpack.c.l.b16 %v3338
      %v3387 = vunpack.c.l.b16 %v3339
      %v3388 = vunpack.c.l.b16 %v3340
      %v3389 = vunpack.c.l.b16 %v3341
      %v3390 = vunpack.c.l.b16 %v3342
      %v3391 = vunpack.c.l.b16 %v3343
      %v3392 = vunpack.c.l.b16 %v3344
      %v3393 = vunpack.c.l.b16 %v3345
      %v3394 = vunpack.c.l.b16 %v3346
      %v3395 = vunpack.c.l.b16 %v3347
      %v3396 = vunpack.c.l.b16 %v3348
      %v3397 = vunpack.c.l.b16 %v3349
      %v3398 = vunpack.c.l.b16 %v3350
      %v3399 = vunpack.c.l.b16 %v3351
      %v3400 = vpack.c.b16 %v3385, %v3384
      %v3401 = vpack.c.b16 %v3387, %v3386
      %v3402 = vpack.c.b16 %v3389, %v3388
      %v3403 = vpack.c.b16 %v3391, %v3390
      %v3404 = vpack.c.b16 %v3393, %v3392
      %v3405 = vpack.c.b16 %v3395, %v3394
      %v3406 = vpack.c.b16 %v3397, %v3396
      %v3407 = vpack.c.b16 %v3399, %v3398
      %3416 = vmatprep.subr.bf16.mxu0 0
      %3417 = vmatpush1.bf16.msra.mxu0 %v3407
      %3418 = vmatprep.subr.bf16.mxu0 0
      %3419 = vmatpush1.bf16.msra.mxu0 %v3406
      %3420 = vmatprep.subr.bf16.mxu0 0
      %3421 = vmatpush1.bf16.msra.mxu0 %v3405
      %3422 = vmatprep.subr.bf16.mxu0 0
      %3423 = vmatpush1.bf16.msra.mxu0 %v3404
      %3424 = vmatprep.subr.bf16.mxu0 0
      %3425 = vmatpush1.bf16.msra.mxu0 %v3403
      %3426 = vmatprep.subr.bf16.mxu0 0
      %3427 = vmatpush1.bf16.msra.mxu0 %v3402
      %3428 = vmatprep.subr.bf16.mxu0 0
      %3429 = vmatpush1.bf16.msra.mxu0 %v3401
      %3430 = vmatprep.subr.bf16.mxu0 0
      %3431 = vmatpush1.bf16.msra.mxu0 %v3400
      %3432 = vmatprep.subr.bf16.mxu0 0
      %3433 = vmatpush2.bf16.msra.mxu0 0
      %3434 = vmatprep.subr.bf16.mxu0 0
      %3435 = vmatpush2.bf16.msra.mxu0 0
      %3436 = vmatprep.subr.bf16.mxu0 0
      %3437 = vmatpush2.bf16.msra.mxu0 0
      %3438 = vmatprep.subr.bf16.mxu0 0
      %3439 = vmatpush2.bf16.msra.mxu0 0
      %3440 = vmatprep.subr.bf16.mxu0 0
      %3441 = vmatpush2.bf16.msra.mxu0 0
      %3442 = vmatprep.subr.bf16.mxu0 0
      %3443 = vmatpush2.bf16.msra.mxu0 0
      %3444 = vmatprep.subr.bf16.mxu0 0
      %3445 = vmatpush2.bf16.msra.mxu0 0
      %3446 = vmatprep.subr.bf16.mxu0 0
      %3447 = vmatpush2.bf16.msra.mxu0 0
      %3448 = vmatprep.mubr.bf16.mxu0 0
      %3449 = vmatmul.mubr.bf16.gmra.mxu0 %v3360
      %v3450 = vpop.f32.mrf.mxu0
      %v3451 = vadd.f32 0.0, %v3450
      %v3452 = vpop.f32.mrf.mxu0
      %v3453 = vpop.f32.mrf.mxu0
      %v3454 = vadd.f32 0.0, %v3453
      %v3455 = vpop.f32.mrf.mxu0
      %3456 = vmatprep.mubr.bf16.mxu0 0
      %3457 = vmatmul.mubr.bf16.gmra.mxu0 %v3361
      %v3458 = vpop.f32.mrf.mxu0
      %v3459 = vadd.f32 0.0, %v3458
      %v3460 = vpop.f32.mrf.mxu0
      %v3461 = vpop.f32.mrf.mxu0
      %v3462 = vadd.f32 0.0, %v3461
      %v3463 = vpop.f32.mrf.mxu0
      %3464 = vmatprep.mubr.bf16.mxu0 0
      %3465 = vmatmul.mubr.bf16.gmra.mxu0 %v3362
      %v3466 = vpop.f32.mrf.mxu0
      %v3467 = vadd.f32 0.0, %v3466
      %v3468 = vpop.f32.mrf.mxu0
      %v3469 = vpop.f32.mrf.mxu0
      %v3470 = vadd.f32 0.0, %v3469
      %v3471 = vpop.f32.mrf.mxu0
      %3472 = vmatprep.mubr.bf16.mxu0 0
      %3473 = vmatmul.mubr.bf16.gmra.mxu0 %v3363
      %v3474 = vpop.f32.mrf.mxu0
      %v3475 = vadd.f32 0.0, %v3474
      %v3476 = vpop.f32.mrf.mxu0
      %v3477 = vpop.f32.mrf.mxu0
      %v3478 = vadd.f32 0.0, %v3477
      %v3479 = vpop.f32.mrf.mxu0
      %3480 = vdwg.mxu0
      %v3481 = vld [vmem:[#allocation3] sm:$0xff]
      %v3482 = vld [vmem:[#allocation3 + $0x8] sm:$0xff]
      %v3483 = vld [vmem:[#allocation3 + $0x10] sm:$0xff]
      %v3484 = vld [vmem:[#allocation3 + $0x18] sm:$0xff]
      %v3485 = vld [vmem:[#allocation3 + $0x20] sm:$0xff]
      %v3486 = vld [vmem:[#allocation3 + $0x28] sm:$0xff]
      %v3487 = vld [vmem:[#allocation3 + $0x30] sm:$0xff]
      %v3488 = vld [vmem:[#allocation3 + $0x38] sm:$0xff]
      %v3489 = vadd.f32 %v3481, %v3451
      %v3490 = vadd.f32 %v3482, %v3454
      %v3491 = vadd.f32 %v3483, %v3459
      %v3492 = vadd.f32 %v3484, %v3462
      %v3493 = vadd.f32 %v3485, %v3467
      %v3494 = vadd.f32 %v3486, %v3470
      %v3495 = vadd.f32 %v3487, %v3475
      %v3496 = vadd.f32 %v3488, %v3478
      %3497 = vst [vmem:[#allocation3] sm:$0xff] %v3489
      %3498 = vst [vmem:[#allocation3 + $0x8] sm:$0xff] %v3490
      %3499 = vst [vmem:[#allocation3 + $0x10] sm:$0xff] %v3491
      %3500 = vst [vmem:[#allocation3 + $0x18] sm:$0xff] %v3492
      %3501 = vst [vmem:[#allocation3 + $0x20] sm:$0xff] %v3493
      %3502 = vst [vmem:[#allocation3 + $0x28] sm:$0xff] %v3494
      %3503 = vst [vmem:[#allocation3 + $0x30] sm:$0xff] %v3495
      %3504 = vst [vmem:[#allocation3 + $0x38] sm:$0xff] %v3496
      %v3505 = vld [vmem:[#allocation3] sm:$0xff]
      %v3506 = vld [vmem:[#allocation3 + $0x8] sm:$0xff]
      %v3507 = vld [vmem:[#allocation3 + $0x10] sm:$0xff]
      %v3508 = vld [vmem:[#allocation3 + $0x18] sm:$0xff]
      %v3509 = vld [vmem:[#allocation3 + $0x20] sm:$0xff]
      %v3510 = vld [vmem:[#allocation3 + $0x28] sm:$0xff]
      %v3511 = vld [vmem:[#allocation3 + $0x30] sm:$0xff]
      %v3512 = vld [vmem:[#allocation3 + $0x38] sm:$0xff]
      %v3513 = vld [vmem:[%s4] sm:$0x1]
      %v3515 = vlaneseq
      %v3516 = vshrl.u32 %v3515, 7
      %v3517 = vsub.s32 0, %v3516
      %v3518 = vrot.slane %v3513, %v3517
      %v3520 = vadd.f32 %v3505, %v3518
      %v3521 = vadd.f32 %v3506, %v3518
      %v3522 = vadd.f32 %v3507, %v3518
      %v3523 = vadd.f32 %v3508, %v3518
      %v3524 = vadd.f32 %v3509, %v3518
      %v3525 = vadd.f32 %v3510, %v3518
      %v3526 = vadd.f32 %v3511, %v3518
      %v3527 = vadd.f32 %v3512, %v3518
      %v3528 = vmax.f32 %v3520, 0.0
      %v3529 = vmax.f32 %v3521, 0.0
      %v3530 = vmax.f32 %v3522, 0.0
      %v3531 = vmax.f32 %v3523, 0.0
      %v3532 = vmax.f32 %v3524, 0.0
      %v3533 = vmax.f32 %v3525, 0.0
      %v3534 = vmax.f32 %v3526, 0.0
      %v3535 = vmax.f32 %v3527, 0.0
      %v3536 = vld [vmem:[#allocation4] sm:$0xff]
      %v3537 = vld [vmem:[#allocation4 + $0x8] sm:$0xff]
      %v3538 = vld [vmem:[#allocation4 + $0x10] sm:$0xff]
      %v3539 = vld [vmem:[#allocation4 + $0x18] sm:$0xff]
      %v3540 = vld [vmem:[#allocation4 + $0x20] sm:$0xff]
      %v3541 = vld [vmem:[#allocation4 + $0x28] sm:$0xff]
      %v3542 = vld [vmem:[#allocation4 + $0x30] sm:$0xff]
      %v3543 = vld [vmem:[#allocation4 + $0x38] sm:$0xff]
      %v3544 = vadd.f32 %v3528, %v3536
      %v3545 = vadd.f32 %v3529, %v3537
      %v3546 = vadd.f32 %v3530, %v3538
      %v3547 = vadd.f32 %v3531, %v3539
      %v3548 = vadd.f32 %v3532, %v3540
      %v3549 = vadd.f32 %v3533, %v3541
      %v3550 = vadd.f32 %v3534, %v3542
      %v3551 = vadd.f32 %v3535, %v3543
      %v3552 = vmax.f32 %v3544, 0.0
      %v3553 = vmax.f32 %v3545, 0.0
      %v3554 = vmax.f32 %v3546, 0.0
      %v3555 = vmax.f32 %v3547, 0.0
      %v3556 = vmax.f32 %v3548, 0.0
      %v3557 = vmax.f32 %v3549, 0.0
      %v3558 = vmax.f32 %v3550, 0.0
      %v3559 = vmax.f32 %v3551, 0.0
      %v3560 = vpack.c.bf16 %v3552, %v3552
      %v3561 = vpack.c.bf16 %v3553, %v3553
      %v3562 = vpack.c.bf16 %v3554, %v3554
      %v3563 = vpack.c.bf16 %v3555, %v3555
      %v3564 = vpack.c.bf16 %v3556, %v3556
      %v3565 = vpack.c.bf16 %v3557, %v3557
      %v3566 = vpack.c.bf16 %v3558, %v3558
      %v3567 = vpack.c.bf16 %v3559, %v3559
      %3568 = vst [vmem:[%s256] sm:$0xf] %v3560
      %3569 = vst [vmem:[%s256 + $0x4] sm:$0xf] %v3561
      %3570 = vst [vmem:[%s256 + $0x8] sm:$0xf] %v3562
      %3571 = vst [vmem:[%s256 + $0xc] sm:$0xf] %v3563
      %3572 = vst [vmem:[%s256 + $0x10] sm:$0xf] %v3564
      %3573 = vst [vmem:[%s256 + $0x14] sm:$0xf] %v3565
      %3574 = vst [vmem:[%s256 + $0x18] sm:$0xf] %v3566
      %3575 = vst [vmem:[%s256 + $0x1c] sm:$0xf] %v3567
      %p3576 = scmp.lt.s32.totalorder %s17, 1
      %s3577 = scalar_select %p3576, %s17, 1
      %s3578 = smul.addr %s3577, 8
      %s3579 = smul.addr %s3578, 4
      %s3580 = scalar_lea.vmem %s6, %s3579
      // Predicated region
      $region45: #{resblock_forward.1} parent=43 // pred_check
        %p3581 = pneg %p166
      $region46: #{resblock_forward.1} parent=43 // pred_check_branch
        %3583 = sbr.rel (%p3581) target = $region48
      $region47: #{resblock_forward.1} parent=43 // pred_region
        _
      $region48: #{resblock_forward.1} parent=43 // pred_fallthru
        _
    $region44: #{resblock_forward.1} parent=5 // pred_fallthru
      _
    %p3584 = scmp.le.s32.totalorder 2, %s12
    // Predicated region
    $region49: #{resblock_forward.1} parent=5 // pred_check
      %p3585 = pneg %p3584
    $region50: #{resblock_forward.1} parent=5 // pred_check_branch
      %3587 = sbr.rel (%p3585) target = $region52
    $region51: #{resblock_forward.1} parent=5 // pred_region
      %s3588 = ssub.s32 %s12, 2
      // Predicated region
      $region53: #{resblock_forward.1} parent=51 // pred_check
        %p3589 = pneg %p172
      $region54: #{resblock_forward.1} parent=51 // pred_check_branch
        %3591 = sbr.rel (%p3589) target = $region56
      $region55: #{resblock_forward.1} parent=51 // pred_region
        %p3592 = scmp.lt.s32.totalorder %s18, 1
        %s3593 = scalar_select %p3592, %s18, 1
        %s3594 = smul.addr %s3593, 8
        %s3595 = smul.addr %s3594, 4
        %s3596 = scalar_lea.vmem %s6, %s3595
      $region56: #{resblock_forward.1} parent=51 // pred_fallthru
        _
    $region52: #{resblock_forward.1} parent=5 // pred_fallthru
      _
  $region6: #{resblock_forward.1} parent=0 // loop_footer
    %s16 = sadd.s32 1, %s12
  $region7: #{resblock_forward.1} parent=0 // loop_footer_branch
    %11 = sbr.rel target = $region3
  $region8: #{resblock_forward.1} parent=0 // loop_exit
    _

</llo_original>
